<compile_context>
chip_gen: v7x
topology: tpu7x:2x2x1
jax: 0.10.0
libtpu: 0.0.40
codegen_flags: <defaults>
</compile_context>

<pallas_src>
import functools

import jax
import jax.numpy as jnp
from jax.experimental import pallas as pl
from jax.experimental.pallas import tpu as pltpu

# ----------------------- config (mirrors T_config) --------------------------
HIDDEN = 32
N_HEADS = 4
HEAD_DIM = HIDDEN // N_HEADS
N_LAYERS = 2
INTERMEDIATE = 64
VOCAB = 16
MAX_POS = 64
TYPE_VOCAB = 2
N_CLASS = 3
PRED_PAD = 128          # lane-padded classifier output width
LN_EPS = 1e-12          # BertConfig.layer_norm_eps
CLF_LN_EPS = 1e-5       # nn.LayerNorm default eps (classifier head)
NEG_INF = -1e30         # additive attention-mask bias for masked keys


# ----------------------- in-kernel math helpers -----------------------------
def _layer_norm(x, g, b, eps=LN_EPS):
    mu = jnp.mean(x, axis=-1, keepdims=True)
    xc = x - mu
    var = jnp.mean(xc * xc, axis=-1, keepdims=True)
    return xc * jax.lax.rsqrt(var + eps) * g + b


def _gelu(x):
    # TODO(synk): HF BERT / nn.GELU default to exact erf-GELU; tanh approximation used here.
    return 0.5 * x * (1.0 + jnp.tanh(0.7978845608028654 * (x + 0.044715 * x * x * x)))


def _bf16(x):
    return x.astype(jnp.bfloat16)


# ----------------------- single fused forward kernel ------------------------
def _fused_forward_kernel(x_ref, bias_ref, embln_ref,
                          wqkv_ref, bqkv_ref, wo_ref, wi_ref, bi_ref, wf_ref,
                          vech_ref,
                          w1_ref, v4_ref, w2_ref, v2_ref, w3_ref, b3_ref,
                          pred_ref, *, B, S):
    f32 = jnp.float32

    # ---- BertEmbeddings LayerNorm (embedding sum precomputed in the wrapper) ----
    embln = embln_ref[...]                                       # (2, H): [gamma, beta]
    h = _layer_norm(x_ref[...], embln[0:1, :], embln[1:2, :])    # (B*S, H)

    # additive mask bias replicated per (batch, head): (B*NH, 1, S)
    bias_all = bias_ref[...]                                     # (B, S)
    bias_bh = jnp.stack(
        [bias_all[b:b + 1, :] for b in range(B) for _ in range(N_HEADS)],
        axis=0)

    scale = 1.0 / (HEAD_DIM ** 0.5)

    # ---- BERT encoder layers (static unrolled loop, all state in VMEM) ----
    for l in range(N_LAYERS):
        wqkv = wqkv_ref[l]                                       # (H, 3H)
        bqkv = bqkv_ref[l]                                       # (1, 3H)
        wo = wo_ref[l]                                           # (H, H)
        wi = wi_ref[l]                                           # (H, I)
        bi = bi_ref[l]                                           # (1, I)
        wf = wf_ref[l]                                           # (I, H)
        vec = vech_ref[l]                                        # (6, H)
        bo, ln1g, ln1b = vec[0:1, :], vec[1:2, :], vec[2:3, :]
        bfb, ln2g, ln2b = vec[3:4, :], vec[4:5, :], vec[5:6, :]

        # fused QKV projection on the flattened (B*S, H) slab
        qkv = jnp.dot(_bf16(h), _bf16(wqkv),
                      preferred_element_type=f32) + bqkv         # (B*S, 3H)

        def per_head(off):
            return jnp.stack(
                [qkv[b * S:(b + 1) * S,
                     off + hh * HEAD_DIM: off + (hh + 1) * HEAD_DIM]
                 for b in range(B) for hh in range(N_HEADS)], axis=0)

        qs = per_head(0)                                         # (B*NH, S, HD)
        ks = per_head(HIDDEN)
        vs = per_head(2 * HIDDEN)

        # head-batched masked softmax attention
        scores = jnp.einsum('bqd,bkd->bqk', _bf16(qs), _bf16(ks),
                            preferred_element_type=f32) * scale + bias_bh
        m = jnp.max(scores, axis=-1, keepdims=True)
        e = jnp.exp(scores - m)
        p = e * pl.reciprocal(jnp.sum(e, axis=-1, keepdims=True), approx=True)

        ctx = jnp.einsum('bqk,bkd->bqd', _bf16(p), _bf16(vs),
                         preferred_element_type=f32)             # (B*NH, S, HD)

        # re-pack heads along lanes, batches along sublanes -> (B*S, H)
        ctx_cat = jnp.concatenate(
            [jnp.concatenate([ctx[b * N_HEADS + hh] for hh in range(N_HEADS)],
                             axis=-1)
             for b in range(B)], axis=0)

        attn = jnp.dot(_bf16(ctx_cat), _bf16(wo),
                       preferred_element_type=f32) + bo          # (B*S, H)

        h1 = _layer_norm(h + attn, ln1g, ln1b)
        ff = _gelu(jnp.dot(_bf16(h1), _bf16(wi),
                           preferred_element_type=f32) + bi)
        ff = jnp.dot(_bf16(ff), _bf16(wf),
                     preferred_element_type=f32) + bfb
        h = _layer_norm(h1 + ff, ln2g, ln2b)

    # ---- classifier head on the CLS token (row b*S of each batch) ----
    cls = jnp.concatenate([h[b * S:b * S + 1, :] for b in range(B)], axis=0)
    v4 = v4_ref[...]                                             # (3, 4H): [b1, g1, be1]
    v2 = v2_ref[...]                                             # (3, 2H): [b2, g2, be2]

    x = jnp.dot(_bf16(cls), _bf16(w1_ref[...]),
                preferred_element_type=f32) + v4[0:1, :]
    x = _gelu(_layer_norm(x, v4[1:2, :], v4[2:3, :], eps=CLF_LN_EPS))
    # Dropout(0.5) -> identity in eval mode.
    x = jnp.dot(_bf16(x), _bf16(w2_ref[...]),
                preferred_element_type=f32) + v2[0:1, :]
    x = _gelu(_layer_norm(x, v2[1:2, :], v2[2:3, :], eps=CLF_LN_EPS))
    pred_ref[...] = jnp.dot(_bf16(x), _bf16(w3_ref[...]),
                            preferred_element_type=f32) + b3_ref[...]


def fused_forward(x2d, bias, params, B, S):
    vmem = pl.BlockSpec(memory_space=pltpu.MemorySpace.VMEM)
    enc, clf = params['enc'], params['clf']
    kernel = functools.partial(_fused_forward_kernel, B=B, S=S)
    return pl.pallas_call(
        kernel,
        out_shape=jax.ShapeDtypeStruct((B, PRED_PAD), jnp.float32),
        in_specs=[vmem] * 16,
        out_specs=vmem,
    )(x2d, bias, params['emb_ln'],
      enc['wqkv'], enc['bqkv'], enc['wo'], enc['wi'], enc['bi'], enc['wf'],
      enc['vec_h'],
      clf['w1'], clf['v4'], clf['w2'], clf['v2'], clf['w3p'], clf['b3p'])


# ----------------------- parameter initialization ---------------------------
def init_params(key):
    keys = iter(jax.random.split(key, 32))

    def nrm(shape):
        return 0.02 * jax.random.normal(next(keys), shape, jnp.float32)

    def zeros(*s):
        return jnp.zeros(s, jnp.float32)

    def ones(*s):
        return jnp.ones(s, jnp.float32)

    H, I, L = HIDDEN, INTERMEDIATE, N_LAYERS

    # per-layer small vectors packed as rows: [bo, ln1_g, ln1_b, bf, ln2_g, ln2_b]
    vec_h_one = jnp.stack([zeros(H), ones(H), zeros(H),
                           zeros(H), ones(H), zeros(H)], axis=0)      # (6, H)

    enc = {
        'wqkv': nrm((L, H, 3 * H)),            # fused [wq | wk | wv]
        'bqkv': zeros(L, 1, 3 * H),
        'wo': nrm((L, H, H)),
        'wi': nrm((L, H, I)),
        'bi': zeros(L, 1, I),
        'wf': nrm((L, I, H)),
        'vec_h': jnp.tile(vec_h_one[None, :, :], (L, 1, 1)),
    }

    w3 = nrm((2 * H, N_CLASS))
    clf = {
        'w1': nrm((H, 4 * H)),
        'v4': jnp.stack([zeros(4 * H), ones(4 * H), zeros(4 * H)], axis=0),
        'w2': nrm((4 * H, 2 * H)),
        'v2': jnp.stack([zeros(2 * H), ones(2 * H), zeros(2 * H)], axis=0),
        'w3p': zeros(2 * H, PRED_PAD).at[:, :N_CLASS].set(w3),   # lane-padded
        'b3p': zeros(1, PRED_PAD),
    }

    return {
        'eds_emb': nrm((VOCAB, H)),            # EDs_embeddings
        'pos_emb': nrm((MAX_POS, H)),          # BERT position embeddings
        'type_emb': nrm((TYPE_VOCAB, H)),      # BERT token-type embeddings
        'emb_ln': jnp.stack([ones(H), zeros(H)], axis=0),        # [gamma, beta]
        'enc': enc,
        'clf': clf,
    }


# ----------------------- forward (GnLD.forward) ------------------------------
def gnld_forward(params, things, things_e, mask_ratio=0.15, token_type_ids=None,
                 fake=False):
    # gather pieces in dict-iteration order (matches the PyTorch loop)
    emb_ = [v['emb'] for v in things.values()]
    am_ = [v['attention_mask'] for v in things.values()]
    pid_ = [v['position_id'] for v in things.values()]
    e_emb_ = [(v['embf'] if fake else v['emb']) for v in things_e.values()]
    e_am_ = [v['attention_mask'] for v in things_e.values()]
    e_pid_ = [v['position_id'] for v in things_e.values()]

    bs = things_e['e']['emb'].shape[0]
    em_cls = jnp.broadcast_to(params['eds_emb'][1][None, None, :],
                              (bs, 1, HIDDEN))
    # em_SEP / em_PAD are built by the PyTorch module but never used in forward.

    input_emb = jnp.concatenate([em_cls, *e_emb_, em_cls, *emb_], axis=1)
    attention_mask = jnp.concatenate(
        [jnp.ones((bs, 1), jnp.float32), *e_am_,
         jnp.ones((bs, 1), jnp.float32), *am_], axis=1)              # (B, S)
    position_ids = jnp.concatenate(
        [jnp.zeros((bs, 1), jnp.float32), *e_pid_,
         jnp.ones((bs, 1), jnp.float32), *pid_], axis=1)             # (B, S) float

    B, S, H = input_emb.shape
    if token_type_ids is None:
        # token_type_ids[:, 2:] = 1
        token_type_ids = jnp.broadcast_to(
            (jnp.arange(S) >= 2).astype(jnp.int32)[None, :], (B, S))

    # BertEmbeddings with inputs_embeds: word + position + token_type (LN in-kernel)
    pos_emb = jnp.take(params['pos_emb'], position_ids.astype(jnp.int32), axis=0)
    type_emb = jnp.take(params['type_emb'], token_type_ids, axis=0)
    emb_sum = (input_emb + pos_emb + type_emb).reshape(B * S, H)

    # extended additive attention mask: 0 keep, NEG_INF masked
    bias = (1.0 - attention_mask) * NEG_INF                          # (B, S)

    pred_pad = fused_forward(emb_sum, bias, params, B, S)
    return pred_pad[:, :N_CLASS]                                     # classifier output


# ----------------------- demo ------------------------------------------------
if __name__ == "__main__":
    key = jax.random.PRNGKey(0)
    pkey, k1, k2, k3 = jax.random.split(key, 4)
    params = init_params(pkey)

    bs, s_e, s1, s2 = 2, 1, 3, 2          # total seq = 1 + s_e + 1 + s1 + s2 = 8
    things_e = {
        'e': {
            'emb': jax.random.normal(k3, (bs, s_e, HIDDEN), jnp.float32),
            'embf': jnp.zeros((bs, s_e, HIDDEN), jnp.float32),
            'attention_mask': jnp.ones((bs, s_e), jnp.float32),
            'position_id': jnp.ones((bs, s_e), jnp.float32),
        },
    }
    things = {
        'vital': {
            'emb': jax.random.normal(k1, (bs, s1, HIDDEN), jnp.float32),
            'attention_mask': jnp.ones((bs, s1), jnp.float32),
            'position_id': jnp.broadcast_to(
                jnp.arange(2, 2 + s1, dtype=jnp.float32), (bs, s1)),
        },
        'lab': {
            'emb': jax.random.normal(k2, (bs, s2, HIDDEN), jnp.float32),
            'attention_mask': jnp.concatenate(
                [jnp.ones((bs, s2 - 1), jnp.float32),
                 jnp.zeros((bs, 1), jnp.float32)], axis=1),
            'position_id': jnp.broadcast_to(
                jnp.arange(2 + s1, 2 + s1 + s2, dtype=jnp.float32), (bs, s2)),
        },
    }

    pred = gnld_forward(params, things, things_e)
    jax.block_until_ready(pred)

    assert pred.shape == (bs, N_CLASS)
    assert bool(jnp.all(jnp.isfinite(pred)))
    print("KERNEL_OK")
</pallas_src>

<mosaic_0001>
module attributes {stable_mosaic.version = 11 : i64} {
  func.func @_fused_forward_kernel(%arg0: memref<16x32xf32, #tpu.memory_space<vmem>>, %arg1: memref<2x8xf32, #tpu.memory_space<vmem>>, %arg2: memref<2x32xf32, #tpu.memory_space<vmem>>, %arg3: memref<2x32x96xf32, #tpu.memory_space<vmem>>, %arg4: memref<2x1x96xf32, #tpu.memory_space<vmem>>, %arg5: memref<2x32x32xf32, #tpu.memory_space<vmem>>, %arg6: memref<2x32x64xf32, #tpu.memory_space<vmem>>, %arg7: memref<2x1x64xf32, #tpu.memory_space<vmem>>, %arg8: memref<2x64x32xf32, #tpu.memory_space<vmem>>, %arg9: memref<2x6x32xf32, #tpu.memory_space<vmem>>, %arg10: memref<32x128xf32, #tpu.memory_space<vmem>>, %arg11: memref<3x128xf32, #tpu.memory_space<vmem>>, %arg12: memref<128x64xf32, #tpu.memory_space<vmem>>, %arg13: memref<3x64xf32, #tpu.memory_space<vmem>>, %arg14: memref<64x128xf32, #tpu.memory_space<vmem>>, %arg15: memref<1x128xf32, #tpu.memory_space<vmem>>, %arg16: memref<2x128xf32, #tpu.memory_space<vmem>>) attributes {dimension_semantics = [], scalar_prefetch = 0 : i64, scratch_operands = 0 : i64, tpu.core_type = #tpu.core_type<tc>} {
    %c0 = arith.constant 0 : index
    %c0_0 = arith.constant 0 : index
    %0 = vector.load %arg2[%c0, %c0_0] : memref<2x32xf32, #tpu.memory_space<vmem>>, vector<2x32xf32>
    %c0_1 = arith.constant 0 : index
    %c0_2 = arith.constant 0 : index
    %1 = vector.load %arg0[%c0_1, %c0_2] : memref<16x32xf32, #tpu.memory_space<vmem>>, vector<16x32xf32>
    %2 = vector.extract_strided_slice %0 {offsets = [0, 0], sizes = [1, 32], strides = [1, 1]} : vector<2x32xf32> to vector<1x32xf32>
    %3 = vector.extract_strided_slice %0 {offsets = [1, 0], sizes = [1, 32], strides = [1, 1]} : vector<2x32xf32> to vector<1x32xf32>
    %cst = arith.constant dense<0.000000e+00> : vector<16xf32>
    %4 = vector.multi_reduction <add>, %1, %cst [1] : vector<16x32xf32> to vector<16xf32>
    %5 = vector.shape_cast %4 : vector<16xf32> to vector<16x1xf32>
    %cst_3 = arith.constant 3.200000e+01 : f32
    %6 = vector.broadcast %cst_3 : f32 to vector<16x1xf32>
    %7 = arith.divf %5, %6 : vector<16x1xf32>
    %8 = vector.broadcast %7 : vector<16x1xf32> to vector<16x32xf32>
    %9 = arith.subf %1, %8 : vector<16x32xf32>
    %10 = arith.mulf %9, %9 : vector<16x32xf32>
    %cst_4 = arith.constant dense<0.000000e+00> : vector<16xf32>
    %11 = vector.multi_reduction <add>, %10, %cst_4 [1] : vector<16x32xf32> to vector<16xf32>
    %12 = vector.shape_cast %11 : vector<16xf32> to vector<16x1xf32>
    %cst_5 = arith.constant 3.200000e+01 : f32
    %13 = vector.broadcast %cst_5 : f32 to vector<16x1xf32>
    %14 = arith.divf %12, %13 : vector<16x1xf32>
    %cst_6 = arith.constant 9.99999996E-13 : f32
    %15 = vector.broadcast %cst_6 : f32 to vector<16x1xf32>
    %16 = arith.addf %14, %15 : vector<16x1xf32>
    %17 = math.rsqrt %16 : vector<16x1xf32>
    %18 = vector.broadcast %17 : vector<16x1xf32> to vector<16x32xf32>
    %19 = arith.mulf %9, %18 : vector<16x32xf32>
    %20 = vector.broadcast %2 : vector<1x32xf32> to vector<16x32xf32>
    %21 = arith.mulf %19, %20 : vector<16x32xf32>
    %22 = vector.broadcast %3 : vector<1x32xf32> to vector<16x32xf32>
    %23 = arith.addf %21, %22 : vector<16x32xf32>
    %c0_7 = arith.constant 0 : index
    %c0_8 = arith.constant 0 : index
    %24 = vector.load %arg1[%c0_7, %c0_8] : memref<2x8xf32, #tpu.memory_space<vmem>>, vector<2x8xf32>
    %25 = vector.extract_strided_slice %24 {offsets = [0, 0], sizes = [1, 8], strides = [1, 1]} : vector<2x8xf32> to vector<1x8xf32>
    %26 = vector.extract_strided_slice %24 {offsets = [0, 0], sizes = [1, 8], strides = [1, 1]} : vector<2x8xf32> to vector<1x8xf32>
    %27 = vector.extract_strided_slice %24 {offsets = [0, 0], sizes = [1, 8], strides = [1, 1]} : vector<2x8xf32> to vector<1x8xf32>
    %28 = vector.extract_strided_slice %24 {offsets = [0, 0], sizes = [1, 8], strides = [1, 1]} : vector<2x8xf32> to vector<1x8xf32>
    %29 = vector.extract_strided_slice %24 {offsets = [1, 0], sizes = [1, 8], strides = [1, 1]} : vector<2x8xf32> to vector<1x8xf32>
    %30 = vector.extract_strided_slice %24 {offsets = [1, 0], sizes = [1, 8], strides = [1, 1]} : vector<2x8xf32> to vector<1x8xf32>
    %31 = vector.extract_strided_slice %24 {offsets = [1, 0], sizes = [1, 8], strides = [1, 1]} : vector<2x8xf32> to vector<1x8xf32>
    %32 = vector.extract_strided_slice %24 {offsets = [1, 0], sizes = [1, 8], strides = [1, 1]} : vector<2x8xf32> to vector<1x8xf32>
    %33 = vector.shape_cast %25 : vector<1x8xf32> to vector<1x1x8xf32>
    %34 = vector.shape_cast %26 : vector<1x8xf32> to vector<1x1x8xf32>
    %35 = vector.shape_cast %27 : vector<1x8xf32> to vector<1x1x8xf32>
    %36 = vector.shape_cast %28 : vector<1x8xf32> to vector<1x1x8xf32>
    %37 = vector.shape_cast %29 : vector<1x8xf32> to vector<1x1x8xf32>
    %38 = vector.shape_cast %30 : vector<1x8xf32> to vector<1x1x8xf32>
    %39 = vector.shape_cast %31 : vector<1x8xf32> to vector<1x1x8xf32>
    %40 = vector.shape_cast %32 : vector<1x8xf32> to vector<1x1x8xf32>
    %41 = tpu.concatenate %33, %34, %35, %36, %37, %38, %39, %40 in 0 : vector<1x1x8xf32>, vector<1x1x8xf32>, vector<1x1x8xf32>, vector<1x1x8xf32>, vector<1x1x8xf32>, vector<1x1x8xf32>, vector<1x1x8xf32>, vector<1x1x8xf32> -> vector<8x1x8xf32>
    %c0_9 = arith.constant 0 : index
    %c0_10 = arith.constant 0 : index
    %c0_11 = arith.constant 0 : index
    %42 = vector.load %arg3[%c0_9, %c0_10, %c0_11] : memref<2x32x96xf32, #tpu.memory_space<vmem>>, vector<1x32x96xf32>
    %43 = vector.shape_cast %42 : vector<1x32x96xf32> to vector<32x96xf32>
    %c0_12 = arith.constant 0 : index
    %c0_13 = arith.constant 0 : index
    %c0_14 = arith.constant 0 : index
    %44 = vector.load %arg4[%c0_12, %c0_13, %c0_14] : memref<2x1x96xf32, #tpu.memory_space<vmem>>, vector<1x1x96xf32>
    %45 = vector.shape_cast %44 : vector<1x1x96xf32> to vector<1x96xf32>
    %c0_15 = arith.constant 0 : index
    %c0_16 = arith.constant 0 : index
    %c0_17 = arith.constant 0 : index
    %46 = vector.load %arg5[%c0_15, %c0_16, %c0_17] : memref<2x32x32xf32, #tpu.memory_space<vmem>>, vector<1x32x32xf32>
    %47 = vector.shape_cast %46 : vector<1x32x32xf32> to vector<32x32xf32>
    %c0_18 = arith.constant 0 : index
    %c0_19 = arith.constant 0 : index
    %c0_20 = arith.constant 0 : index
    %48 = vector.load %arg6[%c0_18, %c0_19, %c0_20] : memref<2x32x64xf32, #tpu.memory_space<vmem>>, vector<1x32x64xf32>
    %49 = vector.shape_cast %48 : vector<1x32x64xf32> to vector<32x64xf32>
    %c0_21 = arith.constant 0 : index
    %c0_22 = arith.constant 0 : index
    %c0_23 = arith.constant 0 : index
    %50 = vector.load %arg7[%c0_21, %c0_22, %c0_23] : memref<2x1x64xf32, #tpu.memory_space<vmem>>, vector<1x1x64xf32>
    %51 = vector.shape_cast %50 : vector<1x1x64xf32> to vector<1x64xf32>
    %c0_24 = arith.constant 0 : index
    %c0_25 = arith.constant 0 : index
    %c0_26 = arith.constant 0 : index
    %52 = vector.load %arg8[%c0_24, %c0_25, %c0_26] : memref<2x64x32xf32, #tpu.memory_space<vmem>>, vector<1x64x32xf32>
    %53 = vector.shape_cast %52 : vector<1x64x32xf32> to vector<64x32xf32>
    %c0_27 = arith.constant 0 : index
    %c0_28 = arith.constant 0 : index
    %c0_29 = arith.constant 0 : index
    %54 = vector.load %arg9[%c0_27, %c0_28, %c0_29] : memref<2x6x32xf32, #tpu.memory_space<vmem>>, vector<1x6x32xf32>
    %55 = vector.shape_cast %54 : vector<1x6x32xf32> to vector<6x32xf32>
    %56 = vector.extract_strided_slice %55 {offsets = [0, 0], sizes = [1, 32], strides = [1, 1]} : vector<6x32xf32> to vector<1x32xf32>
    %57 = vector.extract_strided_slice %55 {offsets = [1, 0], sizes = [1, 32], strides = [1, 1]} : vector<6x32xf32> to vector<1x32xf32>
    %58 = vector.extract_strided_slice %55 {offsets = [2, 0], sizes = [1, 32], strides = [1, 1]} : vector<6x32xf32> to vector<1x32xf32>
    %59 = vector.extract_strided_slice %55 {offsets = [3, 0], sizes = [1, 32], strides = [1, 1]} : vector<6x32xf32> to vector<1x32xf32>
    %60 = vector.extract_strided_slice %55 {offsets = [4, 0], sizes = [1, 32], strides = [1, 1]} : vector<6x32xf32> to vector<1x32xf32>
    %61 = vector.extract_strided_slice %55 {offsets = [5, 0], sizes = [1, 32], strides = [1, 1]} : vector<6x32xf32> to vector<1x32xf32>
    %62 = arith.truncf %23 : vector<16x32xf32> to vector<16x32xbf16>
    %63 = arith.truncf %43 : vector<32x96xf32> to vector<32x96xbf16>
    %cst_30 = arith.constant dense<0.000000e+00> : vector<16x96xf32>
    %64 = tpu.matmul %62, %63, %cst_30 {dimension_numbers = #tpu.dot_dimension_numbers<[1], [0], [0], [1], [0, 0, 1, 1], [], []>} : vector<16x32xbf16>, vector<32x96xbf16>, vector<16x96xf32> -> vector<16x96xf32>
    %65 = vector.broadcast %45 : vector<1x96xf32> to vector<16x96xf32>
    %66 = arith.addf %64, %65 : vector<16x96xf32>
    %67 = vector.extract_strided_slice %66 {offsets = [0, 0], sizes = [8, 8], strides = [1, 1]} : vector<16x96xf32> to vector<8x8xf32>
    %68 = vector.extract_strided_slice %66 {offsets = [0, 8], sizes = [8, 8], strides = [1, 1]} : vector<16x96xf32> to vector<8x8xf32>
    %69 = vector.extract_strided_slice %66 {offsets = [0, 16], sizes = [8, 8], strides = [1, 1]} : vector<16x96xf32> to vector<8x8xf32>
    %70 = vector.extract_strided_slice %66 {offsets = [0, 24], sizes = [8, 8], strides = [1, 1]} : vector<16x96xf32> to vector<8x8xf32>
    %71 = vector.extract_strided_slice %66 {offsets = [8, 0], sizes = [8, 8], strides = [1, 1]} : vector<16x96xf32> to vector<8x8xf32>
    %72 = vector.extract_strided_slice %66 {offsets = [8, 8], sizes = [8, 8], strides = [1, 1]} : vector<16x96xf32> to vector<8x8xf32>
    %73 = vector.extract_strided_slice %66 {offsets = [8, 16], sizes = [8, 8], strides = [1, 1]} : vector<16x96xf32> to vector<8x8xf32>
    %74 = vector.extract_strided_slice %66 {offsets = [8, 24], sizes = [8, 8], strides = [1, 1]} : vector<16x96xf32> to vector<8x8xf32>
    %75 = vector.shape_cast %67 : vector<8x8xf32> to vector<1x8x8xf32>
    %76 = vector.shape_cast %68 : vector<8x8xf32> to vector<1x8x8xf32>
    %77 = vector.shape_cast %69 : vector<8x8xf32> to vector<1x8x8xf32>
    %78 = vector.shape_cast %70 : vector<8x8xf32> to vector<1x8x8xf32>
    %79 = vector.shape_cast %71 : vector<8x8xf32> to vector<1x8x8xf32>
    %80 = vector.shape_cast %72 : vector<8x8xf32> to vector<1x8x8xf32>
    %81 = vector.shape_cast %73 : vector<8x8xf32> to vector<1x8x8xf32>
    %82 = vector.shape_cast %74 : vector<8x8xf32> to vector<1x8x8xf32>
    %83 = tpu.concatenate %75, %76, %77, %78, %79, %80, %81, %82 in 0 : vector<1x8x8xf32>, vector<1x8x8xf32>, vector<1x8x8xf32>, vector<1x8x8xf32>, vector<1x8x8xf32>, vector<1x8x8xf32>, vector<1x8x8xf32>, vector<1x8x8xf32> -> vector<8x8x8xf32>
    %84 = vector.extract_strided_slice %66 {offsets = [0, 32], sizes = [8, 8], strides = [1, 1]} : vector<16x96xf32> to vector<8x8xf32>
    %85 = vector.extract_strided_slice %66 {offsets = [0, 40], sizes = [8, 8], strides = [1, 1]} : vector<16x96xf32> to vector<8x8xf32>
    %86 = vector.extract_strided_slice %66 {offsets = [0, 48], sizes = [8, 8], strides = [1, 1]} : vector<16x96xf32> to vector<8x8xf32>
    %87 = vector.extract_strided_slice %66 {offsets = [0, 56], sizes = [8, 8], strides = [1, 1]} : vector<16x96xf32> to vector<8x8xf32>
    %88 = vector.extract_strided_slice %66 {offsets = [8, 32], sizes = [8, 8], strides = [1, 1]} : vector<16x96xf32> to vector<8x8xf32>
    %89 = vector.extract_strided_slice %66 {offsets = [8, 40], sizes = [8, 8], strides = [1, 1]} : vector<16x96xf32> to vector<8x8xf32>
    %90 = vector.extract_strided_slice %66 {offsets = [8, 48], sizes = [8, 8], strides = [1, 1]} : vector<16x96xf32> to vector<8x8xf32>
    %91 = vector.extract_strided_slice %66 {offsets = [8, 56], sizes = [8, 8], strides = [1, 1]} : vector<16x96xf32> to vector<8x8xf32>
    %92 = vector.shape_cast %84 : vector<8x8xf32> to vector<1x8x8xf32>
    %93 = vector.shape_cast %85 : vector<8x8xf32> to vector<1x8x8xf32>
    %94 = vector.shape_cast %86 : vector<8x8xf32> to vector<1x8x8xf32>
    %95 = vector.shape_cast %87 : vector<8x8xf32> to vector<1x8x8xf32>
    %96 = vector.shape_cast %88 : vector<8x8xf32> to vector<1x8x8xf32>
    %97 = vector.shape_cast %89 : vector<8x8xf32> to vector<1x8x8xf32>
    %98 = vector.shape_cast %90 : vector<8x8xf32> to vector<1x8x8xf32>
    %99 = vector.shape_cast %91 : vector<8x8xf32> to vector<1x8x8xf32>
    %100 = tpu.concatenate %92, %93, %94, %95, %96, %97, %98, %99 in 0 : vector<1x8x8xf32>, vector<1x8x8xf32>, vector<1x8x8xf32>, vector<1x8x8xf32>, vector<1x8x8xf32>, vector<1x8x8xf32>, vector<1x8x8xf32>, vector<1x8x8xf32> -> vector<8x8x8xf32>
    %101 = vector.extract_strided_slice %66 {offsets = [0, 64], sizes = [8, 8], strides = [1, 1]} : vector<16x96xf32> to vector<8x8xf32>
    %102 = vector.extract_strided_slice %66 {offsets = [0, 72], sizes = [8, 8], strides = [1, 1]} : vector<16x96xf32> to vector<8x8xf32>
    %103 = vector.extract_strided_slice %66 {offsets = [0, 80], sizes = [8, 8], strides = [1, 1]} : vector<16x96xf32> to vector<8x8xf32>
    %104 = vector.extract_strided_slice %66 {offsets = [0, 88], sizes = [8, 8], strides = [1, 1]} : vector<16x96xf32> to vector<8x8xf32>
    %105 = vector.extract_strided_slice %66 {offsets = [8, 64], sizes = [8, 8], strides = [1, 1]} : vector<16x96xf32> to vector<8x8xf32>
    %106 = vector.extract_strided_slice %66 {offsets = [8, 72], sizes = [8, 8], strides = [1, 1]} : vector<16x96xf32> to vector<8x8xf32>
    %107 = vector.extract_strided_slice %66 {offsets = [8, 80], sizes = [8, 8], strides = [1, 1]} : vector<16x96xf32> to vector<8x8xf32>
    %108 = vector.extract_strided_slice %66 {offsets = [8, 88], sizes = [8, 8], strides = [1, 1]} : vector<16x96xf32> to vector<8x8xf32>
    %109 = vector.shape_cast %101 : vector<8x8xf32> to vector<1x8x8xf32>
    %110 = vector.shape_cast %102 : vector<8x8xf32> to vector<1x8x8xf32>
    %111 = vector.shape_cast %103 : vector<8x8xf32> to vector<1x8x8xf32>
    %112 = vector.shape_cast %104 : vector<8x8xf32> to vector<1x8x8xf32>
    %113 = vector.shape_cast %105 : vector<8x8xf32> to vector<1x8x8xf32>
    %114 = vector.shape_cast %106 : vector<8x8xf32> to vector<1x8x8xf32>
    %115 = vector.shape_cast %107 : vector<8x8xf32> to vector<1x8x8xf32>
    %116 = vector.shape_cast %108 : vector<8x8xf32> to vector<1x8x8xf32>
    %117 = tpu.concatenate %109, %110, %111, %112, %113, %114, %115, %116 in 0 : vector<1x8x8xf32>, vector<1x8x8xf32>, vector<1x8x8xf32>, vector<1x8x8xf32>, vector<1x8x8xf32>, vector<1x8x8xf32>, vector<1x8x8xf32>, vector<1x8x8xf32> -> vector<8x8x8xf32>
    %118 = arith.truncf %83 : vector<8x8x8xf32> to vector<8x8x8xbf16>
    %119 = arith.truncf %100 : vector<8x8x8xf32> to vector<8x8x8xbf16>
    "tpu.trace_start"() <{level = 10 : i32, message = "bqd,bkd->bqk"}> : () -> ()
    %cst_31 = arith.constant dense<0.000000e+00> : vector<8x8x8xf32>
    %120 = tpu.matmul %118, %119, %cst_31 {dimension_numbers = #tpu.dot_dimension_numbers<[2], [2], [1], [1], [0, 0, 0, 1, 1, 1], [0], [0]>} : vector<8x8x8xbf16>, vector<8x8x8xbf16>, vector<8x8x8xf32> -> vector<8x8x8xf32>
    "tpu.trace_stop"() : () -> ()
    %cst_32 = arith.constant 0.353553385 : f32
    %121 = vector.broadcast %cst_32 : f32 to vector<8x8x8xf32>
    %122 = arith.mulf %120, %121 : vector<8x8x8xf32>
    %123 = vector.broadcast %41 : vector<8x1x8xf32> to vector<8x8x8xf32>
    %124 = arith.addf %122, %123 : vector<8x8x8xf32>
    %cst_33 = arith.constant dense<0xFF800000> : vector<8x8xf32>
    %125 = vector.multi_reduction <maximumf>, %124, %cst_33 [2] : vector<8x8x8xf32> to vector<8x8xf32>
    %126 = vector.shape_cast %125 : vector<8x8xf32> to vector<8x8x1xf32>
    %127 = vector.broadcast %126 : vector<8x8x1xf32> to vector<8x8x8xf32>
    %128 = arith.subf %124, %127 : vector<8x8x8xf32>
    %129 = math.exp %128 : vector<8x8x8xf32>
    %cst_34 = arith.constant dense<0.000000e+00> : vector<8x8xf32>
    %130 = vector.multi_reduction <add>, %129, %cst_34 [2] : vector<8x8x8xf32> to vector<8x8xf32>
    %131 = vector.shape_cast %130 : vector<8x8xf32> to vector<8x8x1xf32>
    %132 = tpu.reciprocal %131 {approx = true} : vector<8x8x1xf32> -> vector<8x8x1xf32>
    %133 = vector.broadcast %132 : vector<8x8x1xf32> to vector<8x8x8xf32>
    %134 = arith.mulf %129, %133 : vector<8x8x8xf32>
    %135 = arith.truncf %134 : vector<8x8x8xf32> to vector<8x8x8xbf16>
    %136 = arith.truncf %117 : vector<8x8x8xf32> to vector<8x8x8xbf16>
    "tpu.trace_start"() <{level = 10 : i32, message = "bqk,bkd->bqd"}> : () -> ()
    %cst_35 = arith.constant dense<0.000000e+00> : vector<8x8x8xf32>
    %137 = tpu.matmul %135, %136, %cst_35 {dimension_numbers = #tpu.dot_dimension_numbers<[2], [1], [1], [2], [0, 0, 0, 1, 1, 2], [0], [0]>} : vector<8x8x8xbf16>, vector<8x8x8xbf16>, vector<8x8x8xf32> -> vector<8x8x8xf32>
    "tpu.trace_stop"() : () -> ()
    %138 = vector.extract_strided_slice %137 {offsets = [0, 0, 0], sizes = [1, 8, 8], strides = [1, 1, 1]} : vector<8x8x8xf32> to vector<1x8x8xf32>
    %139 = vector.shape_cast %138 : vector<1x8x8xf32> to vector<8x8xf32>
    %140 = vector.extract_strided_slice %137 {offsets = [1, 0, 0], sizes = [1, 8, 8], strides = [1, 1, 1]} : vector<8x8x8xf32> to vector<1x8x8xf32>
    %141 = vector.shape_cast %140 : vector<1x8x8xf32> to vector<8x8xf32>
    %142 = vector.extract_strided_slice %137 {offsets = [2, 0, 0], sizes = [1, 8, 8], strides = [1, 1, 1]} : vector<8x8x8xf32> to vector<1x8x8xf32>
    %143 = vector.shape_cast %142 : vector<1x8x8xf32> to vector<8x8xf32>
    %144 = vector.extract_strided_slice %137 {offsets = [3, 0, 0], sizes = [1, 8, 8], strides = [1, 1, 1]} : vector<8x8x8xf32> to vector<1x8x8xf32>
    %145 = vector.shape_cast %144 : vector<1x8x8xf32> to vector<8x8xf32>
    %146 = tpu.concatenate %139, %141, %143, %145 in 1 : vector<8x8xf32>, vector<8x8xf32>, vector<8x8xf32>, vector<8x8xf32> -> vector<8x32xf32>
    %147 = vector.extract_strided_slice %137 {offsets = [4, 0, 0], sizes = [1, 8, 8], strides = [1, 1, 1]} : vector<8x8x8xf32> to vector<1x8x8xf32>
    %148 = vector.shape_cast %147 : vector<1x8x8xf32> to vector<8x8xf32>
    %149 = vector.extract_strided_slice %137 {offsets = [5, 0, 0], sizes = [1, 8, 8], strides = [1, 1, 1]} : vector<8x8x8xf32> to vector<1x8x8xf32>
    %150 = vector.shape_cast %149 : vector<1x8x8xf32> to vector<8x8xf32>
    %151 = vector.extract_strided_slice %137 {offsets = [6, 0, 0], sizes = [1, 8, 8], strides = [1, 1, 1]} : vector<8x8x8xf32> to vector<1x8x8xf32>
    %152 = vector.shape_cast %151 : vector<1x8x8xf32> to vector<8x8xf32>
    %153 = vector.extract_strided_slice %137 {offsets = [7, 0, 0], sizes = [1, 8, 8], strides = [1, 1, 1]} : vector<8x8x8xf32> to vector<1x8x8xf32>
    %154 = vector.shape_cast %153 : vector<1x8x8xf32> to vector<8x8xf32>
    %155 = tpu.concatenate %148, %150, %152, %154 in 1 : vector<8x8xf32>, vector<8x8xf32>, vector<8x8xf32>, vector<8x8xf32> -> vector<8x32xf32>
    %156 = tpu.concatenate %146, %155 in 0 : vector<8x32xf32>, vector<8x32xf32> -> vector<16x32xf32>
    %157 = arith.truncf %156 : vector<16x32xf32> to vector<16x32xbf16>
    %158 = arith.truncf %47 : vector<32x32xf32> to vector<32x32xbf16>
    %cst_36 = arith.constant dense<0.000000e+00> : vector<16x32xf32>
    %159 = tpu.matmul %157, %158, %cst_36 {dimension_numbers = #tpu.dot_dimension_numbers<[1], [0], [0], [1], [0, 0, 1, 1], [], []>} : vector<16x32xbf16>, vector<32x32xbf16>, vector<16x32xf32> -> vector<16x32xf32>
    %160 = vector.broadcast %56 : vector<1x32xf32> to vector<16x32xf32>
    %161 = arith.addf %159, %160 : vector<16x32xf32>
    %162 = arith.addf %23, %161 : vector<16x32xf32>
    %cst_37 = arith.constant dense<0.000000e+00> : vector<16xf32>
    %163 = vector.multi_reduction <add>, %162, %cst_37 [1] : vector<16x32xf32> to vector<16xf32>
    %164 = vector.shape_cast %163 : vector<16xf32> to vector<16x1xf32>
    %cst_38 = arith.constant 3.200000e+01 : f32
    %165 = vector.broadcast %cst_38 : f32 to vector<16x1xf32>
    %166 = arith.divf %164, %165 : vector<16x1xf32>
    %167 = vector.broadcast %166 : vector<16x1xf32> to vector<16x32xf32>
    %168 = arith.subf %162, %167 : vector<16x32xf32>
    %169 = arith.mulf %168, %168 : vector<16x32xf32>
    %cst_39 = arith.constant dense<0.000000e+00> : vector<16xf32>
    %170 = vector.multi_reduction <add>, %169, %cst_39 [1] : vector<16x32xf32> to vector<16xf32>
    %171 = vector.shape_cast %170 : vector<16xf32> to vector<16x1xf32>
    %cst_40 = arith.constant 3.200000e+01 : f32
    %172 = vector.broadcast %cst_40 : f32 to vector<16x1xf32>
    %173 = arith.divf %171, %172 : vector<16x1xf32>
    %cst_41 = arith.constant 9.99999996E-13 : f32
    %174 = vector.broadcast %cst_41 : f32 to vector<16x1xf32>
    %175 = arith.addf %173, %174 : vector<16x1xf32>
    %176 = math.rsqrt %175 : vector<16x1xf32>
    %177 = vector.broadcast %176 : vector<16x1xf32> to vector<16x32xf32>
    %178 = arith.mulf %168, %177 : vector<16x32xf32>
    %179 = vector.broadcast %57 : vector<1x32xf32> to vector<16x32xf32>
    %180 = arith.mulf %178, %179 : vector<16x32xf32>
    %181 = vector.broadcast %58 : vector<1x32xf32> to vector<16x32xf32>
    %182 = arith.addf %180, %181 : vector<16x32xf32>
    %183 = arith.truncf %182 : vector<16x32xf32> to vector<16x32xbf16>
    %184 = arith.truncf %49 : vector<32x64xf32> to vector<32x64xbf16>
    %cst_42 = arith.constant dense<0.000000e+00> : vector<16x64xf32>
    %185 = tpu.matmul %183, %184, %cst_42 {dimension_numbers = #tpu.dot_dimension_numbers<[1], [0], [0], [1], [0, 0, 1, 1], [], []>} : vector<16x32xbf16>, vector<32x64xbf16>, vector<16x64xf32> -> vector<16x64xf32>
    %186 = vector.broadcast %51 : vector<1x64xf32> to vector<16x64xf32>
    %187 = arith.addf %185, %186 : vector<16x64xf32>
    %cst_43 = arith.constant 5.000000e-01 : f32
    %188 = vector.broadcast %cst_43 : f32 to vector<16x64xf32>
    %189 = arith.mulf %188, %187 : vector<16x64xf32>
    %cst_44 = arith.constant 4.471500e-02 : f32
    %190 = vector.broadcast %cst_44 : f32 to vector<16x64xf32>
    %191 = arith.mulf %190, %187 : vector<16x64xf32>
    %192 = arith.mulf %191, %187 : vector<16x64xf32>
    %193 = arith.mulf %192, %187 : vector<16x64xf32>
    %194 = arith.addf %187, %193 : vector<16x64xf32>
    %cst_45 = arith.constant 0.797884583 : f32
    %195 = vector.broadcast %cst_45 : f32 to vector<16x64xf32>
    %196 = arith.mulf %195, %194 : vector<16x64xf32>
    %197 = math.tanh %196 : vector<16x64xf32>
    %cst_46 = arith.constant 1.000000e+00 : f32
    %198 = vector.broadcast %cst_46 : f32 to vector<16x64xf32>
    %199 = arith.addf %198, %197 : vector<16x64xf32>
    %200 = arith.mulf %189, %199 : vector<16x64xf32>
    %201 = arith.truncf %200 : vector<16x64xf32> to vector<16x64xbf16>
    %202 = arith.truncf %53 : vector<64x32xf32> to vector<64x32xbf16>
    %cst_47 = arith.constant dense<0.000000e+00> : vector<16x32xf32>
    %203 = tpu.matmul %201, %202, %cst_47 {dimension_numbers = #tpu.dot_dimension_numbers<[1], [0], [0], [1], [0, 0, 1, 1], [], []>} : vector<16x64xbf16>, vector<64x32xbf16>, vector<16x32xf32> -> vector<16x32xf32>
    %204 = vector.broadcast %59 : vector<1x32xf32> to vector<16x32xf32>
    %205 = arith.addf %203, %204 : vector<16x32xf32>
    %206 = arith.addf %182, %205 : vector<16x32xf32>
    %cst_48 = arith.constant dense<0.000000e+00> : vector<16xf32>
    %207 = vector.multi_reduction <add>, %206, %cst_48 [1] : vector<16x32xf32> to vector<16xf32>
    %208 = vector.shape_cast %207 : vector<16xf32> to vector<16x1xf32>
    %cst_49 = arith.constant 3.200000e+01 : f32
    %209 = vector.broadcast %cst_49 : f32 to vector<16x1xf32>
    %210 = arith.divf %208, %209 : vector<16x1xf32>
    %211 = vector.broadcast %210 : vector<16x1xf32> to vector<16x32xf32>
    %212 = arith.subf %206, %211 : vector<16x32xf32>
    %213 = arith.mulf %212, %212 : vector<16x32xf32>
    %cst_50 = arith.constant dense<0.000000e+00> : vector<16xf32>
    %214 = vector.multi_reduction <add>, %213, %cst_50 [1] : vector<16x32xf32> to vector<16xf32>
    %215 = vector.shape_cast %214 : vector<16xf32> to vector<16x1xf32>
    %cst_51 = arith.constant 3.200000e+01 : f32
    %216 = vector.broadcast %cst_51 : f32 to vector<16x1xf32>
    %217 = arith.divf %215, %216 : vector<16x1xf32>
    %cst_52 = arith.constant 9.99999996E-13 : f32
    %218 = vector.broadcast %cst_52 : f32 to vector<16x1xf32>
    %219 = arith.addf %217, %218 : vector<16x1xf32>
    %220 = math.rsqrt %219 : vector<16x1xf32>
    %221 = vector.broadcast %220 : vector<16x1xf32> to vector<16x32xf32>
    %222 = arith.mulf %212, %221 : vector<16x32xf32>
    %223 = vector.broadcast %60 : vector<1x32xf32> to vector<16x32xf32>
    %224 = arith.mulf %222, %223 : vector<16x32xf32>
    %225 = vector.broadcast %61 : vector<1x32xf32> to vector<16x32xf32>
    %226 = arith.addf %224, %225 : vector<16x32xf32>
    %c1 = arith.constant 1 : index
    %c0_53 = arith.constant 0 : index
    %c0_54 = arith.constant 0 : index
    %227 = vector.load %arg3[%c1, %c0_53, %c0_54] : memref<2x32x96xf32, #tpu.memory_space<vmem>>, vector<1x32x96xf32>
    %228 = vector.shape_cast %227 : vector<1x32x96xf32> to vector<32x96xf32>
    %c1_55 = arith.constant 1 : index
    %c0_56 = arith.constant 0 : index
    %c0_57 = arith.constant 0 : index
    %229 = vector.load %arg4[%c1_55, %c0_56, %c0_57] : memref<2x1x96xf32, #tpu.memory_space<vmem>>, vector<1x1x96xf32>
    %230 = vector.shape_cast %229 : vector<1x1x96xf32> to vector<1x96xf32>
    %c1_58 = arith.constant 1 : index
    %c0_59 = arith.constant 0 : index
    %c0_60 = arith.constant 0 : index
    %231 = vector.load %arg5[%c1_58, %c0_59, %c0_60] : memref<2x32x32xf32, #tpu.memory_space<vmem>>, vector<1x32x32xf32>
    %232 = vector.shape_cast %231 : vector<1x32x32xf32> to vector<32x32xf32>
    %c1_61 = arith.constant 1 : index
    %c0_62 = arith.constant 0 : index
    %c0_63 = arith.constant 0 : index
    %233 = vector.load %arg6[%c1_61, %c0_62, %c0_63] : memref<2x32x64xf32, #tpu.memory_space<vmem>>, vector<1x32x64xf32>
    %234 = vector.shape_cast %233 : vector<1x32x64xf32> to vector<32x64xf32>
    %c1_64 = arith.constant 1 : index
    %c0_65 = arith.constant 0 : index
    %c0_66 = arith.constant 0 : index
    %235 = vector.load %arg7[%c1_64, %c0_65, %c0_66] : memref<2x1x64xf32, #tpu.memory_space<vmem>>, vector<1x1x64xf32>
    %236 = vector.shape_cast %235 : vector<1x1x64xf32> to vector<1x64xf32>
    %c1_67 = arith.constant 1 : index
    %c0_68 = arith.constant 0 : index
    %c0_69 = arith.constant 0 : index
    %237 = vector.load %arg8[%c1_67, %c0_68, %c0_69] : memref<2x64x32xf32, #tpu.memory_space<vmem>>, vector<1x64x32xf32>
    %238 = vector.shape_cast %237 : vector<1x64x32xf32> to vector<64x32xf32>
    %c1_70 = arith.constant 1 : index
    %c0_71 = arith.constant 0 : index
    %c0_72 = arith.constant 0 : index
    %239 = vector.load %arg9[%c1_70, %c0_71, %c0_72] : memref<2x6x32xf32, #tpu.memory_space<vmem>>, vector<1x6x32xf32>
    %240 = vector.shape_cast %239 : vector<1x6x32xf32> to vector<6x32xf32>
    %241 = vector.extract_strided_slice %240 {offsets = [0, 0], sizes = [1, 32], strides = [1, 1]} : vector<6x32xf32> to vector<1x32xf32>
    %242 = vector.extract_strided_slice %240 {offsets = [1, 0], sizes = [1, 32], strides = [1, 1]} : vector<6x32xf32> to vector<1x32xf32>
    %243 = vector.extract_strided_slice %240 {offsets = [2, 0], sizes = [1, 32], strides = [1, 1]} : vector<6x32xf32> to vector<1x32xf32>
    %244 = vector.extract_strided_slice %240 {offsets = [3, 0], sizes = [1, 32], strides = [1, 1]} : vector<6x32xf32> to vector<1x32xf32>
    %245 = vector.extract_strided_slice %240 {offsets = [4, 0], sizes = [1, 32], strides = [1, 1]} : vector<6x32xf32> to vector<1x32xf32>
    %246 = vector.extract_strided_slice %240 {offsets = [5, 0], sizes = [1, 32], strides = [1, 1]} : vector<6x32xf32> to vector<1x32xf32>
    %247 = arith.truncf %226 : vector<16x32xf32> to vector<16x32xbf16>
    %248 = arith.truncf %228 : vector<32x96xf32> to vector<32x96xbf16>
    %cst_73 = arith.constant dense<0.000000e+00> : vector<16x96xf32>
    %249 = tpu.matmul %247, %248, %cst_73 {dimension_numbers = #tpu.dot_dimension_numbers<[1], [0], [0], [1], [0, 0, 1, 1], [], []>} : vector<16x32xbf16>, vector<32x96xbf16>, vector<16x96xf32> -> vector<16x96xf32>
    %250 = vector.broadcast %230 : vector<1x96xf32> to vector<16x96xf32>
    %251 = arith.addf %249, %250 : vector<16x96xf32>
    %252 = vector.extract_strided_slice %251 {offsets = [0, 0], sizes = [8, 8], strides = [1, 1]} : vector<16x96xf32> to vector<8x8xf32>
    %253 = vector.extract_strided_slice %251 {offsets = [0, 8], sizes = [8, 8], strides = [1, 1]} : vector<16x96xf32> to vector<8x8xf32>
    %254 = vector.extract_strided_slice %251 {offsets = [0, 16], sizes = [8, 8], strides = [1, 1]} : vector<16x96xf32> to vector<8x8xf32>
    %255 = vector.extract_strided_slice %251 {offsets = [0, 24], sizes = [8, 8], strides = [1, 1]} : vector<16x96xf32> to vector<8x8xf32>
    %256 = vector.extract_strided_slice %251 {offsets = [8, 0], sizes = [8, 8], strides = [1, 1]} : vector<16x96xf32> to vector<8x8xf32>
    %257 = vector.extract_strided_slice %251 {offsets = [8, 8], sizes = [8, 8], strides = [1, 1]} : vector<16x96xf32> to vector<8x8xf32>
    %258 = vector.extract_strided_slice %251 {offsets = [8, 16], sizes = [8, 8], strides = [1, 1]} : vector<16x96xf32> to vector<8x8xf32>
    %259 = vector.extract_strided_slice %251 {offsets = [8, 24], sizes = [8, 8], strides = [1, 1]} : vector<16x96xf32> to vector<8x8xf32>
    %260 = vector.shape_cast %252 : vector<8x8xf32> to vector<1x8x8xf32>
    %261 = vector.shape_cast %253 : vector<8x8xf32> to vector<1x8x8xf32>
    %262 = vector.shape_cast %254 : vector<8x8xf32> to vector<1x8x8xf32>
    %263 = vector.shape_cast %255 : vector<8x8xf32> to vector<1x8x8xf32>
    %264 = vector.shape_cast %256 : vector<8x8xf32> to vector<1x8x8xf32>
    %265 = vector.shape_cast %257 : vector<8x8xf32> to vector<1x8x8xf32>
    %266 = vector.shape_cast %258 : vector<8x8xf32> to vector<1x8x8xf32>
    %267 = vector.shape_cast %259 : vector<8x8xf32> to vector<1x8x8xf32>
    %268 = tpu.concatenate %260, %261, %262, %263, %264, %265, %266, %267 in 0 : vector<1x8x8xf32>, vector<1x8x8xf32>, vector<1x8x8xf32>, vector<1x8x8xf32>, vector<1x8x8xf32>, vector<1x8x8xf32>, vector<1x8x8xf32>, vector<1x8x8xf32> -> vector<8x8x8xf32>
    %269 = vector.extract_strided_slice %251 {offsets = [0, 32], sizes = [8, 8], strides = [1, 1]} : vector<16x96xf32> to vector<8x8xf32>
    %270 = vector.extract_strided_slice %251 {offsets = [0, 40], sizes = [8, 8], strides = [1, 1]} : vector<16x96xf32> to vector<8x8xf32>
    %271 = vector.extract_strided_slice %251 {offsets = [0, 48], sizes = [8, 8], strides = [1, 1]} : vector<16x96xf32> to vector<8x8xf32>
    %272 = vector.extract_strided_slice %251 {offsets = [0, 56], sizes = [8, 8], strides = [1, 1]} : vector<16x96xf32> to vector<8x8xf32>
    %273 = vector.extract_strided_slice %251 {offsets = [8, 32], sizes = [8, 8], strides = [1, 1]} : vector<16x96xf32> to vector<8x8xf32>
    %274 = vector.extract_strided_slice %251 {offsets = [8, 40], sizes = [8, 8], strides = [1, 1]} : vector<16x96xf32> to vector<8x8xf32>
    %275 = vector.extract_strided_slice %251 {offsets = [8, 48], sizes = [8, 8], strides = [1, 1]} : vector<16x96xf32> to vector<8x8xf32>
    %276 = vector.extract_strided_slice %251 {offsets = [8, 56], sizes = [8, 8], strides = [1, 1]} : vector<16x96xf32> to vector<8x8xf32>
    %277 = vector.shape_cast %269 : vector<8x8xf32> to vector<1x8x8xf32>
    %278 = vector.shape_cast %270 : vector<8x8xf32> to vector<1x8x8xf32>
    %279 = vector.shape_cast %271 : vector<8x8xf32> to vector<1x8x8xf32>
    %280 = vector.shape_cast %272 : vector<8x8xf32> to vector<1x8x8xf32>
    %281 = vector.shape_cast %273 : vector<8x8xf32> to vector<1x8x8xf32>
    %282 = vector.shape_cast %274 : vector<8x8xf32> to vector<1x8x8xf32>
    %283 = vector.shape_cast %275 : vector<8x8xf32> to vector<1x8x8xf32>
    %284 = vector.shape_cast %276 : vector<8x8xf32> to vector<1x8x8xf32>
    %285 = tpu.concatenate %277, %278, %279, %280, %281, %282, %283, %284 in 0 : vector<1x8x8xf32>, vector<1x8x8xf32>, vector<1x8x8xf32>, vector<1x8x8xf32>, vector<1x8x8xf32>, vector<1x8x8xf32>, vector<1x8x8xf32>, vector<1x8x8xf32> -> vector<8x8x8xf32>
    %286 = vector.extract_strided_slice %251 {offsets = [0, 64], sizes = [8, 8], strides = [1, 1]} : vector<16x96xf32> to vector<8x8xf32>
    %287 = vector.extract_strided_slice %251 {offsets = [0, 72], sizes = [8, 8], strides = [1, 1]} : vector<16x96xf32> to vector<8x8xf32>
    %288 = vector.extract_strided_slice %251 {offsets = [0, 80], sizes = [8, 8], strides = [1, 1]} : vector<16x96xf32> to vector<8x8xf32>
    %289 = vector.extract_strided_slice %251 {offsets = [0, 88], sizes = [8, 8], strides = [1, 1]} : vector<16x96xf32> to vector<8x8xf32>
    %290 = vector.extract_strided_slice %251 {offsets = [8, 64], sizes = [8, 8], strides = [1, 1]} : vector<16x96xf32> to vector<8x8xf32>
    %291 = vector.extract_strided_slice %251 {offsets = [8, 72], sizes = [8, 8], strides = [1, 1]} : vector<16x96xf32> to vector<8x8xf32>
    %292 = vector.extract_strided_slice %251 {offsets = [8, 80], sizes = [8, 8], strides = [1, 1]} : vector<16x96xf32> to vector<8x8xf32>
    %293 = vector.extract_strided_slice %251 {offsets = [8, 88], sizes = [8, 8], strides = [1, 1]} : vector<16x96xf32> to vector<8x8xf32>
    %294 = vector.shape_cast %286 : vector<8x8xf32> to vector<1x8x8xf32>
    %295 = vector.shape_cast %287 : vector<8x8xf32> to vector<1x8x8xf32>
    %296 = vector.shape_cast %288 : vector<8x8xf32> to vector<1x8x8xf32>
    %297 = vector.shape_cast %289 : vector<8x8xf32> to vector<1x8x8xf32>
    %298 = vector.shape_cast %290 : vector<8x8xf32> to vector<1x8x8xf32>
    %299 = vector.shape_cast %291 : vector<8x8xf32> to vector<1x8x8xf32>
    %300 = vector.shape_cast %292 : vector<8x8xf32> to vector<1x8x8xf32>
    %301 = vector.shape_cast %293 : vector<8x8xf32> to vector<1x8x8xf32>
    %302 = tpu.concatenate %294, %295, %296, %297, %298, %299, %300, %301 in 0 : vector<1x8x8xf32>, vector<1x8x8xf32>, vector<1x8x8xf32>, vector<1x8x8xf32>, vector<1x8x8xf32>, vector<1x8x8xf32>, vector<1x8x8xf32>, vector<1x8x8xf32> -> vector<8x8x8xf32>
    %303 = arith.truncf %268 : vector<8x8x8xf32> to vector<8x8x8xbf16>
    %304 = arith.truncf %285 : vector<8x8x8xf32> to vector<8x8x8xbf16>
    "tpu.trace_start"() <{level = 10 : i32, message = "bqd,bkd->bqk"}> : () -> ()
    %cst_74 = arith.constant dense<0.000000e+00> : vector<8x8x8xf32>
    %305 = tpu.matmul %303, %304, %cst_74 {dimension_numbers = #tpu.dot_dimension_numbers<[2], [2], [1], [1], [0, 0, 0, 1, 1, 1], [0], [0]>} : vector<8x8x8xbf16>, vector<8x8x8xbf16>, vector<8x8x8xf32> -> vector<8x8x8xf32>
    "tpu.trace_stop"() : () -> ()
    %cst_75 = arith.constant 0.353553385 : f32
    %306 = vector.broadcast %cst_75 : f32 to vector<8x8x8xf32>
    %307 = arith.mulf %305, %306 : vector<8x8x8xf32>
    %308 = vector.broadcast %41 : vector<8x1x8xf32> to vector<8x8x8xf32>
    %309 = arith.addf %307, %308 : vector<8x8x8xf32>
    %cst_76 = arith.constant dense<0xFF800000> : vector<8x8xf32>
    %310 = vector.multi_reduction <maximumf>, %309, %cst_76 [2] : vector<8x8x8xf32> to vector<8x8xf32>
    %311 = vector.shape_cast %310 : vector<8x8xf32> to vector<8x8x1xf32>
    %312 = vector.broadcast %311 : vector<8x8x1xf32> to vector<8x8x8xf32>
    %313 = arith.subf %309, %312 : vector<8x8x8xf32>
    %314 = math.exp %313 : vector<8x8x8xf32>
    %cst_77 = arith.constant dense<0.000000e+00> : vector<8x8xf32>
    %315 = vector.multi_reduction <add>, %314, %cst_77 [2] : vector<8x8x8xf32> to vector<8x8xf32>
    %316 = vector.shape_cast %315 : vector<8x8xf32> to vector<8x8x1xf32>
    %317 = tpu.reciprocal %316 {approx = true} : vector<8x8x1xf32> -> vector<8x8x1xf32>
    %318 = vector.broadcast %317 : vector<8x8x1xf32> to vector<8x8x8xf32>
    %319 = arith.mulf %314, %318 : vector<8x8x8xf32>
    %320 = arith.truncf %319 : vector<8x8x8xf32> to vector<8x8x8xbf16>
    %321 = arith.truncf %302 : vector<8x8x8xf32> to vector<8x8x8xbf16>
    "tpu.trace_start"() <{level = 10 : i32, message = "bqk,bkd->bqd"}> : () -> ()
    %cst_78 = arith.constant dense<0.000000e+00> : vector<8x8x8xf32>
    %322 = tpu.matmul %320, %321, %cst_78 {dimension_numbers = #tpu.dot_dimension_numbers<[2], [1], [1], [2], [0, 0, 0, 1, 1, 2], [0], [0]>} : vector<8x8x8xbf16>, vector<8x8x8xbf16>, vector<8x8x8xf32> -> vector<8x8x8xf32>
    "tpu.trace_stop"() : () -> ()
    %323 = vector.extract_strided_slice %322 {offsets = [0, 0, 0], sizes = [1, 8, 8], strides = [1, 1, 1]} : vector<8x8x8xf32> to vector<1x8x8xf32>
    %324 = vector.shape_cast %323 : vector<1x8x8xf32> to vector<8x8xf32>
    %325 = vector.extract_strided_slice %322 {offsets = [1, 0, 0], sizes = [1, 8, 8], strides = [1, 1, 1]} : vector<8x8x8xf32> to vector<1x8x8xf32>
    %326 = vector.shape_cast %325 : vector<1x8x8xf32> to vector<8x8xf32>
    %327 = vector.extract_strided_slice %322 {offsets = [2, 0, 0], sizes = [1, 8, 8], strides = [1, 1, 1]} : vector<8x8x8xf32> to vector<1x8x8xf32>
    %328 = vector.shape_cast %327 : vector<1x8x8xf32> to vector<8x8xf32>
    %329 = vector.extract_strided_slice %322 {offsets = [3, 0, 0], sizes = [1, 8, 8], strides = [1, 1, 1]} : vector<8x8x8xf32> to vector<1x8x8xf32>
    %330 = vector.shape_cast %329 : vector<1x8x8xf32> to vector<8x8xf32>
    %331 = tpu.concatenate %324, %326, %328, %330 in 1 : vector<8x8xf32>, vector<8x8xf32>, vector<8x8xf32>, vector<8x8xf32> -> vector<8x32xf32>
    %332 = vector.extract_strided_slice %322 {offsets = [4, 0, 0], sizes = [1, 8, 8], strides = [1, 1, 1]} : vector<8x8x8xf32> to vector<1x8x8xf32>
    %333 = vector.shape_cast %332 : vector<1x8x8xf32> to vector<8x8xf32>
    %334 = vector.extract_strided_slice %322 {offsets = [5, 0, 0], sizes = [1, 8, 8], strides = [1, 1, 1]} : vector<8x8x8xf32> to vector<1x8x8xf32>
    %335 = vector.shape_cast %334 : vector<1x8x8xf32> to vector<8x8xf32>
    %336 = vector.extract_strided_slice %322 {offsets = [6, 0, 0], sizes = [1, 8, 8], strides = [1, 1, 1]} : vector<8x8x8xf32> to vector<1x8x8xf32>
    %337 = vector.shape_cast %336 : vector<1x8x8xf32> to vector<8x8xf32>
    %338 = vector.extract_strided_slice %322 {offsets = [7, 0, 0], sizes = [1, 8, 8], strides = [1, 1, 1]} : vector<8x8x8xf32> to vector<1x8x8xf32>
    %339 = vector.shape_cast %338 : vector<1x8x8xf32> to vector<8x8xf32>
    %340 = tpu.concatenate %333, %335, %337, %339 in 1 : vector<8x8xf32>, vector<8x8xf32>, vector<8x8xf32>, vector<8x8xf32> -> vector<8x32xf32>
    %341 = tpu.concatenate %331, %340 in 0 : vector<8x32xf32>, vector<8x32xf32> -> vector<16x32xf32>
    %342 = arith.truncf %341 : vector<16x32xf32> to vector<16x32xbf16>
    %343 = arith.truncf %232 : vector<32x32xf32> to vector<32x32xbf16>
    %cst_79 = arith.constant dense<0.000000e+00> : vector<16x32xf32>
    %344 = tpu.matmul %342, %343, %cst_79 {dimension_numbers = #tpu.dot_dimension_numbers<[1], [0], [0], [1], [0, 0, 1, 1], [], []>} : vector<16x32xbf16>, vector<32x32xbf16>, vector<16x32xf32> -> vector<16x32xf32>
    %345 = vector.broadcast %241 : vector<1x32xf32> to vector<16x32xf32>
    %346 = arith.addf %344, %345 : vector<16x32xf32>
    %347 = arith.addf %226, %346 : vector<16x32xf32>
    %cst_80 = arith.constant dense<0.000000e+00> : vector<16xf32>
    %348 = vector.multi_reduction <add>, %347, %cst_80 [1] : vector<16x32xf32> to vector<16xf32>
    %349 = vector.shape_cast %348 : vector<16xf32> to vector<16x1xf32>
    %cst_81 = arith.constant 3.200000e+01 : f32
    %350 = vector.broadcast %cst_81 : f32 to vector<16x1xf32>
    %351 = arith.divf %349, %350 : vector<16x1xf32>
    %352 = vector.broadcast %351 : vector<16x1xf32> to vector<16x32xf32>
    %353 = arith.subf %347, %352 : vector<16x32xf32>
    %354 = arith.mulf %353, %353 : vector<16x32xf32>
    %cst_82 = arith.constant dense<0.000000e+00> : vector<16xf32>
    %355 = vector.multi_reduction <add>, %354, %cst_82 [1] : vector<16x32xf32> to vector<16xf32>
    %356 = vector.shape_cast %355 : vector<16xf32> to vector<16x1xf32>
    %cst_83 = arith.constant 3.200000e+01 : f32
    %357 = vector.broadcast %cst_83 : f32 to vector<16x1xf32>
    %358 = arith.divf %356, %357 : vector<16x1xf32>
    %cst_84 = arith.constant 9.99999996E-13 : f32
    %359 = vector.broadcast %cst_84 : f32 to vector<16x1xf32>
    %360 = arith.addf %358, %359 : vector<16x1xf32>
    %361 = math.rsqrt %360 : vector<16x1xf32>
    %362 = vector.broadcast %361 : vector<16x1xf32> to vector<16x32xf32>
    %363 = arith.mulf %353, %362 : vector<16x32xf32>
    %364 = vector.broadcast %242 : vector<1x32xf32> to vector<16x32xf32>
    %365 = arith.mulf %363, %364 : vector<16x32xf32>
    %366 = vector.broadcast %243 : vector<1x32xf32> to vector<16x32xf32>
    %367 = arith.addf %365, %366 : vector<16x32xf32>
    %368 = arith.truncf %367 : vector<16x32xf32> to vector<16x32xbf16>
    %369 = arith.truncf %234 : vector<32x64xf32> to vector<32x64xbf16>
    %cst_85 = arith.constant dense<0.000000e+00> : vector<16x64xf32>
    %370 = tpu.matmul %368, %369, %cst_85 {dimension_numbers = #tpu.dot_dimension_numbers<[1], [0], [0], [1], [0, 0, 1, 1], [], []>} : vector<16x32xbf16>, vector<32x64xbf16>, vector<16x64xf32> -> vector<16x64xf32>
    %371 = vector.broadcast %236 : vector<1x64xf32> to vector<16x64xf32>
    %372 = arith.addf %370, %371 : vector<16x64xf32>
    %cst_86 = arith.constant 5.000000e-01 : f32
    %373 = vector.broadcast %cst_86 : f32 to vector<16x64xf32>
    %374 = arith.mulf %373, %372 : vector<16x64xf32>
    %cst_87 = arith.constant 4.471500e-02 : f32
    %375 = vector.broadcast %cst_87 : f32 to vector<16x64xf32>
    %376 = arith.mulf %375, %372 : vector<16x64xf32>
    %377 = arith.mulf %376, %372 : vector<16x64xf32>
    %378 = arith.mulf %377, %372 : vector<16x64xf32>
    %379 = arith.addf %372, %378 : vector<16x64xf32>
    %cst_88 = arith.constant 0.797884583 : f32
    %380 = vector.broadcast %cst_88 : f32 to vector<16x64xf32>
    %381 = arith.mulf %380, %379 : vector<16x64xf32>
    %382 = math.tanh %381 : vector<16x64xf32>
    %cst_89 = arith.constant 1.000000e+00 : f32
    %383 = vector.broadcast %cst_89 : f32 to vector<16x64xf32>
    %384 = arith.addf %383, %382 : vector<16x64xf32>
    %385 = arith.mulf %374, %384 : vector<16x64xf32>
    %386 = arith.truncf %385 : vector<16x64xf32> to vector<16x64xbf16>
    %387 = arith.truncf %238 : vector<64x32xf32> to vector<64x32xbf16>
    %cst_90 = arith.constant dense<0.000000e+00> : vector<16x32xf32>
    %388 = tpu.matmul %386, %387, %cst_90 {dimension_numbers = #tpu.dot_dimension_numbers<[1], [0], [0], [1], [0, 0, 1, 1], [], []>} : vector<16x64xbf16>, vector<64x32xbf16>, vector<16x32xf32> -> vector<16x32xf32>
    %389 = vector.broadcast %244 : vector<1x32xf32> to vector<16x32xf32>
    %390 = arith.addf %388, %389 : vector<16x32xf32>
    %391 = arith.addf %367, %390 : vector<16x32xf32>
    %cst_91 = arith.constant dense<0.000000e+00> : vector<16xf32>
    %392 = vector.multi_reduction <add>, %391, %cst_91 [1] : vector<16x32xf32> to vector<16xf32>
    %393 = vector.shape_cast %392 : vector<16xf32> to vector<16x1xf32>
    %cst_92 = arith.constant 3.200000e+01 : f32
    %394 = vector.broadcast %cst_92 : f32 to vector<16x1xf32>
    %395 = arith.divf %393, %394 : vector<16x1xf32>
    %396 = vector.broadcast %395 : vector<16x1xf32> to vector<16x32xf32>
    %397 = arith.subf %391, %396 : vector<16x32xf32>
    %398 = arith.mulf %397, %397 : vector<16x32xf32>
    %cst_93 = arith.constant dense<0.000000e+00> : vector<16xf32>
    %399 = vector.multi_reduction <add>, %398, %cst_93 [1] : vector<16x32xf32> to vector<16xf32>
    %400 = vector.shape_cast %399 : vector<16xf32> to vector<16x1xf32>
    %cst_94 = arith.constant 3.200000e+01 : f32
    %401 = vector.broadcast %cst_94 : f32 to vector<16x1xf32>
    %402 = arith.divf %400, %401 : vector<16x1xf32>
    %cst_95 = arith.constant 9.99999996E-13 : f32
    %403 = vector.broadcast %cst_95 : f32 to vector<16x1xf32>
    %404 = arith.addf %402, %403 : vector<16x1xf32>
    %405 = math.rsqrt %404 : vector<16x1xf32>
    %406 = vector.broadcast %405 : vector<16x1xf32> to vector<16x32xf32>
    %407 = arith.mulf %397, %406 : vector<16x32xf32>
    %408 = vector.broadcast %245 : vector<1x32xf32> to vector<16x32xf32>
    %409 = arith.mulf %407, %408 : vector<16x32xf32>
    %410 = vector.broadcast %246 : vector<1x32xf32> to vector<16x32xf32>
    %411 = arith.addf %409, %410 : vector<16x32xf32>
    %412 = vector.extract_strided_slice %411 {offsets = [0, 0], sizes = [1, 32], strides = [1, 1]} : vector<16x32xf32> to vector<1x32xf32>
    %413 = vector.extract_strided_slice %411 {offsets = [8, 0], sizes = [1, 32], strides = [1, 1]} : vector<16x32xf32> to vector<1x32xf32>
    %414 = tpu.concatenate %412, %413 in 0 : vector<1x32xf32>, vector<1x32xf32> -> vector<2x32xf32>
    %c0_96 = arith.constant 0 : index
    %c0_97 = arith.constant 0 : index
    %415 = vector.load %arg11[%c0_96, %c0_97] : memref<3x128xf32, #tpu.memory_space<vmem>>, vector<3x128xf32>
    %c0_98 = arith.constant 0 : index
    %c0_99 = arith.constant 0 : index
    %416 = vector.load %arg13[%c0_98, %c0_99] : memref<3x64xf32, #tpu.memory_space<vmem>>, vector<3x64xf32>
    %417 = arith.truncf %414 : vector<2x32xf32> to vector<2x32xbf16>
    %c0_100 = arith.constant 0 : index
    %c0_101 = arith.constant 0 : index
    %418 = vector.load %arg10[%c0_100, %c0_101] : memref<32x128xf32, #tpu.memory_space<vmem>>, vector<32x128xf32>
    %419 = arith.truncf %418 : vector<32x128xf32> to vector<32x128xbf16>
    %cst_102 = arith.constant dense<0.000000e+00> : vector<2x128xf32>
    %420 = tpu.matmul %417, %419, %cst_102 {dimension_numbers = #tpu.dot_dimension_numbers<[1], [0], [0], [1], [0, 0, 1, 1], [], []>} : vector<2x32xbf16>, vector<32x128xbf16>, vector<2x128xf32> -> vector<2x128xf32>
    %421 = vector.extract_strided_slice %415 {offsets = [0, 0], sizes = [1, 128], strides = [1, 1]} : vector<3x128xf32> to vector<1x128xf32>
    %422 = vector.broadcast %421 : vector<1x128xf32> to vector<2x128xf32>
    %423 = arith.addf %420, %422 : vector<2x128xf32>
    %424 = vector.extract_strided_slice %415 {offsets = [1, 0], sizes = [1, 128], strides = [1, 1]} : vector<3x128xf32> to vector<1x128xf32>
    %425 = vector.extract_strided_slice %415 {offsets = [2, 0], sizes = [1, 128], strides = [1, 1]} : vector<3x128xf32> to vector<1x128xf32>
    %cst_103 = arith.constant dense<0.000000e+00> : vector<2xf32>
    %426 = vector.multi_reduction <add>, %423, %cst_103 [1] : vector<2x128xf32> to vector<2xf32>
    %427 = vector.shape_cast %426 : vector<2xf32> to vector<2x1xf32>
    %cst_104 = arith.constant 1.280000e+02 : f32
    %428 = vector.broadcast %cst_104 : f32 to vector<2x1xf32>
    %429 = arith.divf %427, %428 : vector<2x1xf32>
    %430 = vector.broadcast %429 : vector<2x1xf32> to vector<2x128xf32>
    %431 = arith.subf %423, %430 : vector<2x128xf32>
    %432 = arith.mulf %431, %431 : vector<2x128xf32>
    %cst_105 = arith.constant dense<0.000000e+00> : vector<2xf32>
    %433 = vector.multi_reduction <add>, %432, %cst_105 [1] : vector<2x128xf32> to vector<2xf32>
    %434 = vector.shape_cast %433 : vector<2xf32> to vector<2x1xf32>
    %cst_106 = arith.constant 1.280000e+02 : f32
    %435 = vector.broadcast %cst_106 : f32 to vector<2x1xf32>
    %436 = arith.divf %434, %435 : vector<2x1xf32>
    %cst_107 = arith.constant 9.99999974E-6 : f32
    %437 = vector.broadcast %cst_107 : f32 to vector<2x1xf32>
    %438 = arith.addf %436, %437 : vector<2x1xf32>
    %439 = math.rsqrt %438 : vector<2x1xf32>
    %440 = vector.broadcast %439 : vector<2x1xf32> to vector<2x128xf32>
    %441 = arith.mulf %431, %440 : vector<2x128xf32>
    %442 = vector.broadcast %424 : vector<1x128xf32> to vector<2x128xf32>
    %443 = arith.mulf %441, %442 : vector<2x128xf32>
    %444 = vector.broadcast %425 : vector<1x128xf32> to vector<2x128xf32>
    %445 = arith.addf %443, %444 : vector<2x128xf32>
    %cst_108 = arith.constant 5.000000e-01 : f32
    %446 = vector.broadcast %cst_108 : f32 to vector<2x128xf32>
    %447 = arith.mulf %446, %445 : vector<2x128xf32>
    %cst_109 = arith.constant 4.471500e-02 : f32
    %448 = vector.broadcast %cst_109 : f32 to vector<2x128xf32>
    %449 = arith.mulf %448, %445 : vector<2x128xf32>
    %450 = arith.mulf %449, %445 : vector<2x128xf32>
    %451 = arith.mulf %450, %445 : vector<2x128xf32>
    %452 = arith.addf %445, %451 : vector<2x128xf32>
    %cst_110 = arith.constant 0.797884583 : f32
    %453 = vector.broadcast %cst_110 : f32 to vector<2x128xf32>
    %454 = arith.mulf %453, %452 : vector<2x128xf32>
    %455 = math.tanh %454 : vector<2x128xf32>
    %cst_111 = arith.constant 1.000000e+00 : f32
    %456 = vector.broadcast %cst_111 : f32 to vector<2x128xf32>
    %457 = arith.addf %456, %455 : vector<2x128xf32>
    %458 = arith.mulf %447, %457 : vector<2x128xf32>
    %459 = arith.truncf %458 : vector<2x128xf32> to vector<2x128xbf16>
    %c0_112 = arith.constant 0 : index
    %c0_113 = arith.constant 0 : index
    %460 = vector.load %arg12[%c0_112, %c0_113] : memref<128x64xf32, #tpu.memory_space<vmem>>, vector<128x64xf32>
    %461 = arith.truncf %460 : vector<128x64xf32> to vector<128x64xbf16>
    %cst_114 = arith.constant dense<0.000000e+00> : vector<2x64xf32>
    %462 = tpu.matmul %459, %461, %cst_114 {dimension_numbers = #tpu.dot_dimension_numbers<[1], [0], [0], [1], [0, 0, 1, 1], [], []>} : vector<2x128xbf16>, vector<128x64xbf16>, vector<2x64xf32> -> vector<2x64xf32>
    %463 = vector.extract_strided_slice %416 {offsets = [0, 0], sizes = [1, 64], strides = [1, 1]} : vector<3x64xf32> to vector<1x64xf32>
    %464 = vector.broadcast %463 : vector<1x64xf32> to vector<2x64xf32>
    %465 = arith.addf %462, %464 : vector<2x64xf32>
    %466 = vector.extract_strided_slice %416 {offsets = [1, 0], sizes = [1, 64], strides = [1, 1]} : vector<3x64xf32> to vector<1x64xf32>
    %467 = vector.extract_strided_slice %416 {offsets = [2, 0], sizes = [1, 64], strides = [1, 1]} : vector<3x64xf32> to vector<1x64xf32>
    %cst_115 = arith.constant dense<0.000000e+00> : vector<2xf32>
    %468 = vector.multi_reduction <add>, %465, %cst_115 [1] : vector<2x64xf32> to vector<2xf32>
    %469 = vector.shape_cast %468 : vector<2xf32> to vector<2x1xf32>
    %cst_116 = arith.constant 6.400000e+01 : f32
    %470 = vector.broadcast %cst_116 : f32 to vector<2x1xf32>
    %471 = arith.divf %469, %470 : vector<2x1xf32>
    %472 = vector.broadcast %471 : vector<2x1xf32> to vector<2x64xf32>
    %473 = arith.subf %465, %472 : vector<2x64xf32>
    %474 = arith.mulf %473, %473 : vector<2x64xf32>
    %cst_117 = arith.constant dense<0.000000e+00> : vector<2xf32>
    %475 = vector.multi_reduction <add>, %474, %cst_117 [1] : vector<2x64xf32> to vector<2xf32>
    %476 = vector.shape_cast %475 : vector<2xf32> to vector<2x1xf32>
    %cst_118 = arith.constant 6.400000e+01 : f32
    %477 = vector.broadcast %cst_118 : f32 to vector<2x1xf32>
    %478 = arith.divf %476, %477 : vector<2x1xf32>
    %cst_119 = arith.constant 9.99999974E-6 : f32
    %479 = vector.broadcast %cst_119 : f32 to vector<2x1xf32>
    %480 = arith.addf %478, %479 : vector<2x1xf32>
    %481 = math.rsqrt %480 : vector<2x1xf32>
    %482 = vector.broadcast %481 : vector<2x1xf32> to vector<2x64xf32>
    %483 = arith.mulf %473, %482 : vector<2x64xf32>
    %484 = vector.broadcast %466 : vector<1x64xf32> to vector<2x64xf32>
    %485 = arith.mulf %483, %484 : vector<2x64xf32>
    %486 = vector.broadcast %467 : vector<1x64xf32> to vector<2x64xf32>
    %487 = arith.addf %485, %486 : vector<2x64xf32>
    %cst_120 = arith.constant 5.000000e-01 : f32
    %488 = vector.broadcast %cst_120 : f32 to vector<2x64xf32>
    %489 = arith.mulf %488, %487 : vector<2x64xf32>
    %cst_121 = arith.constant 4.471500e-02 : f32
    %490 = vector.broadcast %cst_121 : f32 to vector<2x64xf32>
    %491 = arith.mulf %490, %487 : vector<2x64xf32>
    %492 = arith.mulf %491, %487 : vector<2x64xf32>
    %493 = arith.mulf %492, %487 : vector<2x64xf32>
    %494 = arith.addf %487, %493 : vector<2x64xf32>
    %cst_122 = arith.constant 0.797884583 : f32
    %495 = vector.broadcast %cst_122 : f32 to vector<2x64xf32>
    %496 = arith.mulf %495, %494 : vector<2x64xf32>
    %497 = math.tanh %496 : vector<2x64xf32>
    %cst_123 = arith.constant 1.000000e+00 : f32
    %498 = vector.broadcast %cst_123 : f32 to vector<2x64xf32>
    %499 = arith.addf %498, %497 : vector<2x64xf32>
    %500 = arith.mulf %489, %499 : vector<2x64xf32>
    %501 = arith.truncf %500 : vector<2x64xf32> to vector<2x64xbf16>
    %c0_124 = arith.constant 0 : index
    %c0_125 = arith.constant 0 : index
    %502 = vector.load %arg14[%c0_124, %c0_125] : memref<64x128xf32, #tpu.memory_space<vmem>>, vector<64x128xf32>
    %503 = arith.truncf %502 : vector<64x128xf32> to vector<64x128xbf16>
    %cst_126 = arith.constant dense<0.000000e+00> : vector<2x128xf32>
    %504 = tpu.matmul %501, %503, %cst_126 {dimension_numbers = #tpu.dot_dimension_numbers<[1], [0], [0], [1], [0, 0, 1, 1], [], []>} : vector<2x64xbf16>, vector<64x128xbf16>, vector<2x128xf32> -> vector<2x128xf32>
    %c0_127 = arith.constant 0 : index
    %c0_128 = arith.constant 0 : index
    %505 = vector.load %arg15[%c0_127, %c0_128] : memref<1x128xf32, #tpu.memory_space<vmem>>, vector<1x128xf32>
    %506 = vector.broadcast %505 : vector<1x128xf32> to vector<2x128xf32>
    %507 = arith.addf %504, %506 : vector<2x128xf32>
    %c0_129 = arith.constant 0 : index
    %c0_130 = arith.constant 0 : index
    %508 = vector.load %arg16[%c0_129, %c0_130] : memref<2x128xf32, #tpu.memory_space<vmem>>, vector<2x128xf32>
    tpu.vector_store %arg16[%c0_129, %c0_130], %507 {strides = array<i32>} : memref<2x128xf32, #tpu.memory_space<vmem>>, vector<2x128xf32>,
    return
  }
}

</mosaic_0001>

<llo_original>
// kernel: tpu_custom_call.1
$region0: #{tpu_custom_call.1}
  #allocation0 [shape = 'u32[]', space=smem, size = 0x4, offset = 0x4, fixed_abs, tag = 'smem constant byte address 0x4 - core index']
  #allocation1 [shape = 'u32[144,128]{1,0:T(1,128)}', space=vmem, size = 0x12000, scoped, tag = 'internal scratch']
  %s0 = inlined_call_operand.vmem [shape: f32[16,32], index: 0, kind: input, shape index: {}]
  %s1 = inlined_call_operand.vmem [shape: f32[2,8], index: 1, kind: input, shape index: {}]
  %s2 = inlined_call_operand.vmem [shape: f32[2,32], index: 2, kind: input, shape index: {}]
  %s3 = inlined_call_operand.vmem [shape: f32[2,32,96], index: 3, kind: input, shape index: {}]
  %s4 = inlined_call_operand.vmem [shape: f32[2,1,96], index: 4, kind: input, shape index: {}]
  %s5 = inlined_call_operand.vmem [shape: f32[2,32,32], index: 5, kind: input, shape index: {}]
  %s6 = inlined_call_operand.vmem [shape: f32[2,32,64], index: 6, kind: input, shape index: {}]
  %s7 = inlined_call_operand.vmem [shape: f32[2,1,64], index: 7, kind: input, shape index: {}]
  %s8 = inlined_call_operand.vmem [shape: f32[2,64,32], index: 8, kind: input, shape index: {}]
  %s9 = inlined_call_operand.vmem [shape: f32[2,6,32], index: 9, kind: input, shape index: {}]
  %s10 = inlined_call_operand.vmem [shape: f32[32,128], index: 10, kind: input, shape index: {}]
  %s11 = inlined_call_operand.vmem [shape: f32[3,128], index: 11, kind: input, shape index: {}]
  %s12 = inlined_call_operand.vmem [shape: f32[128,64], index: 12, kind: input, shape index: {}]
  %s13 = inlined_call_operand.vmem [shape: f32[3,64], index: 13, kind: input, shape index: {}]
  %s14 = inlined_call_operand.vmem [shape: f32[64,128], index: 14, kind: input, shape index: {}]
  %s15 = inlined_call_operand.vmem [shape: f32[1,128], index: 15, kind: input, shape index: {}]
  %s16 = inlined_call_operand.hbm [shape: f32[2,128], index: 16, kind: output, shape index: {}]
  %s17 = sld [smem:[#allocation0]]
  $region74: #{tpu_custom_call.1} parent=0
    _
  %s19 = ssub.s32 1, %s17
  %s20 = scalar_select 0, %s19, %s17
  $region1: #{tpu_custom_call.1} parent=0
    #allocation2 [shape = 'u8[1024]{0}', space=vmem, size = 0x400, scoped, tag = 'output window, operand 0, single buffered']
    #allocation3 [shape = 's32[1]{0}', space=sflag, size = 0x4, scoped, tag = 'scoped memory for tpu_custom_call.1']
    %21 = vsyncpa [#allocation3], 0
    // Predicated region
    $region2: #{tpu_custom_call.1} parent=1 // pred_check
      _
    $region3: #{tpu_custom_call.1} parent=1 // pred_check_branch
      %23 = sbr.rel (0) target = $region5
    $region4: #{tpu_custom_call.1} parent=1 // pred_region
      _
    $region5: #{tpu_custom_call.1} parent=1 // pred_fallthru
      _
    // Predicated region
    $region6: #{tpu_custom_call.1} parent=1 // pred_check
      _
    $region7: #{tpu_custom_call.1} parent=1 // pred_check_branch
      %25 = sbr.rel (0) target = $region9
    $region8: #{tpu_custom_call.1} parent=1 // pred_region
      _
    $region9: #{tpu_custom_call.1} parent=1 // pred_fallthru
      _
    // Predicated region
    $region10: #{tpu_custom_call.1} parent=1 // pred_check
      _
    $region11: #{tpu_custom_call.1} parent=1 // pred_check_branch
      %27 = sbr.rel (0) target = $region13
    $region12: #{tpu_custom_call.1} parent=1 // pred_region
      _
    $region13: #{tpu_custom_call.1} parent=1 // pred_fallthru
      _
    // Predicated region
    $region14: #{tpu_custom_call.1} parent=1 // pred_check
      _
    $region15: #{tpu_custom_call.1} parent=1 // pred_check_branch
      %29 = sbr.rel (0) target = $region17
    $region16: #{tpu_custom_call.1} parent=1 // pred_region
      _
    $region17: #{tpu_custom_call.1} parent=1 // pred_fallthru
      _
    // Predicated region
    $region18: #{tpu_custom_call.1} parent=1 // pred_check
      _
    $region19: #{tpu_custom_call.1} parent=1 // pred_check_branch
      %31 = sbr.rel (0) target = $region21
    $region20: #{tpu_custom_call.1} parent=1 // pred_region
      _
    $region21: #{tpu_custom_call.1} parent=1 // pred_fallthru
      _
    // Predicated region
    $region22: #{tpu_custom_call.1} parent=1 // pred_check
      _
    $region23: #{tpu_custom_call.1} parent=1 // pred_check_branch
      %33 = sbr.rel (0) target = $region25
    $region24: #{tpu_custom_call.1} parent=1 // pred_region
      _
    $region25: #{tpu_custom_call.1} parent=1 // pred_fallthru
      _
    // Predicated region
    $region26: #{tpu_custom_call.1} parent=1 // pred_check
      _
    $region27: #{tpu_custom_call.1} parent=1 // pred_check_branch
      %35 = sbr.rel (0) target = $region29
    $region28: #{tpu_custom_call.1} parent=1 // pred_region
      _
    $region29: #{tpu_custom_call.1} parent=1 // pred_fallthru
      _
    // Predicated region
    $region30: #{tpu_custom_call.1} parent=1 // pred_check
      _
    $region31: #{tpu_custom_call.1} parent=1 // pred_check_branch
      %37 = sbr.rel (0) target = $region33
    $region32: #{tpu_custom_call.1} parent=1 // pred_region
      _
    $region33: #{tpu_custom_call.1} parent=1 // pred_fallthru
      _
    // Predicated region
    $region34: #{tpu_custom_call.1} parent=1 // pred_check
      _
    $region35: #{tpu_custom_call.1} parent=1 // pred_check_branch
      %39 = sbr.rel (0) target = $region37
    $region36: #{tpu_custom_call.1} parent=1 // pred_region
      _
    $region37: #{tpu_custom_call.1} parent=1 // pred_fallthru
      _
    // Predicated region
    $region38: #{tpu_custom_call.1} parent=1 // pred_check
      _
    $region39: #{tpu_custom_call.1} parent=1 // pred_check_branch
      %41 = sbr.rel (0) target = $region41
    $region40: #{tpu_custom_call.1} parent=1 // pred_region
      _
    $region41: #{tpu_custom_call.1} parent=1 // pred_fallthru
      _
    // Predicated region
    $region42: #{tpu_custom_call.1} parent=1 // pred_check
      _
    $region43: #{tpu_custom_call.1} parent=1 // pred_check_branch
      %43 = sbr.rel (0) target = $region45
    $region44: #{tpu_custom_call.1} parent=1 // pred_region
      _
    $region45: #{tpu_custom_call.1} parent=1 // pred_fallthru
      _
    // Predicated region
    $region46: #{tpu_custom_call.1} parent=1 // pred_check
      _
    $region47: #{tpu_custom_call.1} parent=1 // pred_check_branch
      %45 = sbr.rel (0) target = $region49
    $region48: #{tpu_custom_call.1} parent=1 // pred_region
      _
    $region49: #{tpu_custom_call.1} parent=1 // pred_fallthru
      _
    // Predicated region
    $region50: #{tpu_custom_call.1} parent=1 // pred_check
      _
    $region51: #{tpu_custom_call.1} parent=1 // pred_check_branch
      %47 = sbr.rel (0) target = $region53
    $region52: #{tpu_custom_call.1} parent=1 // pred_region
      _
    $region53: #{tpu_custom_call.1} parent=1 // pred_fallthru
      _
    // Predicated region
    $region54: #{tpu_custom_call.1} parent=1 // pred_check
      _
    $region55: #{tpu_custom_call.1} parent=1 // pred_check_branch
      %49 = sbr.rel (0) target = $region57
    $region56: #{tpu_custom_call.1} parent=1 // pred_region
      _
    $region57: #{tpu_custom_call.1} parent=1 // pred_fallthru
      _
    // Predicated region
    $region58: #{tpu_custom_call.1} parent=1 // pred_check
      _
    $region59: #{tpu_custom_call.1} parent=1 // pred_check_branch
      %51 = sbr.rel (0) target = $region61
    $region60: #{tpu_custom_call.1} parent=1 // pred_region
      _
    $region61: #{tpu_custom_call.1} parent=1 // pred_fallthru
      _
    // Predicated region
    $region62: #{tpu_custom_call.1} parent=1 // pred_check
      _
    $region63: #{tpu_custom_call.1} parent=1 // pred_check_branch
      %53 = sbr.rel (0) target = $region65
    $region64: #{tpu_custom_call.1} parent=1 // pred_region
      _
    $region65: #{tpu_custom_call.1} parent=1 // pred_fallthru
      _
    %v55 = vld [vmem:[%s2] sm:$0x3]
    %v56 = vld [vmem:[%s0] sm:$0xff]
    %v57 = vld [vmem:[%s0 + $0x8] sm:$0xff]
    %vm58 = vcmask 261120
    %v59 = vsel %vm58, %v56, 0.0
    %60 = vadd.xlane.f32.xlu0 %v59
    %v61 = vpop.xlane.xlu0 %60
    %v62 = vsel %vm58, %v57, 0.0
    %63 = vadd.xlane.f32.xlu0 %v62
    %v64 = vpop.xlane.xlu0 %63
    %v65 = vrcp.pop 32.0
    %v66 = vmul.f32 %v61, %v65
    %v67 = vmul.f32 %v64, %v65
    %v68 = vsub.f32 %v56, %v66
    %v69 = vsub.f32 %v57, %v67
    %v70 = vmul.f32 %v68, %v68
    %v71 = vmul.f32 %v69, %v69
    %v72 = vsel %vm58, %v70, 0.0
    %73 = vadd.xlane.f32.xlu0 %v72
    %v74 = vpop.xlane.xlu0 %73
    %v75 = vsel %vm58, %v71, 0.0
    %76 = vadd.xlane.f32.xlu0 %v75
    %v77 = vpop.xlane.xlu0 %76
    %v78 = vmul.f32 %v74, %v65
    %v79 = vmul.f32 %v77, %v65
    %v80 = vadd.f32 %v78, 1e-12
    %v81 = vadd.f32 %v79, 1e-12
    %v82 = vrsqrt.pop %v80
    %v83 = vrsqrt.pop %v81
    %v84 = vmul.f32 %v68, %v82
    %v85 = vmul.f32 %v69, %v83
    %v86 = vlaneseq
    %v87 = vshrl.u32 %v86, 7
    %v88 = vsub.s32 0, %v87
    %v89 = vrot.slane %v55, %v88
    %v90 = vmul.f32 %v84, %v89
    %v91 = vmul.f32 %v85, %v89
    %v92 = vlaneseq
    %v93 = vshrl.u32 %v92, 7
    %v94 = vsub.s32 1, %v93
    %v95 = vrot.slane %v55, %v94
    %v96 = vadd.f32 %v90, %v95
    %v97 = vadd.f32 %v91, %v95
    %v98 = vld [vmem:[%s1] sm:$0x3]
    %v100 = vrot.slane %v98, 1
    %v102 = vld [vmem:[%s3] sm:$0xff]
    %v103 = vld [vmem:[%s3 + $0x8] sm:$0xff]
    %v104 = vld [vmem:[%s3 + $0x10] sm:$0xff]
    %v105 = vld [vmem:[%s3 + $0x18] sm:$0xff]
    %v106 = vld [vmem:[%s4] sm:$0x1]
    %v107 = vld [vmem:[%s5] sm:$0xff]
    %v108 = vld [vmem:[%s5 + $0x8] sm:$0xff]
    %v109 = vld [vmem:[%s5 + $0x10] sm:$0xff]
    %v110 = vld [vmem:[%s5 + $0x18] sm:$0xff]
    %v111 = vld [vmem:[%s6] sm:$0xff]
    %v112 = vld [vmem:[%s6 + $0x8] sm:$0xff]
    %v113 = vld [vmem:[%s6 + $0x10] sm:$0xff]
    %v114 = vld [vmem:[%s6 + $0x18] sm:$0xff]
    %v115 = vld [vmem:[%s7] sm:$0x1]
    %v116 = vld [vmem:[%s8] sm:$0xff]
    %v117 = vld [vmem:[%s8 + $0x8] sm:$0xff]
    %v118 = vld [vmem:[%s8 + $0x10] sm:$0xff]
    %v119 = vld [vmem:[%s8 + $0x18] sm:$0xff]
    %v120 = vld [vmem:[%s8 + $0x20] sm:$0xff]
    %v121 = vld [vmem:[%s8 + $0x28] sm:$0xff]
    %v122 = vld [vmem:[%s8 + $0x30] sm:$0xff]
    %v123 = vld [vmem:[%s8 + $0x38] sm:$0xff]
    %v124 = vld [vmem:[%s9] sm:$0x3f]
    %v125 = vpack.c.bf16 %v97, %v96
    %v126 = vpack.c.bf16 %v103, %v102
    %v127 = vpack.c.bf16 %v105, %v104
    %v129 = vlaneseq
    %v130 = vshrl.u32 %v129, 7
    %v131 = vsub.s32 0, %v130
    %v132 = vrot.slane %v106, %v131
    %v135 = vsel %vm58, %v125, 0
    %137 = vmatprep.subr.bf16.mxu0 0
    %138 = vmatpush1.bf16.msra.mxu0 %v126
    %139 = vmatprep.subr.bf16.mxu0 0
    %140 = vmatpush1.bf16.msra.mxu0 %v127
    %141 = vmatprep.subr.bf16.mxu0 0
    %142 = vmatpush1.bf16.msra.mxu0 0
    %143 = vmatprep.subr.bf16.mxu0 0
    %144 = vmatpush1.bf16.msra.mxu0 0
    %145 = vmatprep.subr.bf16.mxu0 0
    %146 = vmatpush1.bf16.msra.mxu0 0
    %147 = vmatprep.subr.bf16.mxu0 0
    %148 = vmatpush1.bf16.msra.mxu0 0
    %149 = vmatprep.subr.bf16.mxu0 0
    %150 = vmatpush1.bf16.msra.mxu0 0
    %151 = vmatprep.subr.bf16.mxu0 0
    %152 = vmatpush1.bf16.msra.mxu0 0
    %153 = vmatprep.subr.bf16.mxu0 0
    %154 = vmatpush1.bf16.msra.mxu0 0
    %155 = vmatprep.subr.bf16.mxu0 0
    %156 = vmatpush1.bf16.msra.mxu0 0
    %157 = vmatprep.subr.bf16.mxu0 0
    %158 = vmatpush1.bf16.msra.mxu0 0
    %159 = vmatprep.subr.bf16.mxu0 0
    %160 = vmatpush1.bf16.msra.mxu0 0
    %161 = vmatprep.subr.bf16.mxu0 0
    %162 = vmatpush1.bf16.msra.mxu0 0
    %163 = vmatprep.subr.bf16.mxu0 0
    %164 = vmatpush1.bf16.msra.mxu0 0
    %165 = vmatprep.subr.bf16.mxu0 0
    %166 = vmatpush1.bf16.msra.mxu0 0
    %167 = vmatprep.subr.bf16.mxu0 0
    %168 = vmatpush1.bf16.msra.mxu0 0
    %169 = vmatprep.mubr.bf16.mxu0 0
    %170 = vmatmul.mubr.bf16.gmra.mrb[0].mxu0 %v135
    %v171 = vpop.f32.mrb[0].mxu0
    %v172 = vadd.f32 %v132, %v171
    %v173 = vpop.f32.mrb[0].mxu0
    %v174 = vpop.f32.mrb[0].mxu0
    %v175 = vadd.f32 %v132, %v174
    %v176 = vpop.f32.mrb[0].mxu0
    %177 = vdwg.mxu0
    %179 = vrot.lane.b32.xlu0 %v172, 120
    %v180 = vpop.permute.xlu0 %179
    %182 = vrot.lane.b32.xlu0 %v172, 112
    %v183 = vpop.permute.xlu0 %182
    %185 = vrot.lane.b32.xlu0 %v172, 104
    %v186 = vpop.permute.xlu0 %185
    %189 = vrot.lane.b32.xlu0 %v175, 120
    %v190 = vpop.permute.xlu0 %189
    %192 = vrot.lane.b32.xlu0 %v175, 112
    %v193 = vpop.permute.xlu0 %192
    %195 = vrot.lane.b32.xlu0 %v175, 104
    %v196 = vpop.permute.xlu0 %195
    %v198 = vpack.c.bf16 %v172, %v172
    %v199 = vpack.c.bf16 %v180, %v180
    %v200 = vpack.c.bf16 %v183, %v183
    %v201 = vpack.c.bf16 %v186, %v186
    %v202 = vpack.c.bf16 %v175, %v175
    %v203 = vpack.c.bf16 %v190, %v190
    %v204 = vpack.c.bf16 %v193, %v193
    %v205 = vpack.c.bf16 %v196, %v196
    %207 = vrot.lane.b32.xlu0 %v198, 96
    %v208 = vpop.permute.xlu0 %207
    %vm209 = vcmask 64512
    %v211 = vsel %vm209, %v198, 0
    %v214 = vsel %vm209, %v208, 0
    %216 = vmatprep.subr.bf16.mxu0 0
    %217 = vmatpush1.bf16.xpose.msra.mxu0 %v214
    %218 = vmatprep.subr.bf16.mxu0 0
    %219 = vmatpush1.bf16.xpose.msra.mxu0 0
    %220 = vmatprep.subr.bf16.mxu0 0
    %221 = vmatpush1.bf16.xpose.msra.mxu0 0
    %222 = vmatprep.subr.bf16.mxu0 0
    %223 = vmatpush1.bf16.xpose.msra.mxu0 0
    %224 = vmatprep.subr.bf16.mxu0 0
    %225 = vmatpush1.bf16.xpose.msra.mxu0 0
    %226 = vmatprep.subr.bf16.mxu0 0
    %227 = vmatpush1.bf16.xpose.msra.mxu0 0
    %228 = vmatprep.subr.bf16.mxu0 0
    %229 = vmatpush1.bf16.xpose.msra.mxu0 0
    %230 = vmatprep.subr.bf16.mxu0 0
    %231 = vmatpush1.bf16.xpose.msra.mxu0 0
    %232 = vmatprep.subr.bf16.mxu0 0
    %233 = vmatpush1.bf16.xpose.msra.mxu0 0
    %234 = vmatprep.subr.bf16.mxu0 0
    %235 = vmatpush1.bf16.xpose.msra.mxu0 0
    %236 = vmatprep.subr.bf16.mxu0 0
    %237 = vmatpush1.bf16.xpose.msra.mxu0 0
    %238 = vmatprep.subr.bf16.mxu0 0
    %239 = vmatpush1.bf16.xpose.msra.mxu0 0
    %240 = vmatprep.subr.bf16.mxu0 0
    %241 = vmatpush1.bf16.xpose.msra.mxu0 0
    %242 = vmatprep.subr.bf16.mxu0 0
    %243 = vmatpush1.bf16.xpose.msra.mxu0 0
    %244 = vmatprep.subr.bf16.mxu0 0
    %245 = vmatpush1.bf16.xpose.msra.mxu0 0
    %246 = vmatprep.subr.bf16.mxu0 0
    %247 = vmatpush1.bf16.xpose.msra.mxu0 0
    %248 = vmatprep.mubr.bf16.mxu0 0
    %249 = vmatmul.mubr.bf16.gmra.mrb[0].mxu0 %v211
    %v250 = vpop.f32.mrb[0].mxu0
    %v251 = vadd.f32 0.0, %v250
    %v252 = vpop.f32.mrb[0].mxu0
    %v253 = vpop.f32.mrb[0].mxu0
    %v254 = vpop.f32.mrb[0].mxu0
    %255 = vdwg.mxu0
    %257 = vrot.lane.b32.xlu0 %v199, 96
    %v258 = vpop.permute.xlu0 %257
    %v260 = vsel %vm209, %v199, 0
    %v263 = vsel %vm209, %v258, 0
    %265 = vmatprep.subr.bf16.mxu0 0
    %266 = vmatpush1.bf16.xpose.msra.mxu0 %v263
    %267 = vmatprep.subr.bf16.mxu0 0
    %268 = vmatpush1.bf16.xpose.msra.mxu0 0
    %269 = vmatprep.subr.bf16.mxu0 0
    %270 = vmatpush1.bf16.xpose.msra.mxu0 0
    %271 = vmatprep.subr.bf16.mxu0 0
    %272 = vmatpush1.bf16.xpose.msra.mxu0 0
    %273 = vmatprep.subr.bf16.mxu0 0
    %274 = vmatpush1.bf16.xpose.msra.mxu0 0
    %275 = vmatprep.subr.bf16.mxu0 0
    %276 = vmatpush1.bf16.xpose.msra.mxu0 0
    %277 = vmatprep.subr.bf16.mxu0 0
    %278 = vmatpush1.bf16.xpose.msra.mxu0 0
    %279 = vmatprep.subr.bf16.mxu0 0
    %280 = vmatpush1.bf16.xpose.msra.mxu0 0
    %281 = vmatprep.subr.bf16.mxu0 0
    %282 = vmatpush1.bf16.xpose.msra.mxu0 0
    %283 = vmatprep.subr.bf16.mxu0 0
    %284 = vmatpush1.bf16.xpose.msra.mxu0 0
    %285 = vmatprep.subr.bf16.mxu0 0
    %286 = vmatpush1.bf16.xpose.msra.mxu0 0
    %287 = vmatprep.subr.bf16.mxu0 0
    %288 = vmatpush1.bf16.xpose.msra.mxu0 0
    %289 = vmatprep.subr.bf16.mxu0 0
    %290 = vmatpush1.bf16.xpose.msra.mxu0 0
    %291 = vmatprep.subr.bf16.mxu0 0
    %292 = vmatpush1.bf16.xpose.msra.mxu0 0
    %293 = vmatprep.subr.bf16.mxu0 0
    %294 = vmatpush1.bf16.xpose.msra.mxu0 0
    %295 = vmatprep.subr.bf16.mxu0 0
    %296 = vmatpush1.bf16.xpose.msra.mxu0 0
    %297 = vmatprep.mubr.bf16.mxu0 0
    %298 = vmatmul.mubr.bf16.gmra.mrb[0].mxu0 %v260
    %v299 = vpop.f32.mrb[0].mxu0
    %v300 = vadd.f32 0.0, %v299
    %v301 = vpop.f32.mrb[0].mxu0
    %v302 = vpop.f32.mrb[0].mxu0
    %v303 = vpop.f32.mrb[0].mxu0
    %304 = vdwg.mxu0
    %306 = vrot.lane.b32.xlu0 %v200, 96
    %v307 = vpop.permute.xlu0 %306
    %v309 = vsel %vm209, %v200, 0
    %v312 = vsel %vm209, %v307, 0
    %314 = vmatprep.subr.bf16.mxu0 0
    %315 = vmatpush1.bf16.xpose.msra.mxu0 %v312
    %316 = vmatprep.subr.bf16.mxu0 0
    %317 = vmatpush1.bf16.xpose.msra.mxu0 0
    %318 = vmatprep.subr.bf16.mxu0 0
    %319 = vmatpush1.bf16.xpose.msra.mxu0 0
    %320 = vmatprep.subr.bf16.mxu0 0
    %321 = vmatpush1.bf16.xpose.msra.mxu0 0
    %322 = vmatprep.subr.bf16.mxu0 0
    %323 = vmatpush1.bf16.xpose.msra.mxu0 0
    %324 = vmatprep.subr.bf16.mxu0 0
    %325 = vmatpush1.bf16.xpose.msra.mxu0 0
    %326 = vmatprep.subr.bf16.mxu0 0
    %327 = vmatpush1.bf16.xpose.msra.mxu0 0
    %328 = vmatprep.subr.bf16.mxu0 0
    %329 = vmatpush1.bf16.xpose.msra.mxu0 0
    %330 = vmatprep.subr.bf16.mxu0 0
    %331 = vmatpush1.bf16.xpose.msra.mxu0 0
    %332 = vmatprep.subr.bf16.mxu0 0
    %333 = vmatpush1.bf16.xpose.msra.mxu0 0
    %334 = vmatprep.subr.bf16.mxu0 0
    %335 = vmatpush1.bf16.xpose.msra.mxu0 0
    %336 = vmatprep.subr.bf16.mxu0 0
    %337 = vmatpush1.bf16.xpose.msra.mxu0 0
    %338 = vmatprep.subr.bf16.mxu0 0
    %339 = vmatpush1.bf16.xpose.msra.mxu0 0
    %340 = vmatprep.subr.bf16.mxu0 0
    %341 = vmatpush1.bf16.xpose.msra.mxu0 0
    %342 = vmatprep.subr.bf16.mxu0 0
    %343 = vmatpush1.bf16.xpose.msra.mxu0 0
    %344 = vmatprep.subr.bf16.mxu0 0
    %345 = vmatpush1.bf16.xpose.msra.mxu0 0
    %346 = vmatprep.mubr.bf16.mxu0 0
    %347 = vmatmul.mubr.bf16.gmra.mrb[0].mxu0 %v309
    %v348 = vpop.f32.mrb[0].mxu0
    %v349 = vadd.f32 0.0, %v348
    %v350 = vpop.f32.mrb[0].mxu0
    %v351 = vpop.f32.mrb[0].mxu0
    %v352 = vpop.f32.mrb[0].mxu0
    %353 = vdwg.mxu0
    %355 = vrot.lane.b32.xlu0 %v201, 96
    %v356 = vpop.permute.xlu0 %355
    %v358 = vsel %vm209, %v201, 0
    %v361 = vsel %vm209, %v356, 0
    %363 = vmatprep.subr.bf16.mxu0 0
    %364 = vmatpush1.bf16.xpose.msra.mxu0 %v361
    %365 = vmatprep.subr.bf16.mxu0 0
    %366 = vmatpush1.bf16.xpose.msra.mxu0 0
    %367 = vmatprep.subr.bf16.mxu0 0
    %368 = vmatpush1.bf16.xpose.msra.mxu0 0
    %369 = vmatprep.subr.bf16.mxu0 0
    %370 = vmatpush1.bf16.xpose.msra.mxu0 0
    %371 = vmatprep.subr.bf16.mxu0 0
    %372 = vmatpush1.bf16.xpose.msra.mxu0 0
    %373 = vmatprep.subr.bf16.mxu0 0
    %374 = vmatpush1.bf16.xpose.msra.mxu0 0
    %375 = vmatprep.subr.bf16.mxu0 0
    %376 = vmatpush1.bf16.xpose.msra.mxu0 0
    %377 = vmatprep.subr.bf16.mxu0 0
    %378 = vmatpush1.bf16.xpose.msra.mxu0 0
    %379 = vmatprep.subr.bf16.mxu0 0
    %380 = vmatpush1.bf16.xpose.msra.mxu0 0
    %381 = vmatprep.subr.bf16.mxu0 0
    %382 = vmatpush1.bf16.xpose.msra.mxu0 0
    %383 = vmatprep.subr.bf16.mxu0 0
    %384 = vmatpush1.bf16.xpose.msra.mxu0 0
    %385 = vmatprep.subr.bf16.mxu0 0
    %386 = vmatpush1.bf16.xpose.msra.mxu0 0
    %387 = vmatprep.subr.bf16.mxu0 0
    %388 = vmatpush1.bf16.xpose.msra.mxu0 0
    %389 = vmatprep.subr.bf16.mxu0 0
    %390 = vmatpush1.bf16.xpose.msra.mxu0 0
    %391 = vmatprep.subr.bf16.mxu0 0
    %392 = vmatpush1.bf16.xpose.msra.mxu0 0
    %393 = vmatprep.subr.bf16.mxu0 0
    %394 = vmatpush1.bf16.xpose.msra.mxu0 0
    %395 = vmatprep.mubr.bf16.mxu0 0
    %396 = vmatmul.mubr.bf16.gmra.mrb[0].mxu0 %v358
    %v397 = vpop.f32.mrb[0].mxu0
    %v398 = vadd.f32 0.0, %v397
    %v399 = vpop.f32.mrb[0].mxu0
    %v400 = vpop.f32.mrb[0].mxu0
    %v401 = vpop.f32.mrb[0].mxu0
    %402 = vdwg.mxu0
    %404 = vrot.lane.b32.xlu0 %v202, 96
    %v405 = vpop.permute.xlu0 %404
    %v407 = vsel %vm209, %v202, 0
    %v410 = vsel %vm209, %v405, 0
    %412 = vmatprep.subr.bf16.mxu0 0
    %413 = vmatpush1.bf16.xpose.msra.mxu0 %v410
    %414 = vmatprep.subr.bf16.mxu0 0
    %415 = vmatpush1.bf16.xpose.msra.mxu0 0
    %416 = vmatprep.subr.bf16.mxu0 0
    %417 = vmatpush1.bf16.xpose.msra.mxu0 0
    %418 = vmatprep.subr.bf16.mxu0 0
    %419 = vmatpush1.bf16.xpose.msra.mxu0 0
    %420 = vmatprep.subr.bf16.mxu0 0
    %421 = vmatpush1.bf16.xpose.msra.mxu0 0
    %422 = vmatprep.subr.bf16.mxu0 0
    %423 = vmatpush1.bf16.xpose.msra.mxu0 0
    %424 = vmatprep.subr.bf16.mxu0 0
    %425 = vmatpush1.bf16.xpose.msra.mxu0 0
    %426 = vmatprep.subr.bf16.mxu0 0
    %427 = vmatpush1.bf16.xpose.msra.mxu0 0
    %428 = vmatprep.subr.bf16.mxu0 0
    %429 = vmatpush1.bf16.xpose.msra.mxu0 0
    %430 = vmatprep.subr.bf16.mxu0 0
    %431 = vmatpush1.bf16.xpose.msra.mxu0 0
    %432 = vmatprep.subr.bf16.mxu0 0
    %433 = vmatpush1.bf16.xpose.msra.mxu0 0
    %434 = vmatprep.subr.bf16.mxu0 0
    %435 = vmatpush1.bf16.xpose.msra.mxu0 0
    %436 = vmatprep.subr.bf16.mxu0 0
    %437 = vmatpush1.bf16.xpose.msra.mxu0 0
    %438 = vmatprep.subr.bf16.mxu0 0
    %439 = vmatpush1.bf16.xpose.msra.mxu0 0
    %440 = vmatprep.subr.bf16.mxu0 0
    %441 = vmatpush1.bf16.xpose.msra.mxu0 0
    %442 = vmatprep.subr.bf16.mxu0 0
    %443 = vmatpush1.bf16.xpose.msra.mxu0 0
    %444 = vmatprep.mubr.bf16.mxu0 0
    %445 = vmatmul.mubr.bf16.gmra.mrb[0].mxu0 %v407
    %v446 = vpop.f32.mrb[0].mxu0
    %v447 = vadd.f32 0.0, %v446
    %v448 = vpop.f32.mrb[0].mxu0
    %v449 = vpop.f32.mrb[0].mxu0
    %v450 = vpop.f32.mrb[0].mxu0
    %451 = vdwg.mxu0
    %453 = vrot.lane.b32.xlu0 %v203, 96
    %v454 = vpop.permute.xlu0 %453
    %v456 = vsel %vm209, %v203, 0
    %v459 = vsel %vm209, %v454, 0
    %461 = vmatprep.subr.bf16.mxu0 0
    %462 = vmatpush1.bf16.xpose.msra.mxu0 %v459
    %463 = vmatprep.subr.bf16.mxu0 0
    %464 = vmatpush1.bf16.xpose.msra.mxu0 0
    %465 = vmatprep.subr.bf16.mxu0 0
    %466 = vmatpush1.bf16.xpose.msra.mxu0 0
    %467 = vmatprep.subr.bf16.mxu0 0
    %468 = vmatpush1.bf16.xpose.msra.mxu0 0
    %469 = vmatprep.subr.bf16.mxu0 0
    %470 = vmatpush1.bf16.xpose.msra.mxu0 0
    %471 = vmatprep.subr.bf16.mxu0 0
    %472 = vmatpush1.bf16.xpose.msra.mxu0 0
    %473 = vmatprep.subr.bf16.mxu0 0
    %474 = vmatpush1.bf16.xpose.msra.mxu0 0
    %475 = vmatprep.subr.bf16.mxu0 0
    %476 = vmatpush1.bf16.xpose.msra.mxu0 0
    %477 = vmatprep.subr.bf16.mxu0 0
    %478 = vmatpush1.bf16.xpose.msra.mxu0 0
    %479 = vmatprep.subr.bf16.mxu0 0
    %480 = vmatpush1.bf16.xpose.msra.mxu0 0
    %481 = vmatprep.subr.bf16.mxu0 0
    %482 = vmatpush1.bf16.xpose.msra.mxu0 0
    %483 = vmatprep.subr.bf16.mxu0 0
    %484 = vmatpush1.bf16.xpose.msra.mxu0 0
    %485 = vmatprep.subr.bf16.mxu0 0
    %486 = vmatpush1.bf16.xpose.msra.mxu0 0
    %487 = vmatprep.subr.bf16.mxu0 0
    %488 = vmatpush1.bf16.xpose.msra.mxu0 0
    %489 = vmatprep.subr.bf16.mxu0 0
    %490 = vmatpush1.bf16.xpose.msra.mxu0 0
    %491 = vmatprep.subr.bf16.mxu0 0
    %492 = vmatpush1.bf16.xpose.msra.mxu0 0
    %493 = vmatprep.mubr.bf16.mxu0 0
    %494 = vmatmul.mubr.bf16.gmra.mrb[0].mxu0 %v456
    %v495 = vpop.f32.mrb[0].mxu0
    %v496 = vadd.f32 0.0, %v495
    %v497 = vpop.f32.mrb[0].mxu0
    %v498 = vpop.f32.mrb[0].mxu0
    %v499 = vpop.f32.mrb[0].mxu0
    %500 = vdwg.mxu0
    %502 = vrot.lane.b32.xlu0 %v204, 96
    %v503 = vpop.permute.xlu0 %502
    %v505 = vsel %vm209, %v204, 0
    %v508 = vsel %vm209, %v503, 0
    %510 = vmatprep.subr.bf16.mxu0 0
    %511 = vmatpush1.bf16.xpose.msra.mxu0 %v508
    %512 = vmatprep.subr.bf16.mxu0 0
    %513 = vmatpush1.bf16.xpose.msra.mxu0 0
    %514 = vmatprep.subr.bf16.mxu0 0
    %515 = vmatpush1.bf16.xpose.msra.mxu0 0
    %516 = vmatprep.subr.bf16.mxu0 0
    %517 = vmatpush1.bf16.xpose.msra.mxu0 0
    %518 = vmatprep.subr.bf16.mxu0 0
    %519 = vmatpush1.bf16.xpose.msra.mxu0 0
    %520 = vmatprep.subr.bf16.mxu0 0
    %521 = vmatpush1.bf16.xpose.msra.mxu0 0
    %522 = vmatprep.subr.bf16.mxu0 0
    %523 = vmatpush1.bf16.xpose.msra.mxu0 0
    %524 = vmatprep.subr.bf16.mxu0 0
    %525 = vmatpush1.bf16.xpose.msra.mxu0 0
    %526 = vmatprep.subr.bf16.mxu0 0
    %527 = vmatpush1.bf16.xpose.msra.mxu0 0
    %528 = vmatprep.subr.bf16.mxu0 0
    %529 = vmatpush1.bf16.xpose.msra.mxu0 0
    %530 = vmatprep.subr.bf16.mxu0 0
    %531 = vmatpush1.bf16.xpose.msra.mxu0 0
    %532 = vmatprep.subr.bf16.mxu0 0
    %533 = vmatpush1.bf16.xpose.msra.mxu0 0
    %534 = vmatprep.subr.bf16.mxu0 0
    %535 = vmatpush1.bf16.xpose.msra.mxu0 0
    %536 = vmatprep.subr.bf16.mxu0 0
    %537 = vmatpush1.bf16.xpose.msra.mxu0 0
    %538 = vmatprep.subr.bf16.mxu0 0
    %539 = vmatpush1.bf16.xpose.msra.mxu0 0
    %540 = vmatprep.subr.bf16.mxu0 0
    %541 = vmatpush1.bf16.xpose.msra.mxu0 0
    %542 = vmatprep.mubr.bf16.mxu0 0
    %543 = vmatmul.mubr.bf16.gmra.mrb[0].mxu0 %v505
    %v544 = vpop.f32.mrb[0].mxu0
    %v545 = vadd.f32 0.0, %v544
    %v546 = vpop.f32.mrb[0].mxu0
    %v547 = vpop.f32.mrb[0].mxu0
    %v548 = vpop.f32.mrb[0].mxu0
    %549 = vdwg.mxu0
    %551 = vrot.lane.b32.xlu0 %v205, 96
    %v552 = vpop.permute.xlu0 %551
    %v554 = vsel %vm209, %v205, 0
    %v557 = vsel %vm209, %v552, 0
    %559 = vmatprep.subr.bf16.mxu0 0
    %560 = vmatpush1.bf16.xpose.msra.mxu0 %v557
    %561 = vmatprep.subr.bf16.mxu0 0
    %562 = vmatpush1.bf16.xpose.msra.mxu0 0
    %563 = vmatprep.subr.bf16.mxu0 0
    %564 = vmatpush1.bf16.xpose.msra.mxu0 0
    %565 = vmatprep.subr.bf16.mxu0 0
    %566 = vmatpush1.bf16.xpose.msra.mxu0 0
    %567 = vmatprep.subr.bf16.mxu0 0
    %568 = vmatpush1.bf16.xpose.msra.mxu0 0
    %569 = vmatprep.subr.bf16.mxu0 0
    %570 = vmatpush1.bf16.xpose.msra.mxu0 0
    %571 = vmatprep.subr.bf16.mxu0 0
    %572 = vmatpush1.bf16.xpose.msra.mxu0 0
    %573 = vmatprep.subr.bf16.mxu0 0
    %574 = vmatpush1.bf16.xpose.msra.mxu0 0
    %575 = vmatprep.subr.bf16.mxu0 0
    %576 = vmatpush1.bf16.xpose.msra.mxu0 0
    %577 = vmatprep.subr.bf16.mxu0 0
    %578 = vmatpush1.bf16.xpose.msra.mxu0 0
    %579 = vmatprep.subr.bf16.mxu0 0
    %580 = vmatpush1.bf16.xpose.msra.mxu0 0
    %581 = vmatprep.subr.bf16.mxu0 0
    %582 = vmatpush1.bf16.xpose.msra.mxu0 0
    %583 = vmatprep.subr.bf16.mxu0 0
    %584 = vmatpush1.bf16.xpose.msra.mxu0 0
    %585 = vmatprep.subr.bf16.mxu0 0
    %586 = vmatpush1.bf16.xpose.msra.mxu0 0
    %587 = vmatprep.subr.bf16.mxu0 0
    %588 = vmatpush1.bf16.xpose.msra.mxu0 0
    %589 = vmatprep.subr.bf16.mxu0 0
    %590 = vmatpush1.bf16.xpose.msra.mxu0 0
    %591 = vmatprep.mubr.bf16.mxu0 0
    %592 = vmatmul.mubr.bf16.gmra.mrb[0].mxu0 %v554
    %v593 = vpop.f32.mrb[0].mxu0
    %v594 = vadd.f32 0.0, %v593
    %v595 = vpop.f32.mrb[0].mxu0
    %v596 = vpop.f32.mrb[0].mxu0
    %v597 = vpop.f32.mrb[0].mxu0
    %598 = vdwg.mxu0
    %v599 = vmul.f32 %v251, 0.35355338
    %v600 = vmul.f32 %v300, 0.35355338
    %v601 = vmul.f32 %v349, 0.35355338
    %v602 = vmul.f32 %v398, 0.35355338
    %v603 = vmul.f32 %v447, 0.35355338
    %v604 = vmul.f32 %v496, 0.35355338
    %v605 = vmul.f32 %v545, 0.35355338
    %v606 = vmul.f32 %v594, 0.35355338
    %v607 = vlaneseq
    %v608 = vshrl.u32 %v607, 7
    %v609 = vsub.s32 0, %v608
    %v610 = vrot.slane %v98, %v609
    %v611 = vlaneseq
    %v612 = vshrl.u32 %v611, 7
    %v613 = vsub.s32 0, %v612
    %v614 = vrot.slane %v100, %v613
    %v615 = vadd.f32 %v599, %v610
    %v616 = vadd.f32 %v600, %v610
    %v617 = vadd.f32 %v601, %v610
    %v618 = vadd.f32 %v602, %v610
    %v619 = vadd.f32 %v603, %v614
    %v620 = vadd.f32 %v604, %v614
    %v621 = vadd.f32 %v605, %v614
    %v622 = vadd.f32 %v606, %v614
    %v623 = vsel %vm209, %v615, -inf
    %624 = vmax.xlane.f32.xlu0 %v623
    %v625 = vpop.xlane.xlu0 %624
    %v626 = vsel %vm209, %v616, -inf
    %627 = vmax.xlane.f32.xlu0 %v626
    %v628 = vpop.xlane.xlu0 %627
    %v629 = vsel %vm209, %v617, -inf
    %630 = vmax.xlane.f32.xlu0 %v629
    %v631 = vpop.xlane.xlu0 %630
    %v632 = vsel %vm209, %v618, -inf
    %633 = vmax.xlane.f32.xlu0 %v632
    %v634 = vpop.xlane.xlu0 %633
    %v635 = vsel %vm209, %v619, -inf
    %636 = vmax.xlane.f32.xlu0 %v635
    %v637 = vpop.xlane.xlu0 %636
    %v638 = vsel %vm209, %v620, -inf
    %639 = vmax.xlane.f32.xlu0 %v638
    %v640 = vpop.xlane.xlu0 %639
    %v641 = vsel %vm209, %v621, -inf
    %642 = vmax.xlane.f32.xlu0 %v641
    %v643 = vpop.xlane.xlu0 %642
    %v644 = vsel %vm209, %v622, -inf
    %645 = vmax.xlane.f32.xlu0 %v644
    %v646 = vpop.xlane.xlu0 %645
    %v647 = vsub.f32 %v615, %v625
    %v648 = vsub.f32 %v616, %v628
    %v649 = vsub.f32 %v617, %v631
    %v650 = vsub.f32 %v618, %v634
    %v651 = vsub.f32 %v619, %v637
    %v652 = vsub.f32 %v620, %v640
    %v653 = vsub.f32 %v621, %v643
    %v654 = vsub.f32 %v622, %v646
    %v655 = vmul.f32 %v647, 1.442695
    %v656 = vpow.pop %v655
    %v657 = vmul.f32 %v648, 1.442695
    %v658 = vpow.pop %v657
    %v659 = vmul.f32 %v649, 1.442695
    %v660 = vpow.pop %v659
    %v661 = vmul.f32 %v650, 1.442695
    %v662 = vpow.pop %v661
    %v663 = vmul.f32 %v651, 1.442695
    %v664 = vpow.pop %v663
    %v665 = vmul.f32 %v652, 1.442695
    %v666 = vpow.pop %v665
    %v667 = vmul.f32 %v653, 1.442695
    %v668 = vpow.pop %v667
    %v669 = vmul.f32 %v654, 1.442695
    %v670 = vpow.pop %v669
    %v671 = vsel %vm209, %v656, 0.0
    %672 = vadd.xlane.f32.xlu0 %v671
    %v673 = vpop.xlane.xlu0 %672
    %v674 = vsel %vm209, %v658, 0.0
    %675 = vadd.xlane.f32.xlu0 %v674
    %v676 = vpop.xlane.xlu0 %675
    %v677 = vsel %vm209, %v660, 0.0
    %678 = vadd.xlane.f32.xlu0 %v677
    %v679 = vpop.xlane.xlu0 %678
    %v680 = vsel %vm209, %v662, 0.0
    %681 = vadd.xlane.f32.xlu0 %v680
    %v682 = vpop.xlane.xlu0 %681
    %v683 = vsel %vm209, %v664, 0.0
    %684 = vadd.xlane.f32.xlu0 %v683
    %v685 = vpop.xlane.xlu0 %684
    %v686 = vsel %vm209, %v666, 0.0
    %687 = vadd.xlane.f32.xlu0 %v686
    %v688 = vpop.xlane.xlu0 %687
    %v689 = vsel %vm209, %v668, 0.0
    %690 = vadd.xlane.f32.xlu0 %v689
    %v691 = vpop.xlane.xlu0 %690
    %v692 = vsel %vm209, %v670, 0.0
    %693 = vadd.xlane.f32.xlu0 %v692
    %v694 = vpop.xlane.xlu0 %693
    %v695 = vrcp.pop %v673
    %v696 = vrcp.pop %v676
    %v697 = vrcp.pop %v679
    %v698 = vrcp.pop %v682
    %v699 = vrcp.pop %v685
    %v700 = vrcp.pop %v688
    %v701 = vrcp.pop %v691
    %v702 = vrcp.pop %v694
    %v703 = vmul.f32 %v656, %v695
    %v704 = vmul.f32 %v658, %v696
    %v705 = vmul.f32 %v660, %v697
    %v706 = vmul.f32 %v662, %v698
    %v707 = vmul.f32 %v664, %v699
    %v708 = vmul.f32 %v666, %v700
    %v709 = vmul.f32 %v668, %v701
    %v710 = vmul.f32 %v670, %v702
    %v711 = vpack.c.bf16 %v703, %v703
    %v712 = vpack.c.bf16 %v704, %v704
    %v713 = vpack.c.bf16 %v705, %v705
    %v714 = vpack.c.bf16 %v706, %v706
    %v715 = vpack.c.bf16 %v707, %v707
    %v716 = vpack.c.bf16 %v708, %v708
    %v717 = vpack.c.bf16 %v709, %v709
    %v718 = vpack.c.bf16 %v710, %v710
    %719 = vrot.lane.b32.xlu0 %v198, 64
    %v720 = vpop.permute.xlu0 %719
    %v722 = vsel %vm209, %v711, 0
    %vm724 = vcmask 1043456
    %v726 = vsel %vm724, %v720, 0
    %728 = vmatprep.subr.bf16.mxu0 0
    %729 = vmatpush1.bf16.msra.mxu0 %v726
    %730 = vmatprep.subr.bf16.mxu0 0
    %731 = vmatpush1.bf16.msra.mxu0 0
    %732 = vmatprep.subr.bf16.mxu0 0
    %733 = vmatpush1.bf16.msra.mxu0 0
    %734 = vmatprep.subr.bf16.mxu0 0
    %735 = vmatpush1.bf16.msra.mxu0 0
    %736 = vmatprep.subr.bf16.mxu0 0
    %737 = vmatpush1.bf16.msra.mxu0 0
    %738 = vmatprep.subr.bf16.mxu0 0
    %739 = vmatpush1.bf16.msra.mxu0 0
    %740 = vmatprep.subr.bf16.mxu0 0
    %741 = vmatpush1.bf16.msra.mxu0 0
    %742 = vmatprep.subr.bf16.mxu0 0
    %743 = vmatpush1.bf16.msra.mxu0 0
    %744 = vmatprep.subr.bf16.mxu0 0
    %745 = vmatpush1.bf16.msra.mxu0 0
    %746 = vmatprep.subr.bf16.mxu0 0
    %747 = vmatpush1.bf16.msra.mxu0 0
    %748 = vmatprep.subr.bf16.mxu0 0
    %749 = vmatpush1.bf16.msra.mxu0 0
    %750 = vmatprep.subr.bf16.mxu0 0
    %751 = vmatpush1.bf16.msra.mxu0 0
    %752 = vmatprep.subr.bf16.mxu0 0
    %753 = vmatpush1.bf16.msra.mxu0 0
    %754 = vmatprep.subr.bf16.mxu0 0
    %755 = vmatpush1.bf16.msra.mxu0 0
    %756 = vmatprep.subr.bf16.mxu0 0
    %757 = vmatpush1.bf16.msra.mxu0 0
    %758 = vmatprep.subr.bf16.mxu0 0
    %759 = vmatpush1.bf16.msra.mxu0 0
    %760 = vmatprep.mubr.bf16.mxu0 0
    %761 = vmatmul.mubr.bf16.gmra.mrb[0].mxu0 %v722
    %v762 = vpop.f32.mrb[0].mxu0
    %v763 = vadd.f32 0.0, %v762
    %v764 = vpop.f32.mrb[0].mxu0
    %v765 = vpop.f32.mrb[0].mxu0
    %v766 = vpop.f32.mrb[0].mxu0
    %767 = vdwg.mxu0
    %768 = vrot.lane.b32.xlu0 %v199, 64
    %v769 = vpop.permute.xlu0 %768
    %v771 = vsel %vm209, %v712, 0
    %v774 = vsel %vm724, %v769, 0
    %776 = vmatprep.subr.bf16.mxu0 0
    %777 = vmatpush1.bf16.msra.mxu0 %v774
    %778 = vmatprep.subr.bf16.mxu0 0
    %779 = vmatpush1.bf16.msra.mxu0 0
    %780 = vmatprep.subr.bf16.mxu0 0
    %781 = vmatpush1.bf16.msra.mxu0 0
    %782 = vmatprep.subr.bf16.mxu0 0
    %783 = vmatpush1.bf16.msra.mxu0 0
    %784 = vmatprep.subr.bf16.mxu0 0
    %785 = vmatpush1.bf16.msra.mxu0 0
    %786 = vmatprep.subr.bf16.mxu0 0
    %787 = vmatpush1.bf16.msra.mxu0 0
    %788 = vmatprep.subr.bf16.mxu0 0
    %789 = vmatpush1.bf16.msra.mxu0 0
    %790 = vmatprep.subr.bf16.mxu0 0
    %791 = vmatpush1.bf16.msra.mxu0 0
    %792 = vmatprep.subr.bf16.mxu0 0
    %793 = vmatpush1.bf16.msra.mxu0 0
    %794 = vmatprep.subr.bf16.mxu0 0
    %795 = vmatpush1.bf16.msra.mxu0 0
    %796 = vmatprep.subr.bf16.mxu0 0
    %797 = vmatpush1.bf16.msra.mxu0 0
    %798 = vmatprep.subr.bf16.mxu0 0
    %799 = vmatpush1.bf16.msra.mxu0 0
    %800 = vmatprep.subr.bf16.mxu0 0
    %801 = vmatpush1.bf16.msra.mxu0 0
    %802 = vmatprep.subr.bf16.mxu0 0
    %803 = vmatpush1.bf16.msra.mxu0 0
    %804 = vmatprep.subr.bf16.mxu0 0
    %805 = vmatpush1.bf16.msra.mxu0 0
    %806 = vmatprep.subr.bf16.mxu0 0
    %807 = vmatpush1.bf16.msra.mxu0 0
    %808 = vmatprep.mubr.bf16.mxu0 0
    %809 = vmatmul.mubr.bf16.gmra.mrb[0].mxu0 %v771
    %v810 = vpop.f32.mrb[0].mxu0
    %v811 = vadd.f32 0.0, %v810
    %v812 = vpop.f32.mrb[0].mxu0
    %v813 = vpop.f32.mrb[0].mxu0
    %v814 = vpop.f32.mrb[0].mxu0
    %815 = vdwg.mxu0
    %816 = vrot.lane.b32.xlu0 %v200, 64
    %v817 = vpop.permute.xlu0 %816
    %v819 = vsel %vm209, %v713, 0
    %v822 = vsel %vm724, %v817, 0
    %824 = vmatprep.subr.bf16.mxu0 0
    %825 = vmatpush1.bf16.msra.mxu0 %v822
    %826 = vmatprep.subr.bf16.mxu0 0
    %827 = vmatpush1.bf16.msra.mxu0 0
    %828 = vmatprep.subr.bf16.mxu0 0
    %829 = vmatpush1.bf16.msra.mxu0 0
    %830 = vmatprep.subr.bf16.mxu0 0
    %831 = vmatpush1.bf16.msra.mxu0 0
    %832 = vmatprep.subr.bf16.mxu0 0
    %833 = vmatpush1.bf16.msra.mxu0 0
    %834 = vmatprep.subr.bf16.mxu0 0
    %835 = vmatpush1.bf16.msra.mxu0 0
    %836 = vmatprep.subr.bf16.mxu0 0
    %837 = vmatpush1.bf16.msra.mxu0 0
    %838 = vmatprep.subr.bf16.mxu0 0
    %839 = vmatpush1.bf16.msra.mxu0 0
    %840 = vmatprep.subr.bf16.mxu0 0
    %841 = vmatpush1.bf16.msra.mxu0 0
    %842 = vmatprep.subr.bf16.mxu0 0
    %843 = vmatpush1.bf16.msra.mxu0 0
    %844 = vmatprep.subr.bf16.mxu0 0
    %845 = vmatpush1.bf16.msra.mxu0 0
    %846 = vmatprep.subr.bf16.mxu0 0
    %847 = vmatpush1.bf16.msra.mxu0 0
    %848 = vmatprep.subr.bf16.mxu0 0
    %849 = vmatpush1.bf16.msra.mxu0 0
    %850 = vmatprep.subr.bf16.mxu0 0
    %851 = vmatpush1.bf16.msra.mxu0 0
    %852 = vmatprep.subr.bf16.mxu0 0
    %853 = vmatpush1.bf16.msra.mxu0 0
    %854 = vmatprep.subr.bf16.mxu0 0
    %855 = vmatpush1.bf16.msra.mxu0 0
    %856 = vmatprep.mubr.bf16.mxu0 0
    %857 = vmatmul.mubr.bf16.gmra.mrb[0].mxu0 %v819
    %v858 = vpop.f32.mrb[0].mxu0
    %v859 = vadd.f32 0.0, %v858
    %v860 = vpop.f32.mrb[0].mxu0
    %v861 = vpop.f32.mrb[0].mxu0
    %v862 = vpop.f32.mrb[0].mxu0
    %863 = vdwg.mxu0
    %864 = vrot.lane.b32.xlu0 %v201, 64
    %v865 = vpop.permute.xlu0 %864
    %v867 = vsel %vm209, %v714, 0
    %v870 = vsel %vm724, %v865, 0
    %872 = vmatprep.subr.bf16.mxu0 0
    %873 = vmatpush1.bf16.msra.mxu0 %v870
    %874 = vmatprep.subr.bf16.mxu0 0
    %875 = vmatpush1.bf16.msra.mxu0 0
    %876 = vmatprep.subr.bf16.mxu0 0
    %877 = vmatpush1.bf16.msra.mxu0 0
    %878 = vmatprep.subr.bf16.mxu0 0
    %879 = vmatpush1.bf16.msra.mxu0 0
    %880 = vmatprep.subr.bf16.mxu0 0
    %881 = vmatpush1.bf16.msra.mxu0 0
    %882 = vmatprep.subr.bf16.mxu0 0
    %883 = vmatpush1.bf16.msra.mxu0 0
    %884 = vmatprep.subr.bf16.mxu0 0
    %885 = vmatpush1.bf16.msra.mxu0 0
    %886 = vmatprep.subr.bf16.mxu0 0
    %887 = vmatpush1.bf16.msra.mxu0 0
    %888 = vmatprep.subr.bf16.mxu0 0
    %889 = vmatpush1.bf16.msra.mxu0 0
    %890 = vmatprep.subr.bf16.mxu0 0
    %891 = vmatpush1.bf16.msra.mxu0 0
    %892 = vmatprep.subr.bf16.mxu0 0
    %893 = vmatpush1.bf16.msra.mxu0 0
    %894 = vmatprep.subr.bf16.mxu0 0
    %895 = vmatpush1.bf16.msra.mxu0 0
    %896 = vmatprep.subr.bf16.mxu0 0
    %897 = vmatpush1.bf16.msra.mxu0 0
    %898 = vmatprep.subr.bf16.mxu0 0
    %899 = vmatpush1.bf16.msra.mxu0 0
    %900 = vmatprep.subr.bf16.mxu0 0
    %901 = vmatpush1.bf16.msra.mxu0 0
    %902 = vmatprep.subr.bf16.mxu0 0
    %903 = vmatpush1.bf16.msra.mxu0 0
    %904 = vmatprep.mubr.bf16.mxu0 0
    %905 = vmatmul.mubr.bf16.gmra.mrb[0].mxu0 %v867
    %v906 = vpop.f32.mrb[0].mxu0
    %v907 = vadd.f32 0.0, %v906
    %v908 = vpop.f32.mrb[0].mxu0
    %v909 = vpop.f32.mrb[0].mxu0
    %v910 = vpop.f32.mrb[0].mxu0
    %911 = vdwg.mxu0
    %912 = vrot.lane.b32.xlu0 %v202, 64
    %v913 = vpop.permute.xlu0 %912
    %v915 = vsel %vm209, %v715, 0
    %v918 = vsel %vm724, %v913, 0
    %920 = vmatprep.subr.bf16.mxu0 0
    %921 = vmatpush1.bf16.msra.mxu0 %v918
    %922 = vmatprep.subr.bf16.mxu0 0
    %923 = vmatpush1.bf16.msra.mxu0 0
    %924 = vmatprep.subr.bf16.mxu0 0
    %925 = vmatpush1.bf16.msra.mxu0 0
    %926 = vmatprep.subr.bf16.mxu0 0
    %927 = vmatpush1.bf16.msra.mxu0 0
    %928 = vmatprep.subr.bf16.mxu0 0
    %929 = vmatpush1.bf16.msra.mxu0 0
    %930 = vmatprep.subr.bf16.mxu0 0
    %931 = vmatpush1.bf16.msra.mxu0 0
    %932 = vmatprep.subr.bf16.mxu0 0
    %933 = vmatpush1.bf16.msra.mxu0 0
    %934 = vmatprep.subr.bf16.mxu0 0
    %935 = vmatpush1.bf16.msra.mxu0 0
    %936 = vmatprep.subr.bf16.mxu0 0
    %937 = vmatpush1.bf16.msra.mxu0 0
    %938 = vmatprep.subr.bf16.mxu0 0
    %939 = vmatpush1.bf16.msra.mxu0 0
    %940 = vmatprep.subr.bf16.mxu0 0
    %941 = vmatpush1.bf16.msra.mxu0 0
    %942 = vmatprep.subr.bf16.mxu0 0
    %943 = vmatpush1.bf16.msra.mxu0 0
    %944 = vmatprep.subr.bf16.mxu0 0
    %945 = vmatpush1.bf16.msra.mxu0 0
    %946 = vmatprep.subr.bf16.mxu0 0
    %947 = vmatpush1.bf16.msra.mxu0 0
    %948 = vmatprep.subr.bf16.mxu0 0
    %949 = vmatpush1.bf16.msra.mxu0 0
    %950 = vmatprep.subr.bf16.mxu0 0
    %951 = vmatpush1.bf16.msra.mxu0 0
    %952 = vmatprep.mubr.bf16.mxu0 0
    %953 = vmatmul.mubr.bf16.gmra.mrb[0].mxu0 %v915
    %v954 = vpop.f32.mrb[0].mxu0
    %v955 = vadd.f32 0.0, %v954
    %v956 = vpop.f32.mrb[0].mxu0
    %v957 = vpop.f32.mrb[0].mxu0
    %v958 = vpop.f32.mrb[0].mxu0
    %959 = vdwg.mxu0
    %960 = vrot.lane.b32.xlu0 %v203, 64
    %v961 = vpop.permute.xlu0 %960
    %v963 = vsel %vm209, %v716, 0
    %v966 = vsel %vm724, %v961, 0
    %968 = vmatprep.subr.bf16.mxu0 0
    %969 = vmatpush1.bf16.msra.mxu0 %v966
    %970 = vmatprep.subr.bf16.mxu0 0
    %971 = vmatpush1.bf16.msra.mxu0 0
    %972 = vmatprep.subr.bf16.mxu0 0
    %973 = vmatpush1.bf16.msra.mxu0 0
    %974 = vmatprep.subr.bf16.mxu0 0
    %975 = vmatpush1.bf16.msra.mxu0 0
    %976 = vmatprep.subr.bf16.mxu0 0
    %977 = vmatpush1.bf16.msra.mxu0 0
    %978 = vmatprep.subr.bf16.mxu0 0
    %979 = vmatpush1.bf16.msra.mxu0 0
    %980 = vmatprep.subr.bf16.mxu0 0
    %981 = vmatpush1.bf16.msra.mxu0 0
    %982 = vmatprep.subr.bf16.mxu0 0
    %983 = vmatpush1.bf16.msra.mxu0 0
    %984 = vmatprep.subr.bf16.mxu0 0
    %985 = vmatpush1.bf16.msra.mxu0 0
    %986 = vmatprep.subr.bf16.mxu0 0
    %987 = vmatpush1.bf16.msra.mxu0 0
    %988 = vmatprep.subr.bf16.mxu0 0
    %989 = vmatpush1.bf16.msra.mxu0 0
    %990 = vmatprep.subr.bf16.mxu0 0
    %991 = vmatpush1.bf16.msra.mxu0 0
    %992 = vmatprep.subr.bf16.mxu0 0
    %993 = vmatpush1.bf16.msra.mxu0 0
    %994 = vmatprep.subr.bf16.mxu0 0
    %995 = vmatpush1.bf16.msra.mxu0 0
    %996 = vmatprep.subr.bf16.mxu0 0
    %997 = vmatpush1.bf16.msra.mxu0 0
    %998 = vmatprep.subr.bf16.mxu0 0
    %999 = vmatpush1.bf16.msra.mxu0 0
    %1000 = vmatprep.mubr.bf16.mxu0 0
    %1001 = vmatmul.mubr.bf16.gmra.mrb[0].mxu0 %v963
    %v1002 = vpop.f32.mrb[0].mxu0
    %v1003 = vadd.f32 0.0, %v1002
    %v1004 = vpop.f32.mrb[0].mxu0
    %v1005 = vpop.f32.mrb[0].mxu0
    %v1006 = vpop.f32.mrb[0].mxu0
    %1007 = vdwg.mxu0
    %1008 = vrot.lane.b32.xlu0 %v204, 64
    %v1009 = vpop.permute.xlu0 %1008
    %v1011 = vsel %vm209, %v717, 0
    %v1014 = vsel %vm724, %v1009, 0
    %1016 = vmatprep.subr.bf16.mxu0 0
    %1017 = vmatpush1.bf16.msra.mxu0 %v1014
    %1018 = vmatprep.subr.bf16.mxu0 0
    %1019 = vmatpush1.bf16.msra.mxu0 0
    %1020 = vmatprep.subr.bf16.mxu0 0
    %1021 = vmatpush1.bf16.msra.mxu0 0
    %1022 = vmatprep.subr.bf16.mxu0 0
    %1023 = vmatpush1.bf16.msra.mxu0 0
    %1024 = vmatprep.subr.bf16.mxu0 0
    %1025 = vmatpush1.bf16.msra.mxu0 0
    %1026 = vmatprep.subr.bf16.mxu0 0
    %1027 = vmatpush1.bf16.msra.mxu0 0
    %1028 = vmatprep.subr.bf16.mxu0 0
    %1029 = vmatpush1.bf16.msra.mxu0 0
    %1030 = vmatprep.subr.bf16.mxu0 0
    %1031 = vmatpush1.bf16.msra.mxu0 0
    %1032 = vmatprep.subr.bf16.mxu0 0
    %1033 = vmatpush1.bf16.msra.mxu0 0
    %1034 = vmatprep.subr.bf16.mxu0 0
    %1035 = vmatpush1.bf16.msra.mxu0 0
    %1036 = vmatprep.subr.bf16.mxu0 0
    %1037 = vmatpush1.bf16.msra.mxu0 0
    %1038 = vmatprep.subr.bf16.mxu0 0
    %1039 = vmatpush1.bf16.msra.mxu0 0
    %1040 = vmatprep.subr.bf16.mxu0 0
    %1041 = vmatpush1.bf16.msra.mxu0 0
    %1042 = vmatprep.subr.bf16.mxu0 0
    %1043 = vmatpush1.bf16.msra.mxu0 0
    %1044 = vmatprep.subr.bf16.mxu0 0
    %1045 = vmatpush1.bf16.msra.mxu0 0
    %1046 = vmatprep.subr.bf16.mxu0 0
    %1047 = vmatpush1.bf16.msra.mxu0 0
    %1048 = vmatprep.mubr.bf16.mxu0 0
    %1049 = vmatmul.mubr.bf16.gmra.mrb[0].mxu0 %v1011
    %v1050 = vpop.f32.mrb[0].mxu0
    %v1051 = vadd.f32 0.0, %v1050
    %v1052 = vpop.f32.mrb[0].mxu0
    %v1053 = vpop.f32.mrb[0].mxu0
    %v1054 = vpop.f32.mrb[0].mxu0
    %1055 = vdwg.mxu0
    %1056 = vrot.lane.b32.xlu0 %v205, 64
    %v1057 = vpop.permute.xlu0 %1056
    %v1059 = vsel %vm209, %v718, 0
    %v1062 = vsel %vm724, %v1057, 0
    %1064 = vmatprep.subr.bf16.mxu0 0
    %1065 = vmatpush1.bf16.msra.mxu0 %v1062
    %1066 = vmatprep.subr.bf16.mxu0 0
    %1067 = vmatpush1.bf16.msra.mxu0 0
    %1068 = vmatprep.subr.bf16.mxu0 0
    %1069 = vmatpush1.bf16.msra.mxu0 0
    %1070 = vmatprep.subr.bf16.mxu0 0
    %1071 = vmatpush1.bf16.msra.mxu0 0
    %1072 = vmatprep.subr.bf16.mxu0 0
    %1073 = vmatpush1.bf16.msra.mxu0 0
    %1074 = vmatprep.subr.bf16.mxu0 0
    %1075 = vmatpush1.bf16.msra.mxu0 0
    %1076 = vmatprep.subr.bf16.mxu0 0
    %1077 = vmatpush1.bf16.msra.mxu0 0
    %1078 = vmatprep.subr.bf16.mxu0 0
    %1079 = vmatpush1.bf16.msra.mxu0 0
    %1080 = vmatprep.subr.bf16.mxu0 0
    %1081 = vmatpush1.bf16.msra.mxu0 0
    %1082 = vmatprep.subr.bf16.mxu0 0
    %1083 = vmatpush1.bf16.msra.mxu0 0
    %1084 = vmatprep.subr.bf16.mxu0 0
    %1085 = vmatpush1.bf16.msra.mxu0 0
    %1086 = vmatprep.subr.bf16.mxu0 0
    %1087 = vmatpush1.bf16.msra.mxu0 0
    %1088 = vmatprep.subr.bf16.mxu0 0
    %1089 = vmatpush1.bf16.msra.mxu0 0
    %1090 = vmatprep.subr.bf16.mxu0 0
    %1091 = vmatpush1.bf16.msra.mxu0 0
    %1092 = vmatprep.subr.bf16.mxu0 0
    %1093 = vmatpush1.bf16.msra.mxu0 0
    %1094 = vmatprep.subr.bf16.mxu0 0
    %1095 = vmatpush1.bf16.msra.mxu0 0
    %1096 = vmatprep.mubr.bf16.mxu0 0
    %1097 = vmatmul.mubr.bf16.gmra.mrb[0].mxu0 %v1059
    %v1098 = vpop.f32.mrb[0].mxu0
    %v1099 = vadd.f32 0.0, %v1098
    %v1100 = vpop.f32.mrb[0].mxu0
    %v1101 = vpop.f32.mrb[0].mxu0
    %v1102 = vpop.f32.mrb[0].mxu0
    %1103 = vdwg.mxu0
    %1105 = vrot.lane.b32.xlu0 %v811, 8
    %v1106 = vpop.permute.xlu0 %1105
    %1109 = vrot.lane.b32.xlu0 %v859, 16
    %v1110 = vpop.permute.xlu0 %1109
    %1113 = vrot.lane.b32.xlu0 %v907, 24
    %v1114 = vpop.permute.xlu0 %1113
    %v1116 = vsel %vm209, %v763, %v1106
    %vm1117 = vcmask 130048
    %v1118 = vsel %vm1117, %v1116, %v1110
    %vm1119 = vcmask 195584
    %v1120 = vsel %vm1119, %v1118, %v1114
    %1122 = vrot.lane.b32.xlu0 %v1003, 8
    %v1123 = vpop.permute.xlu0 %1122
    %1126 = vrot.lane.b32.xlu0 %v1051, 16
    %v1127 = vpop.permute.xlu0 %1126
    %1130 = vrot.lane.b32.xlu0 %v1099, 24
    %v1131 = vpop.permute.xlu0 %1130
    %v1133 = vsel %vm209, %v955, %v1123
    %v1134 = vsel %vm1117, %v1133, %v1127
    %v1135 = vsel %vm1119, %v1134, %v1131
    %v1136 = vpack.c.bf16 %v1135, %v1120
    %v1137 = vpack.c.bf16 %v108, %v107
    %v1138 = vpack.c.bf16 %v110, %v109
    %v1139 = vlaneseq
    %v1140 = vshrl.u32 %v1139, 7
    %v1141 = vsub.s32 0, %v1140
    %v1142 = vrot.slane %v124, %v1141
    %v1144 = vsel %vm58, %v1136, 0
    %1146 = vmatprep.subr.bf16.mxu0 0
    %1147 = vmatpush1.bf16.msra.mxu0 %v1137
    %1148 = vmatprep.subr.bf16.mxu0 0
    %1149 = vmatpush1.bf16.msra.mxu0 %v1138
    %1150 = vmatprep.subr.bf16.mxu0 0
    %1151 = vmatpush1.bf16.msra.mxu0 0
    %1152 = vmatprep.subr.bf16.mxu0 0
    %1153 = vmatpush1.bf16.msra.mxu0 0
    %1154 = vmatprep.subr.bf16.mxu0 0
    %1155 = vmatpush1.bf16.msra.mxu0 0
    %1156 = vmatprep.subr.bf16.mxu0 0
    %1157 = vmatpush1.bf16.msra.mxu0 0
    %1158 = vmatprep.subr.bf16.mxu0 0
    %1159 = vmatpush1.bf16.msra.mxu0 0
    %1160 = vmatprep.subr.bf16.mxu0 0
    %1161 = vmatpush1.bf16.msra.mxu0 0
    %1162 = vmatprep.subr.bf16.mxu0 0
    %1163 = vmatpush1.bf16.msra.mxu0 0
    %1164 = vmatprep.subr.bf16.mxu0 0
    %1165 = vmatpush1.bf16.msra.mxu0 0
    %1166 = vmatprep.subr.bf16.mxu0 0
    %1167 = vmatpush1.bf16.msra.mxu0 0
    %1168 = vmatprep.subr.bf16.mxu0 0
    %1169 = vmatpush1.bf16.msra.mxu0 0
    %1170 = vmatprep.subr.bf16.mxu0 0
    %1171 = vmatpush1.bf16.msra.mxu0 0
    %1172 = vmatprep.subr.bf16.mxu0 0
    %1173 = vmatpush1.bf16.msra.mxu0 0
    %1174 = vmatprep.subr.bf16.mxu0 0
    %1175 = vmatpush1.bf16.msra.mxu0 0
    %1176 = vmatprep.subr.bf16.mxu0 0
    %1177 = vmatpush1.bf16.msra.mxu0 0
    %1178 = vmatprep.mubr.bf16.mxu0 0
    %1179 = vmatmul.mubr.bf16.gmra.mrb[0].mxu0 %v1144
    %v1180 = vpop.f32.mrb[0].mxu0
    %v1181 = vadd.f32 %v1142, %v1180
    %v1182 = vpop.f32.mrb[0].mxu0
    %v1183 = vpop.f32.mrb[0].mxu0
    %v1184 = vadd.f32 %v1142, %v1183
    %v1185 = vpop.f32.mrb[0].mxu0
    %1186 = vdwg.mxu0
    %v1187 = vadd.f32 %v96, %v1181
    %v1188 = vadd.f32 %v97, %v1184
    %v1189 = vsel %vm58, %v1187, 0.0
    %1190 = vadd.xlane.f32.xlu0 %v1189
    %v1191 = vpop.xlane.xlu0 %1190
    %v1192 = vsel %vm58, %v1188, 0.0
    %1193 = vadd.xlane.f32.xlu0 %v1192
    %v1194 = vpop.xlane.xlu0 %1193
    %v1195 = vmul.f32 %v1191, %v65
    %v1196 = vmul.f32 %v1194, %v65
    %v1197 = vsub.f32 %v1187, %v1195
    %v1198 = vsub.f32 %v1188, %v1196
    %v1199 = vmul.f32 %v1197, %v1197
    %v1200 = vmul.f32 %v1198, %v1198
    %v1201 = vsel %vm58, %v1199, 0.0
    %1202 = vadd.xlane.f32.xlu0 %v1201
    %v1203 = vpop.xlane.xlu0 %1202
    %v1204 = vsel %vm58, %v1200, 0.0
    %1205 = vadd.xlane.f32.xlu0 %v1204
    %v1206 = vpop.xlane.xlu0 %1205
    %v1207 = vmul.f32 %v1203, %v65
    %v1208 = vmul.f32 %v1206, %v65
    %v1209 = vadd.f32 %v1207, 1e-12
    %v1210 = vadd.f32 %v1208, 1e-12
    %v1211 = vrsqrt.pop %v1209
    %v1212 = vrsqrt.pop %v1210
    %v1213 = vmul.f32 %v1197, %v1211
    %v1214 = vmul.f32 %v1198, %v1212
    %v1215 = vlaneseq
    %v1216 = vshrl.u32 %v1215, 7
    %v1217 = vsub.s32 1, %v1216
    %v1218 = vrot.slane %v124, %v1217
    %v1219 = vmul.f32 %v1213, %v1218
    %v1220 = vmul.f32 %v1214, %v1218
    %v1221 = vlaneseq
    %v1222 = vshrl.u32 %v1221, 7
    %v1223 = vsub.s32 2, %v1222
    %v1224 = vrot.slane %v124, %v1223
    %v1225 = vadd.f32 %v1219, %v1224
    %v1226 = vadd.f32 %v1220, %v1224
    %v1227 = vpack.c.bf16 %v1226, %v1225
    %v1228 = vpack.c.bf16 %v112, %v111
    %v1229 = vpack.c.bf16 %v114, %v113
    %v1231 = vlaneseq
    %v1232 = vshrl.u32 %v1231, 7
    %v1233 = vsub.s32 0, %v1232
    %v1234 = vrot.slane %v115, %v1233
    %v1237 = vsel %vm58, %v1227, 0
    %1239 = vmatprep.subr.bf16.mxu0 0
    %1240 = vmatpush1.bf16.msra.mxu0 %v1228
    %1241 = vmatprep.subr.bf16.mxu0 0
    %1242 = vmatpush1.bf16.msra.mxu0 %v1229
    %1243 = vmatprep.subr.bf16.mxu0 0
    %1244 = vmatpush1.bf16.msra.mxu0 0
    %1245 = vmatprep.subr.bf16.mxu0 0
    %1246 = vmatpush1.bf16.msra.mxu0 0
    %1247 = vmatprep.subr.bf16.mxu0 0
    %1248 = vmatpush1.bf16.msra.mxu0 0
    %1249 = vmatprep.subr.bf16.mxu0 0
    %1250 = vmatpush1.bf16.msra.mxu0 0
    %1251 = vmatprep.subr.bf16.mxu0 0
    %1252 = vmatpush1.bf16.msra.mxu0 0
    %1253 = vmatprep.subr.bf16.mxu0 0
    %1254 = vmatpush1.bf16.msra.mxu0 0
    %1255 = vmatprep.subr.bf16.mxu0 0
    %1256 = vmatpush1.bf16.msra.mxu0 0
    %1257 = vmatprep.subr.bf16.mxu0 0
    %1258 = vmatpush1.bf16.msra.mxu0 0
    %1259 = vmatprep.subr.bf16.mxu0 0
    %1260 = vmatpush1.bf16.msra.mxu0 0
    %1261 = vmatprep.subr.bf16.mxu0 0
    %1262 = vmatpush1.bf16.msra.mxu0 0
    %1263 = vmatprep.subr.bf16.mxu0 0
    %1264 = vmatpush1.bf16.msra.mxu0 0
    %1265 = vmatprep.subr.bf16.mxu0 0
    %1266 = vmatpush1.bf16.msra.mxu0 0
    %1267 = vmatprep.subr.bf16.mxu0 0
    %1268 = vmatpush1.bf16.msra.mxu0 0
    %1269 = vmatprep.subr.bf16.mxu0 0
    %1270 = vmatpush1.bf16.msra.mxu0 0
    %1271 = vmatprep.mubr.bf16.mxu0 0
    %1272 = vmatmul.mubr.bf16.gmra.mrb[0].mxu0 %v1237
    %v1273 = vpop.f32.mrb[0].mxu0
    %v1274 = vadd.f32 %v1234, %v1273
    %v1275 = vpop.f32.mrb[0].mxu0
    %v1276 = vpop.f32.mrb[0].mxu0
    %v1277 = vadd.f32 %v1234, %v1276
    %v1278 = vpop.f32.mrb[0].mxu0
    %1279 = vdwg.mxu0
    %v1280 = vmul.f32 %v1274, 0.5
    %v1281 = vmul.f32 %v1277, 0.5
    %v1282 = vmul.f32 %v1274, 0.044715
    %v1283 = vmul.f32 %v1277, 0.044715
    %v1284 = vmul.f32 %v1282, %v1274
    %v1285 = vmul.f32 %v1283, %v1277
    %v1286 = vmul.f32 %v1284, %v1274
    %v1287 = vmul.f32 %v1285, %v1277
    %v1288 = vadd.f32 %v1274, %v1286
    %v1289 = vadd.f32 %v1277, %v1287
    %v1290 = vmul.f32 %v1288, 0.7978846
    %v1291 = vmul.f32 %v1289, 0.7978846
    %v1292 = vtanh.pop %v1290
    %v1293 = vtanh.pop %v1291
    %v1294 = vadd.f32 %v1292, 1.0
    %v1295 = vadd.f32 %v1293, 1.0
    %v1296 = vmul.f32 %v1280, %v1294
    %v1297 = vmul.f32 %v1281, %v1295
    %v1298 = vpack.c.bf16 %v1297, %v1296
    %v1299 = vpack.c.bf16 %v117, %v116
    %v1300 = vpack.c.bf16 %v119, %v118
    %v1301 = vpack.c.bf16 %v121, %v120
    %v1302 = vpack.c.bf16 %v123, %v122
    %v1303 = vlaneseq
    %v1304 = vshrl.u32 %v1303, 7
    %v1305 = vsub.s32 3, %v1304
    %v1306 = vrot.slane %v124, %v1305
    %vm1307 = vcmask 523264
    %v1309 = vsel %vm1307, %v1298, 0
    %1311 = vmatprep.subr.bf16.mxu0 0
    %1312 = vmatpush1.bf16.msra.mxu0 %v1299
    %1313 = vmatprep.subr.bf16.mxu0 0
    %1314 = vmatpush1.bf16.msra.mxu0 %v1300
    %1315 = vmatprep.subr.bf16.mxu0 0
    %1316 = vmatpush1.bf16.msra.mxu0 %v1301
    %1317 = vmatprep.subr.bf16.mxu0 0
    %1318 = vmatpush1.bf16.msra.mxu0 %v1302
    %1319 = vmatprep.subr.bf16.mxu0 0
    %1320 = vmatpush1.bf16.msra.mxu0 0
    %1321 = vmatprep.subr.bf16.mxu0 0
    %1322 = vmatpush1.bf16.msra.mxu0 0
    %1323 = vmatprep.subr.bf16.mxu0 0
    %1324 = vmatpush1.bf16.msra.mxu0 0
    %1325 = vmatprep.subr.bf16.mxu0 0
    %1326 = vmatpush1.bf16.msra.mxu0 0
    %1327 = vmatprep.subr.bf16.mxu0 0
    %1328 = vmatpush1.bf16.msra.mxu0 0
    %1329 = vmatprep.subr.bf16.mxu0 0
    %1330 = vmatpush1.bf16.msra.mxu0 0
    %1331 = vmatprep.subr.bf16.mxu0 0
    %1332 = vmatpush1.bf16.msra.mxu0 0
    %1333 = vmatprep.subr.bf16.mxu0 0
    %1334 = vmatpush1.bf16.msra.mxu0 0
    %1335 = vmatprep.subr.bf16.mxu0 0
    %1336 = vmatpush1.bf16.msra.mxu0 0
    %1337 = vmatprep.subr.bf16.mxu0 0
    %1338 = vmatpush1.bf16.msra.mxu0 0
    %1339 = vmatprep.subr.bf16.mxu0 0
    %1340 = vmatpush1.bf16.msra.mxu0 0
    %1341 = vmatprep.subr.bf16.mxu0 0
    %1342 = vmatpush1.bf16.msra.mxu0 0
    %1343 = vmatprep.mubr.bf16.mxu0 0
    %1344 = vmatmul.mubr.bf16.gmra.mrb[0].mxu0 %v1309
    %v1345 = vpop.f32.mrb[0].mxu0
    %v1346 = vadd.f32 %v1306, %v1345
    %v1347 = vpop.f32.mrb[0].mxu0
    %v1348 = vpop.f32.mrb[0].mxu0
    %v1349 = vadd.f32 %v1306, %v1348
    %v1350 = vpop.f32.mrb[0].mxu0
    %1351 = vdwg.mxu0
    %v1352 = vadd.f32 %v1225, %v1346
    %v1353 = vadd.f32 %v1226, %v1349
    %v1354 = vsel %vm58, %v1352, 0.0
    %1355 = vadd.xlane.f32.xlu0 %v1354
    %v1356 = vpop.xlane.xlu0 %1355
    %v1357 = vsel %vm58, %v1353, 0.0
    %1358 = vadd.xlane.f32.xlu0 %v1357
    %v1359 = vpop.xlane.xlu0 %1358
    %v1360 = vmul.f32 %v1356, %v65
    %v1361 = vmul.f32 %v1359, %v65
    %v1362 = vsub.f32 %v1352, %v1360
    %v1363 = vsub.f32 %v1353, %v1361
    %v1364 = vmul.f32 %v1362, %v1362
    %v1365 = vmul.f32 %v1363, %v1363
    %v1366 = vsel %vm58, %v1364, 0.0
    %1367 = vadd.xlane.f32.xlu0 %v1366
    %v1368 = vpop.xlane.xlu0 %1367
    %v1369 = vsel %vm58, %v1365, 0.0
    %1370 = vadd.xlane.f32.xlu0 %v1369
    %v1371 = vpop.xlane.xlu0 %1370
    %v1372 = vmul.f32 %v1368, %v65
    %v1373 = vmul.f32 %v1371, %v65
    %v1374 = vadd.f32 %v1372, 1e-12
    %v1375 = vadd.f32 %v1373, 1e-12
    %v1376 = vrsqrt.pop %v1374
    %v1377 = vrsqrt.pop %v1375
    %v1378 = vmul.f32 %v1362, %v1376
    %v1379 = vmul.f32 %v1363, %v1377
    %v1380 = vlaneseq
    %v1381 = vshrl.u32 %v1380, 7
    %v1382 = vsub.s32 4, %v1381
    %v1383 = vrot.slane %v124, %v1382
    %v1384 = vmul.f32 %v1378, %v1383
    %v1385 = vmul.f32 %v1379, %v1383
    %v1386 = vlaneseq
    %v1387 = vshrl.u32 %v1386, 7
    %v1388 = vsub.s32 5, %v1387
    %v1389 = vrot.slane %v124, %v1388
    %v1390 = vadd.f32 %v1384, %v1389
    %v1391 = vadd.f32 %v1385, %v1389
    %s1392 = scalar_lea.vmem %s3, 32
    %v1393 = vld [vmem:[%s1392] sm:$0xff]
    %v1394 = vld [vmem:[%s1392 + $0x8] sm:$0xff]
    %v1395 = vld [vmem:[%s1392 + $0x10] sm:$0xff]
    %v1396 = vld [vmem:[%s1392 + $0x18] sm:$0xff]
    %s1397 = scalar_lea.vmem %s4, 1
    %v1398 = vld [vmem:[%s1397] sm:$0x1]
    %s1399 = scalar_lea.vmem %s5, 32
    %v1400 = vld [vmem:[%s1399] sm:$0xff]
    %v1401 = vld [vmem:[%s1399 + $0x8] sm:$0xff]
    %v1402 = vld [vmem:[%s1399 + $0x10] sm:$0xff]
    %v1403 = vld [vmem:[%s1399 + $0x18] sm:$0xff]
    %s1404 = scalar_lea.vmem %s6, 32
    %v1405 = vld [vmem:[%s1404] sm:$0xff]
    %v1406 = vld [vmem:[%s1404 + $0x8] sm:$0xff]
    %v1407 = vld [vmem:[%s1404 + $0x10] sm:$0xff]
    %v1408 = vld [vmem:[%s1404 + $0x18] sm:$0xff]
    %s1409 = scalar_lea.vmem %s7, 1
    %v1410 = vld [vmem:[%s1409] sm:$0x1]
    %s1411 = scalar_lea.vmem %s8, 64
    %v1412 = vld [vmem:[%s1411] sm:$0xff]
    %v1413 = vld [vmem:[%s1411 + $0x8] sm:$0xff]
    %v1414 = vld [vmem:[%s1411 + $0x10] sm:$0xff]
    %v1415 = vld [vmem:[%s1411 + $0x18] sm:$0xff]
    %v1416 = vld [vmem:[%s1411 + $0x20] sm:$0xff]
    %v1417 = vld [vmem:[%s1411 + $0x28] sm:$0xff]
    %v1418 = vld [vmem:[%s1411 + $0x30] sm:$0xff]
    %v1419 = vld [vmem:[%s1411 + $0x38] sm:$0xff]
    %s1420 = scalar_lea.vmem %s9, 8
    %v1421 = vld [vmem:[%s1420] sm:$0x3f]
    %v1422 = vpack.c.bf16 %v1391, %v1390
    %v1423 = vpack.c.bf16 %v1394, %v1393
    %v1424 = vpack.c.bf16 %v1396, %v1395
    %v1426 = vlaneseq
    %v1427 = vshrl.u32 %v1426, 7
    %v1428 = vsub.s32 0, %v1427
    %v1429 = vrot.slane %v1398, %v1428
    %v1432 = vsel %vm58, %v1422, 0
    %1434 = vmatprep.subr.bf16.mxu0 0
    %1435 = vmatpush1.bf16.msra.mxu0 %v1423
    %1436 = vmatprep.subr.bf16.mxu0 0
    %1437 = vmatpush1.bf16.msra.mxu0 %v1424
    %1438 = vmatprep.subr.bf16.mxu0 0
    %1439 = vmatpush1.bf16.msra.mxu0 0
    %1440 = vmatprep.subr.bf16.mxu0 0
    %1441 = vmatpush1.bf16.msra.mxu0 0
    %1442 = vmatprep.subr.bf16.mxu0 0
    %1443 = vmatpush1.bf16.msra.mxu0 0
    %1444 = vmatprep.subr.bf16.mxu0 0
    %1445 = vmatpush1.bf16.msra.mxu0 0
    %1446 = vmatprep.subr.bf16.mxu0 0
    %1447 = vmatpush1.bf16.msra.mxu0 0
    %1448 = vmatprep.subr.bf16.mxu0 0
    %1449 = vmatpush1.bf16.msra.mxu0 0
    %1450 = vmatprep.subr.bf16.mxu0 0
    %1451 = vmatpush1.bf16.msra.mxu0 0
    %1452 = vmatprep.subr.bf16.mxu0 0
    %1453 = vmatpush1.bf16.msra.mxu0 0
    %1454 = vmatprep.subr.bf16.mxu0 0
    %1455 = vmatpush1.bf16.msra.mxu0 0
    %1456 = vmatprep.subr.bf16.mxu0 0
    %1457 = vmatpush1.bf16.msra.mxu0 0
    %1458 = vmatprep.subr.bf16.mxu0 0
    %1459 = vmatpush1.bf16.msra.mxu0 0
    %1460 = vmatprep.subr.bf16.mxu0 0
    %1461 = vmatpush1.bf16.msra.mxu0 0
    %1462 = vmatprep.subr.bf16.mxu0 0
    %1463 = vmatpush1.bf16.msra.mxu0 0
    %1464 = vmatprep.subr.bf16.mxu0 0
    %1465 = vmatpush1.bf16.msra.mxu0 0
    %1466 = vmatprep.mubr.bf16.mxu0 0
    %1467 = vmatmul.mubr.bf16.gmra.mrb[0].mxu0 %v1432
    %v1468 = vpop.f32.mrb[0].mxu0
    %v1469 = vadd.f32 %v1429, %v1468
    %v1470 = vpop.f32.mrb[0].mxu0
    %v1471 = vpop.f32.mrb[0].mxu0
    %v1472 = vadd.f32 %v1429, %v1471
    %v1473 = vpop.f32.mrb[0].mxu0
    %1474 = vdwg.mxu0
    %1476 = vrot.lane.b32.xlu0 %v1469, 120
    %v1477 = vpop.permute.xlu0 %1476
    %1479 = vrot.lane.b32.xlu0 %v1469, 112
    %v1480 = vpop.permute.xlu0 %1479
    %1482 = vrot.lane.b32.xlu0 %v1469, 104
    %v1483 = vpop.permute.xlu0 %1482
    %1486 = vrot.lane.b32.xlu0 %v1472, 120
    %v1487 = vpop.permute.xlu0 %1486
    %1489 = vrot.lane.b32.xlu0 %v1472, 112
    %v1490 = vpop.permute.xlu0 %1489
    %1492 = vrot.lane.b32.xlu0 %v1472, 104
    %v1493 = vpop.permute.xlu0 %1492
    %v1495 = vpack.c.bf16 %v1469, %v1469
    %v1496 = vpack.c.bf16 %v1477, %v1477
    %v1497 = vpack.c.bf16 %v1480, %v1480
    %v1498 = vpack.c.bf16 %v1483, %v1483
    %v1499 = vpack.c.bf16 %v1472, %v1472
    %v1500 = vpack.c.bf16 %v1487, %v1487
    %v1501 = vpack.c.bf16 %v1490, %v1490
    %v1502 = vpack.c.bf16 %v1493, %v1493
    %1504 = vrot.lane.b32.xlu0 %v1495, 96
    %v1505 = vpop.permute.xlu0 %1504
    %v1507 = vsel %vm209, %v1495, 0
    %v1510 = vsel %vm209, %v1505, 0
    %1512 = vmatprep.subr.bf16.mxu0 0
    %1513 = vmatpush1.bf16.xpose.msra.mxu0 %v1510
    %1514 = vmatprep.subr.bf16.mxu0 0
    %1515 = vmatpush1.bf16.xpose.msra.mxu0 0
    %1516 = vmatprep.subr.bf16.mxu0 0
    %1517 = vmatpush1.bf16.xpose.msra.mxu0 0
    %1518 = vmatprep.subr.bf16.mxu0 0
    %1519 = vmatpush1.bf16.xpose.msra.mxu0 0
    %1520 = vmatprep.subr.bf16.mxu0 0
    %1521 = vmatpush1.bf16.xpose.msra.mxu0 0
    %1522 = vmatprep.subr.bf16.mxu0 0
    %1523 = vmatpush1.bf16.xpose.msra.mxu0 0
    %1524 = vmatprep.subr.bf16.mxu0 0
    %1525 = vmatpush1.bf16.xpose.msra.mxu0 0
    %1526 = vmatprep.subr.bf16.mxu0 0
    %1527 = vmatpush1.bf16.xpose.msra.mxu0 0
    %1528 = vmatprep.subr.bf16.mxu0 0
    %1529 = vmatpush1.bf16.xpose.msra.mxu0 0
    %1530 = vmatprep.subr.bf16.mxu0 0
    %1531 = vmatpush1.bf16.xpose.msra.mxu0 0
    %1532 = vmatprep.subr.bf16.mxu0 0
    %1533 = vmatpush1.bf16.xpose.msra.mxu0 0
    %1534 = vmatprep.subr.bf16.mxu0 0
    %1535 = vmatpush1.bf16.xpose.msra.mxu0 0
    %1536 = vmatprep.subr.bf16.mxu0 0
    %1537 = vmatpush1.bf16.xpose.msra.mxu0 0
    %1538 = vmatprep.subr.bf16.mxu0 0
    %1539 = vmatpush1.bf16.xpose.msra.mxu0 0
    %1540 = vmatprep.subr.bf16.mxu0 0
    %1541 = vmatpush1.bf16.xpose.msra.mxu0 0
    %1542 = vmatprep.subr.bf16.mxu0 0
    %1543 = vmatpush1.bf16.xpose.msra.mxu0 0
    %1544 = vmatprep.mubr.bf16.mxu0 0
    %1545 = vmatmul.mubr.bf16.gmra.mrb[0].mxu0 %v1507
    %v1546 = vpop.f32.mrb[0].mxu0
    %v1547 = vadd.f32 0.0, %v1546
    %v1548 = vpop.f32.mrb[0].mxu0
    %v1549 = vpop.f32.mrb[0].mxu0
    %v1550 = vpop.f32.mrb[0].mxu0
    %1551 = vdwg.mxu0
    %1553 = vrot.lane.b32.xlu0 %v1496, 96
    %v1554 = vpop.permute.xlu0 %1553
    %v1556 = vsel %vm209, %v1496, 0
    %v1559 = vsel %vm209, %v1554, 0
    %1561 = vmatprep.subr.bf16.mxu0 0
    %1562 = vmatpush1.bf16.xpose.msra.mxu0 %v1559
    %1563 = vmatprep.subr.bf16.mxu0 0
    %1564 = vmatpush1.bf16.xpose.msra.mxu0 0
    %1565 = vmatprep.subr.bf16.mxu0 0
    %1566 = vmatpush1.bf16.xpose.msra.mxu0 0
    %1567 = vmatprep.subr.bf16.mxu0 0
    %1568 = vmatpush1.bf16.xpose.msra.mxu0 0
    %1569 = vmatprep.subr.bf16.mxu0 0
    %1570 = vmatpush1.bf16.xpose.msra.mxu0 0
    %1571 = vmatprep.subr.bf16.mxu0 0
    %1572 = vmatpush1.bf16.xpose.msra.mxu0 0
    %1573 = vmatprep.subr.bf16.mxu0 0
    %1574 = vmatpush1.bf16.xpose.msra.mxu0 0
    %1575 = vmatprep.subr.bf16.mxu0 0
    %1576 = vmatpush1.bf16.xpose.msra.mxu0 0
    %1577 = vmatprep.subr.bf16.mxu0 0
    %1578 = vmatpush1.bf16.xpose.msra.mxu0 0
    %1579 = vmatprep.subr.bf16.mxu0 0
    %1580 = vmatpush1.bf16.xpose.msra.mxu0 0
    %1581 = vmatprep.subr.bf16.mxu0 0
    %1582 = vmatpush1.bf16.xpose.msra.mxu0 0
    %1583 = vmatprep.subr.bf16.mxu0 0
    %1584 = vmatpush1.bf16.xpose.msra.mxu0 0
    %1585 = vmatprep.subr.bf16.mxu0 0
    %1586 = vmatpush1.bf16.xpose.msra.mxu0 0
    %1587 = vmatprep.subr.bf16.mxu0 0
    %1588 = vmatpush1.bf16.xpose.msra.mxu0 0
    %1589 = vmatprep.subr.bf16.mxu0 0
    %1590 = vmatpush1.bf16.xpose.msra.mxu0 0
    %1591 = vmatprep.subr.bf16.mxu0 0
    %1592 = vmatpush1.bf16.xpose.msra.mxu0 0
    %1593 = vmatprep.mubr.bf16.mxu0 0
    %1594 = vmatmul.mubr.bf16.gmra.mrb[0].mxu0 %v1556
    %v1595 = vpop.f32.mrb[0].mxu0
    %v1596 = vadd.f32 0.0, %v1595
    %v1597 = vpop.f32.mrb[0].mxu0
    %v1598 = vpop.f32.mrb[0].mxu0
    %v1599 = vpop.f32.mrb[0].mxu0
    %1600 = vdwg.mxu0
    %1602 = vrot.lane.b32.xlu0 %v1497, 96
    %v1603 = vpop.permute.xlu0 %1602
    %v1605 = vsel %vm209, %v1497, 0
    %v1608 = vsel %vm209, %v1603, 0
    %1610 = vmatprep.subr.bf16.mxu0 0
    %1611 = vmatpush1.bf16.xpose.msra.mxu0 %v1608
    %1612 = vmatprep.subr.bf16.mxu0 0
    %1613 = vmatpush1.bf16.xpose.msra.mxu0 0
    %1614 = vmatprep.subr.bf16.mxu0 0
    %1615 = vmatpush1.bf16.xpose.msra.mxu0 0
    %1616 = vmatprep.subr.bf16.mxu0 0
    %1617 = vmatpush1.bf16.xpose.msra.mxu0 0
    %1618 = vmatprep.subr.bf16.mxu0 0
    %1619 = vmatpush1.bf16.xpose.msra.mxu0 0
    %1620 = vmatprep.subr.bf16.mxu0 0
    %1621 = vmatpush1.bf16.xpose.msra.mxu0 0
    %1622 = vmatprep.subr.bf16.mxu0 0
    %1623 = vmatpush1.bf16.xpose.msra.mxu0 0
    %1624 = vmatprep.subr.bf16.mxu0 0
    %1625 = vmatpush1.bf16.xpose.msra.mxu0 0
    %1626 = vmatprep.subr.bf16.mxu0 0
    %1627 = vmatpush1.bf16.xpose.msra.mxu0 0
    %1628 = vmatprep.subr.bf16.mxu0 0
    %1629 = vmatpush1.bf16.xpose.msra.mxu0 0
    %1630 = vmatprep.subr.bf16.mxu0 0
    %1631 = vmatpush1.bf16.xpose.msra.mxu0 0
    %1632 = vmatprep.subr.bf16.mxu0 0
    %1633 = vmatpush1.bf16.xpose.msra.mxu0 0
    %1634 = vmatprep.subr.bf16.mxu0 0
    %1635 = vmatpush1.bf16.xpose.msra.mxu0 0
    %1636 = vmatprep.subr.bf16.mxu0 0
    %1637 = vmatpush1.bf16.xpose.msra.mxu0 0
    %1638 = vmatprep.subr.bf16.mxu0 0
    %1639 = vmatpush1.bf16.xpose.msra.mxu0 0
    %1640 = vmatprep.subr.bf16.mxu0 0
    %1641 = vmatpush1.bf16.xpose.msra.mxu0 0
    %1642 = vmatprep.mubr.bf16.mxu0 0
    %1643 = vmatmul.mubr.bf16.gmra.mrb[0].mxu0 %v1605
    %v1644 = vpop.f32.mrb[0].mxu0
    %v1645 = vadd.f32 0.0, %v1644
    %v1646 = vpop.f32.mrb[0].mxu0
    %v1647 = vpop.f32.mrb[0].mxu0
    %v1648 = vpop.f32.mrb[0].mxu0
    %1649 = vdwg.mxu0
    %1651 = vrot.lane.b32.xlu0 %v1498, 96
    %v1652 = vpop.permute.xlu0 %1651
    %v1654 = vsel %vm209, %v1498, 0
    %v1657 = vsel %vm209, %v1652, 0
    %1659 = vmatprep.subr.bf16.mxu0 0
    %1660 = vmatpush1.bf16.xpose.msra.mxu0 %v1657
    %1661 = vmatprep.subr.bf16.mxu0 0
    %1662 = vmatpush1.bf16.xpose.msra.mxu0 0
    %1663 = vmatprep.subr.bf16.mxu0 0
    %1664 = vmatpush1.bf16.xpose.msra.mxu0 0
    %1665 = vmatprep.subr.bf16.mxu0 0
    %1666 = vmatpush1.bf16.xpose.msra.mxu0 0
    %1667 = vmatprep.subr.bf16.mxu0 0
    %1668 = vmatpush1.bf16.xpose.msra.mxu0 0
    %1669 = vmatprep.subr.bf16.mxu0 0
    %1670 = vmatpush1.bf16.xpose.msra.mxu0 0
    %1671 = vmatprep.subr.bf16.mxu0 0
    %1672 = vmatpush1.bf16.xpose.msra.mxu0 0
    %1673 = vmatprep.subr.bf16.mxu0 0
    %1674 = vmatpush1.bf16.xpose.msra.mxu0 0
    %1675 = vmatprep.subr.bf16.mxu0 0
    %1676 = vmatpush1.bf16.xpose.msra.mxu0 0
    %1677 = vmatprep.subr.bf16.mxu0 0
    %1678 = vmatpush1.bf16.xpose.msra.mxu0 0
    %1679 = vmatprep.subr.bf16.mxu0 0
    %1680 = vmatpush1.bf16.xpose.msra.mxu0 0
    %1681 = vmatprep.subr.bf16.mxu0 0
    %1682 = vmatpush1.bf16.xpose.msra.mxu0 0
    %1683 = vmatprep.subr.bf16.mxu0 0
    %1684 = vmatpush1.bf16.xpose.msra.mxu0 0
    %1685 = vmatprep.subr.bf16.mxu0 0
    %1686 = vmatpush1.bf16.xpose.msra.mxu0 0
    %1687 = vmatprep.subr.bf16.mxu0 0
    %1688 = vmatpush1.bf16.xpose.msra.mxu0 0
    %1689 = vmatprep.subr.bf16.mxu0 0
    %1690 = vmatpush1.bf16.xpose.msra.mxu0 0
    %1691 = vmatprep.mubr.bf16.mxu0 0
    %1692 = vmatmul.mubr.bf16.gmra.mrb[0].mxu0 %v1654
    %v1693 = vpop.f32.mrb[0].mxu0
    %v1694 = vadd.f32 0.0, %v1693
    %v1695 = vpop.f32.mrb[0].mxu0
    %v1696 = vpop.f32.mrb[0].mxu0
    %v1697 = vpop.f32.mrb[0].mxu0
    %1698 = vdwg.mxu0
    %1700 = vrot.lane.b32.xlu0 %v1499, 96
    %v1701 = vpop.permute.xlu0 %1700
    %v1703 = vsel %vm209, %v1499, 0
    %v1706 = vsel %vm209, %v1701, 0
    %1708 = vmatprep.subr.bf16.mxu0 0
    %1709 = vmatpush1.bf16.xpose.msra.mxu0 %v1706
    %1710 = vmatprep.subr.bf16.mxu0 0
    %1711 = vmatpush1.bf16.xpose.msra.mxu0 0
    %1712 = vmatprep.subr.bf16.mxu0 0
    %1713 = vmatpush1.bf16.xpose.msra.mxu0 0
    %1714 = vmatprep.subr.bf16.mxu0 0
    %1715 = vmatpush1.bf16.xpose.msra.mxu0 0
    %1716 = vmatprep.subr.bf16.mxu0 0
    %1717 = vmatpush1.bf16.xpose.msra.mxu0 0
    %1718 = vmatprep.subr.bf16.mxu0 0
    %1719 = vmatpush1.bf16.xpose.msra.mxu0 0
    %1720 = vmatprep.subr.bf16.mxu0 0
    %1721 = vmatpush1.bf16.xpose.msra.mxu0 0
    %1722 = vmatprep.subr.bf16.mxu0 0
    %1723 = vmatpush1.bf16.xpose.msra.mxu0 0
    %1724 = vmatprep.subr.bf16.mxu0 0
    %1725 = vmatpush1.bf16.xpose.msra.mxu0 0
    %1726 = vmatprep.subr.bf16.mxu0 0
    %1727 = vmatpush1.bf16.xpose.msra.mxu0 0
    %1728 = vmatprep.subr.bf16.mxu0 0
    %1729 = vmatpush1.bf16.xpose.msra.mxu0 0
    %1730 = vmatprep.subr.bf16.mxu0 0
    %1731 = vmatpush1.bf16.xpose.msra.mxu0 0
    %1732 = vmatprep.subr.bf16.mxu0 0
    %1733 = vmatpush1.bf16.xpose.msra.mxu0 0
    %1734 = vmatprep.subr.bf16.mxu0 0
    %1735 = vmatpush1.bf16.xpose.msra.mxu0 0
    %1736 = vmatprep.subr.bf16.mxu0 0
    %1737 = vmatpush1.bf16.xpose.msra.mxu0 0
    %1738 = vmatprep.subr.bf16.mxu0 0
    %1739 = vmatpush1.bf16.xpose.msra.mxu0 0
    %1740 = vmatprep.mubr.bf16.mxu0 0
    %1741 = vmatmul.mubr.bf16.gmra.mrb[0].mxu0 %v1703
    %v1742 = vpop.f32.mrb[0].mxu0
    %v1743 = vadd.f32 0.0, %v1742
    %v1744 = vpop.f32.mrb[0].mxu0
    %v1745 = vpop.f32.mrb[0].mxu0
    %v1746 = vpop.f32.mrb[0].mxu0
    %1747 = vdwg.mxu0
    %1749 = vrot.lane.b32.xlu0 %v1500, 96
    %v1750 = vpop.permute.xlu0 %1749
    %v1752 = vsel %vm209, %v1500, 0
    %v1755 = vsel %vm209, %v1750, 0
    %1757 = vmatprep.subr.bf16.mxu0 0
    %1758 = vmatpush1.bf16.xpose.msra.mxu0 %v1755
    %1759 = vmatprep.subr.bf16.mxu0 0
    %1760 = vmatpush1.bf16.xpose.msra.mxu0 0
    %1761 = vmatprep.subr.bf16.mxu0 0
    %1762 = vmatpush1.bf16.xpose.msra.mxu0 0
    %1763 = vmatprep.subr.bf16.mxu0 0
    %1764 = vmatpush1.bf16.xpose.msra.mxu0 0
    %1765 = vmatprep.subr.bf16.mxu0 0
    %1766 = vmatpush1.bf16.xpose.msra.mxu0 0
    %1767 = vmatprep.subr.bf16.mxu0 0
    %1768 = vmatpush1.bf16.xpose.msra.mxu0 0
    %1769 = vmatprep.subr.bf16.mxu0 0
    %1770 = vmatpush1.bf16.xpose.msra.mxu0 0
    %1771 = vmatprep.subr.bf16.mxu0 0
    %1772 = vmatpush1.bf16.xpose.msra.mxu0 0
    %1773 = vmatprep.subr.bf16.mxu0 0
    %1774 = vmatpush1.bf16.xpose.msra.mxu0 0
    %1775 = vmatprep.subr.bf16.mxu0 0
    %1776 = vmatpush1.bf16.xpose.msra.mxu0 0
    %1777 = vmatprep.subr.bf16.mxu0 0
    %1778 = vmatpush1.bf16.xpose.msra.mxu0 0
    %1779 = vmatprep.subr.bf16.mxu0 0
    %1780 = vmatpush1.bf16.xpose.msra.mxu0 0
    %1781 = vmatprep.subr.bf16.mxu0 0
    %1782 = vmatpush1.bf16.xpose.msra.mxu0 0
    %1783 = vmatprep.subr.bf16.mxu0 0
    %1784 = vmatpush1.bf16.xpose.msra.mxu0 0
    %1785 = vmatprep.subr.bf16.mxu0 0
    %1786 = vmatpush1.bf16.xpose.msra.mxu0 0
    %1787 = vmatprep.subr.bf16.mxu0 0
    %1788 = vmatpush1.bf16.xpose.msra.mxu0 0
    %1789 = vmatprep.mubr.bf16.mxu0 0
    %1790 = vmatmul.mubr.bf16.gmra.mrb[0].mxu0 %v1752
    %v1791 = vpop.f32.mrb[0].mxu0
    %v1792 = vadd.f32 0.0, %v1791
    %v1793 = vpop.f32.mrb[0].mxu0
    %v1794 = vpop.f32.mrb[0].mxu0
    %v1795 = vpop.f32.mrb[0].mxu0
    %1796 = vdwg.mxu0
    %1798 = vrot.lane.b32.xlu0 %v1501, 96
    %v1799 = vpop.permute.xlu0 %1798
    %v1801 = vsel %vm209, %v1501, 0
    %v1804 = vsel %vm209, %v1799, 0
    %1806 = vmatprep.subr.bf16.mxu0 0
    %1807 = vmatpush1.bf16.xpose.msra.mxu0 %v1804
    %1808 = vmatprep.subr.bf16.mxu0 0
    %1809 = vmatpush1.bf16.xpose.msra.mxu0 0
    %1810 = vmatprep.subr.bf16.mxu0 0
    %1811 = vmatpush1.bf16.xpose.msra.mxu0 0
    %1812 = vmatprep.subr.bf16.mxu0 0
    %1813 = vmatpush1.bf16.xpose.msra.mxu0 0
    %1814 = vmatprep.subr.bf16.mxu0 0
    %1815 = vmatpush1.bf16.xpose.msra.mxu0 0
    %1816 = vmatprep.subr.bf16.mxu0 0
    %1817 = vmatpush1.bf16.xpose.msra.mxu0 0
    %1818 = vmatprep.subr.bf16.mxu0 0
    %1819 = vmatpush1.bf16.xpose.msra.mxu0 0
    %1820 = vmatprep.subr.bf16.mxu0 0
    %1821 = vmatpush1.bf16.xpose.msra.mxu0 0
    %1822 = vmatprep.subr.bf16.mxu0 0
    %1823 = vmatpush1.bf16.xpose.msra.mxu0 0
    %1824 = vmatprep.subr.bf16.mxu0 0
    %1825 = vmatpush1.bf16.xpose.msra.mxu0 0
    %1826 = vmatprep.subr.bf16.mxu0 0
    %1827 = vmatpush1.bf16.xpose.msra.mxu0 0
    %1828 = vmatprep.subr.bf16.mxu0 0
    %1829 = vmatpush1.bf16.xpose.msra.mxu0 0
    %1830 = vmatprep.subr.bf16.mxu0 0
    %1831 = vmatpush1.bf16.xpose.msra.mxu0 0
    %1832 = vmatprep.subr.bf16.mxu0 0
    %1833 = vmatpush1.bf16.xpose.msra.mxu0 0
    %1834 = vmatprep.subr.bf16.mxu0 0
    %1835 = vmatpush1.bf16.xpose.msra.mxu0 0
    %1836 = vmatprep.subr.bf16.mxu0 0
    %1837 = vmatpush1.bf16.xpose.msra.mxu0 0
    %1838 = vmatprep.mubr.bf16.mxu0 0
    %1839 = vmatmul.mubr.bf16.gmra.mrb[0].mxu0 %v1801
    %v1840 = vpop.f32.mrb[0].mxu0
    %v1841 = vadd.f32 0.0, %v1840
    %v1842 = vpop.f32.mrb[0].mxu0
    %v1843 = vpop.f32.mrb[0].mxu0
    %v1844 = vpop.f32.mrb[0].mxu0
    %1845 = vdwg.mxu0
    %1847 = vrot.lane.b32.xlu0 %v1502, 96
    %v1848 = vpop.permute.xlu0 %1847
    %v1850 = vsel %vm209, %v1502, 0
    %v1853 = vsel %vm209, %v1848, 0
    %1855 = vmatprep.subr.bf16.mxu0 0
    %1856 = vmatpush1.bf16.xpose.msra.mxu0 %v1853
    %1857 = vmatprep.subr.bf16.mxu0 0
    %1858 = vmatpush1.bf16.xpose.msra.mxu0 0
    %1859 = vmatprep.subr.bf16.mxu0 0
    %1860 = vmatpush1.bf16.xpose.msra.mxu0 0
    %1861 = vmatprep.subr.bf16.mxu0 0
    %1862 = vmatpush1.bf16.xpose.msra.mxu0 0
    %1863 = vmatprep.subr.bf16.mxu0 0
    %1864 = vmatpush1.bf16.xpose.msra.mxu0 0
    %1865 = vmatprep.subr.bf16.mxu0 0
    %1866 = vmatpush1.bf16.xpose.msra.mxu0 0
    %1867 = vmatprep.subr.bf16.mxu0 0
    %1868 = vmatpush1.bf16.xpose.msra.mxu0 0
    %1869 = vmatprep.subr.bf16.mxu0 0
    %1870 = vmatpush1.bf16.xpose.msra.mxu0 0
    %1871 = vmatprep.subr.bf16.mxu0 0
    %1872 = vmatpush1.bf16.xpose.msra.mxu0 0
    %1873 = vmatprep.subr.bf16.mxu0 0
    %1874 = vmatpush1.bf16.xpose.msra.mxu0 0
    %1875 = vmatprep.subr.bf16.mxu0 0
    %1876 = vmatpush1.bf16.xpose.msra.mxu0 0
    %1877 = vmatprep.subr.bf16.mxu0 0
    %1878 = vmatpush1.bf16.xpose.msra.mxu0 0
    %1879 = vmatprep.subr.bf16.mxu0 0
    %1880 = vmatpush1.bf16.xpose.msra.mxu0 0
    %1881 = vmatprep.subr.bf16.mxu0 0
    %1882 = vmatpush1.bf16.xpose.msra.mxu0 0
    %1883 = vmatprep.subr.bf16.mxu0 0
    %1884 = vmatpush1.bf16.xpose.msra.mxu0 0
    %1885 = vmatprep.subr.bf16.mxu0 0
    %1886 = vmatpush1.bf16.xpose.msra.mxu0 0
    %1887 = vmatprep.mubr.bf16.mxu0 0
    %1888 = vmatmul.mubr.bf16.gmra.mrb[0].mxu0 %v1850
    %v1889 = vpop.f32.mrb[0].mxu0
    %v1890 = vadd.f32 0.0, %v1889
    %v1891 = vpop.f32.mrb[0].mxu0
    %v1892 = vpop.f32.mrb[0].mxu0
    %v1893 = vpop.f32.mrb[0].mxu0
    %1894 = vdwg.mxu0
    %v1895 = vmul.f32 %v1547, 0.35355338
    %v1896 = vmul.f32 %v1596, 0.35355338
    %v1897 = vmul.f32 %v1645, 0.35355338
    %v1898 = vmul.f32 %v1694, 0.35355338
    %v1899 = vmul.f32 %v1743, 0.35355338
    %v1900 = vmul.f32 %v1792, 0.35355338
    %v1901 = vmul.f32 %v1841, 0.35355338
    %v1902 = vmul.f32 %v1890, 0.35355338
    %v1903 = vadd.f32 %v1895, %v610
    %v1904 = vadd.f32 %v1896, %v610
    %v1905 = vadd.f32 %v1897, %v610
    %v1906 = vadd.f32 %v1898, %v610
    %v1907 = vadd.f32 %v1899, %v614
    %v1908 = vadd.f32 %v1900, %v614
    %v1909 = vadd.f32 %v1901, %v614
    %v1910 = vadd.f32 %v1902, %v614
    %v1911 = vsel %vm209, %v1903, -inf
    %1912 = vmax.xlane.f32.xlu0 %v1911
    %v1913 = vpop.xlane.xlu0 %1912
    %v1914 = vsel %vm209, %v1904, -inf
    %1915 = vmax.xlane.f32.xlu0 %v1914
    %v1916 = vpop.xlane.xlu0 %1915
    %v1917 = vsel %vm209, %v1905, -inf
    %1918 = vmax.xlane.f32.xlu0 %v1917
    %v1919 = vpop.xlane.xlu0 %1918
    %v1920 = vsel %vm209, %v1906, -inf
    %1921 = vmax.xlane.f32.xlu0 %v1920
    %v1922 = vpop.xlane.xlu0 %1921
    %v1923 = vsel %vm209, %v1907, -inf
    %1924 = vmax.xlane.f32.xlu0 %v1923
    %v1925 = vpop.xlane.xlu0 %1924
    %v1926 = vsel %vm209, %v1908, -inf
    %1927 = vmax.xlane.f32.xlu0 %v1926
    %v1928 = vpop.xlane.xlu0 %1927
    %v1929 = vsel %vm209, %v1909, -inf
    %1930 = vmax.xlane.f32.xlu0 %v1929
    %v1931 = vpop.xlane.xlu0 %1930
    %v1932 = vsel %vm209, %v1910, -inf
    %1933 = vmax.xlane.f32.xlu0 %v1932
    %v1934 = vpop.xlane.xlu0 %1933
    %v1935 = vsub.f32 %v1903, %v1913
    %v1936 = vsub.f32 %v1904, %v1916
    %v1937 = vsub.f32 %v1905, %v1919
    %v1938 = vsub.f32 %v1906, %v1922
    %v1939 = vsub.f32 %v1907, %v1925
    %v1940 = vsub.f32 %v1908, %v1928
    %v1941 = vsub.f32 %v1909, %v1931
    %v1942 = vsub.f32 %v1910, %v1934
    %v1943 = vmul.f32 %v1935, 1.442695
    %v1944 = vpow.pop %v1943
    %v1945 = vmul.f32 %v1936, 1.442695
    %v1946 = vpow.pop %v1945
    %v1947 = vmul.f32 %v1937, 1.442695
    %v1948 = vpow.pop %v1947
    %v1949 = vmul.f32 %v1938, 1.442695
    %v1950 = vpow.pop %v1949
    %v1951 = vmul.f32 %v1939, 1.442695
    %v1952 = vpow.pop %v1951
    %v1953 = vmul.f32 %v1940, 1.442695
    %v1954 = vpow.pop %v1953
    %v1955 = vmul.f32 %v1941, 1.442695
    %v1956 = vpow.pop %v1955
    %v1957 = vmul.f32 %v1942, 1.442695
    %v1958 = vpow.pop %v1957
    %v1959 = vsel %vm209, %v1944, 0.0
    %1960 = vadd.xlane.f32.xlu0 %v1959
    %v1961 = vpop.xlane.xlu0 %1960
    %v1962 = vsel %vm209, %v1946, 0.0
    %1963 = vadd.xlane.f32.xlu0 %v1962
    %v1964 = vpop.xlane.xlu0 %1963
    %v1965 = vsel %vm209, %v1948, 0.0
    %1966 = vadd.xlane.f32.xlu0 %v1965
    %v1967 = vpop.xlane.xlu0 %1966
    %v1968 = vsel %vm209, %v1950, 0.0
    %1969 = vadd.xlane.f32.xlu0 %v1968
    %v1970 = vpop.xlane.xlu0 %1969
    %v1971 = vsel %vm209, %v1952, 0.0
    %1972 = vadd.xlane.f32.xlu0 %v1971
    %v1973 = vpop.xlane.xlu0 %1972
    %v1974 = vsel %vm209, %v1954, 0.0
    %1975 = vadd.xlane.f32.xlu0 %v1974
    %v1976 = vpop.xlane.xlu0 %1975
    %v1977 = vsel %vm209, %v1956, 0.0
    %1978 = vadd.xlane.f32.xlu0 %v1977
    %v1979 = vpop.xlane.xlu0 %1978
    %v1980 = vsel %vm209, %v1958, 0.0
    %1981 = vadd.xlane.f32.xlu0 %v1980
    %v1982 = vpop.xlane.xlu0 %1981
    %v1983 = vrcp.pop %v1961
    %v1984 = vrcp.pop %v1964
    %v1985 = vrcp.pop %v1967
    %v1986 = vrcp.pop %v1970
    %v1987 = vrcp.pop %v1973
    %v1988 = vrcp.pop %v1976
    %v1989 = vrcp.pop %v1979
    %v1990 = vrcp.pop %v1982
    %v1991 = vmul.f32 %v1944, %v1983
    %v1992 = vmul.f32 %v1946, %v1984
    %v1993 = vmul.f32 %v1948, %v1985
    %v1994 = vmul.f32 %v1950, %v1986
    %v1995 = vmul.f32 %v1952, %v1987
    %v1996 = vmul.f32 %v1954, %v1988
    %v1997 = vmul.f32 %v1956, %v1989
    %v1998 = vmul.f32 %v1958, %v1990
    %v1999 = vpack.c.bf16 %v1991, %v1991
    %v2000 = vpack.c.bf16 %v1992, %v1992
    %v2001 = vpack.c.bf16 %v1993, %v1993
    %v2002 = vpack.c.bf16 %v1994, %v1994
    %v2003 = vpack.c.bf16 %v1995, %v1995
    %v2004 = vpack.c.bf16 %v1996, %v1996
    %v2005 = vpack.c.bf16 %v1997, %v1997
    %v2006 = vpack.c.bf16 %v1998, %v1998
    %2007 = vrot.lane.b32.xlu0 %v1495, 64
    %v2008 = vpop.permute.xlu0 %2007
    %v2010 = vsel %vm209, %v1999, 0
    %v2013 = vsel %vm724, %v2008, 0
    %2015 = vmatprep.subr.bf16.mxu0 0
    %2016 = vmatpush1.bf16.msra.mxu0 %v2013
    %2017 = vmatprep.subr.bf16.mxu0 0
    %2018 = vmatpush1.bf16.msra.mxu0 0
    %2019 = vmatprep.subr.bf16.mxu0 0
    %2020 = vmatpush1.bf16.msra.mxu0 0
    %2021 = vmatprep.subr.bf16.mxu0 0
    %2022 = vmatpush1.bf16.msra.mxu0 0
    %2023 = vmatprep.subr.bf16.mxu0 0
    %2024 = vmatpush1.bf16.msra.mxu0 0
    %2025 = vmatprep.subr.bf16.mxu0 0
    %2026 = vmatpush1.bf16.msra.mxu0 0
    %2027 = vmatprep.subr.bf16.mxu0 0
    %2028 = vmatpush1.bf16.msra.mxu0 0
    %2029 = vmatprep.subr.bf16.mxu0 0
    %2030 = vmatpush1.bf16.msra.mxu0 0
    %2031 = vmatprep.subr.bf16.mxu0 0
    %2032 = vmatpush1.bf16.msra.mxu0 0
    %2033 = vmatprep.subr.bf16.mxu0 0
    %2034 = vmatpush1.bf16.msra.mxu0 0
    %2035 = vmatprep.subr.bf16.mxu0 0
    %2036 = vmatpush1.bf16.msra.mxu0 0
    %2037 = vmatprep.subr.bf16.mxu0 0
    %2038 = vmatpush1.bf16.msra.mxu0 0
    %2039 = vmatprep.subr.bf16.mxu0 0
    %2040 = vmatpush1.bf16.msra.mxu0 0
    %2041 = vmatprep.subr.bf16.mxu0 0
    %2042 = vmatpush1.bf16.msra.mxu0 0
    %2043 = vmatprep.subr.bf16.mxu0 0
    %2044 = vmatpush1.bf16.msra.mxu0 0
    %2045 = vmatprep.subr.bf16.mxu0 0
    %2046 = vmatpush1.bf16.msra.mxu0 0
    %2047 = vmatprep.mubr.bf16.mxu0 0
    %2048 = vmatmul.mubr.bf16.gmra.mrb[0].mxu0 %v2010
    %v2049 = vpop.f32.mrb[0].mxu0
    %v2050 = vadd.f32 0.0, %v2049
    %v2051 = vpop.f32.mrb[0].mxu0
    %v2052 = vpop.f32.mrb[0].mxu0
    %v2053 = vpop.f32.mrb[0].mxu0
    %2054 = vdwg.mxu0
    %2055 = vrot.lane.b32.xlu0 %v1496, 64
    %v2056 = vpop.permute.xlu0 %2055
    %v2058 = vsel %vm209, %v2000, 0
    %v2061 = vsel %vm724, %v2056, 0
    %2063 = vmatprep.subr.bf16.mxu0 0
    %2064 = vmatpush1.bf16.msra.mxu0 %v2061
    %2065 = vmatprep.subr.bf16.mxu0 0
    %2066 = vmatpush1.bf16.msra.mxu0 0
    %2067 = vmatprep.subr.bf16.mxu0 0
    %2068 = vmatpush1.bf16.msra.mxu0 0
    %2069 = vmatprep.subr.bf16.mxu0 0
    %2070 = vmatpush1.bf16.msra.mxu0 0
    %2071 = vmatprep.subr.bf16.mxu0 0
    %2072 = vmatpush1.bf16.msra.mxu0 0
    %2073 = vmatprep.subr.bf16.mxu0 0
    %2074 = vmatpush1.bf16.msra.mxu0 0
    %2075 = vmatprep.subr.bf16.mxu0 0
    %2076 = vmatpush1.bf16.msra.mxu0 0
    %2077 = vmatprep.subr.bf16.mxu0 0
    %2078 = vmatpush1.bf16.msra.mxu0 0
    %2079 = vmatprep.subr.bf16.mxu0 0
    %2080 = vmatpush1.bf16.msra.mxu0 0
    %2081 = vmatprep.subr.bf16.mxu0 0
    %2082 = vmatpush1.bf16.msra.mxu0 0
    %2083 = vmatprep.subr.bf16.mxu0 0
    %2084 = vmatpush1.bf16.msra.mxu0 0
    %2085 = vmatprep.subr.bf16.mxu0 0
    %2086 = vmatpush1.bf16.msra.mxu0 0
    %2087 = vmatprep.subr.bf16.mxu0 0
    %2088 = vmatpush1.bf16.msra.mxu0 0
    %2089 = vmatprep.subr.bf16.mxu0 0
    %2090 = vmatpush1.bf16.msra.mxu0 0
    %2091 = vmatprep.subr.bf16.mxu0 0
    %2092 = vmatpush1.bf16.msra.mxu0 0
    %2093 = vmatprep.subr.bf16.mxu0 0
    %2094 = vmatpush1.bf16.msra.mxu0 0
    %2095 = vmatprep.mubr.bf16.mxu0 0
    %2096 = vmatmul.mubr.bf16.gmra.mrb[0].mxu0 %v2058
    %v2097 = vpop.f32.mrb[0].mxu0
    %v2098 = vadd.f32 0.0, %v2097
    %v2099 = vpop.f32.mrb[0].mxu0
    %v2100 = vpop.f32.mrb[0].mxu0
    %v2101 = vpop.f32.mrb[0].mxu0
    %2102 = vdwg.mxu0
    %2103 = vrot.lane.b32.xlu0 %v1497, 64
    %v2104 = vpop.permute.xlu0 %2103
    %v2106 = vsel %vm209, %v2001, 0
    %v2109 = vsel %vm724, %v2104, 0
    %2111 = vmatprep.subr.bf16.mxu0 0
    %2112 = vmatpush1.bf16.msra.mxu0 %v2109
    %2113 = vmatprep.subr.bf16.mxu0 0
    %2114 = vmatpush1.bf16.msra.mxu0 0
    %2115 = vmatprep.subr.bf16.mxu0 0
    %2116 = vmatpush1.bf16.msra.mxu0 0
    %2117 = vmatprep.subr.bf16.mxu0 0
    %2118 = vmatpush1.bf16.msra.mxu0 0
    %2119 = vmatprep.subr.bf16.mxu0 0
    %2120 = vmatpush1.bf16.msra.mxu0 0
    %2121 = vmatprep.subr.bf16.mxu0 0
    %2122 = vmatpush1.bf16.msra.mxu0 0
    %2123 = vmatprep.subr.bf16.mxu0 0
    %2124 = vmatpush1.bf16.msra.mxu0 0
    %2125 = vmatprep.subr.bf16.mxu0 0
    %2126 = vmatpush1.bf16.msra.mxu0 0
    %2127 = vmatprep.subr.bf16.mxu0 0
    %2128 = vmatpush1.bf16.msra.mxu0 0
    %2129 = vmatprep.subr.bf16.mxu0 0
    %2130 = vmatpush1.bf16.msra.mxu0 0
    %2131 = vmatprep.subr.bf16.mxu0 0
    %2132 = vmatpush1.bf16.msra.mxu0 0
    %2133 = vmatprep.subr.bf16.mxu0 0
    %2134 = vmatpush1.bf16.msra.mxu0 0
    %2135 = vmatprep.subr.bf16.mxu0 0
    %2136 = vmatpush1.bf16.msra.mxu0 0
    %2137 = vmatprep.subr.bf16.mxu0 0
    %2138 = vmatpush1.bf16.msra.mxu0 0
    %2139 = vmatprep.subr.bf16.mxu0 0
    %2140 = vmatpush1.bf16.msra.mxu0 0
    %2141 = vmatprep.subr.bf16.mxu0 0
    %2142 = vmatpush1.bf16.msra.mxu0 0
    %2143 = vmatprep.mubr.bf16.mxu0 0
    %2144 = vmatmul.mubr.bf16.gmra.mrb[0].mxu0 %v2106
    %v2145 = vpop.f32.mrb[0].mxu0
    %v2146 = vadd.f32 0.0, %v2145
    %v2147 = vpop.f32.mrb[0].mxu0
    %v2148 = vpop.f32.mrb[0].mxu0
    %v2149 = vpop.f32.mrb[0].mxu0
    %2150 = vdwg.mxu0
    %2151 = vrot.lane.b32.xlu0 %v1498, 64
    %v2152 = vpop.permute.xlu0 %2151
    %v2154 = vsel %vm209, %v2002, 0
    %v2157 = vsel %vm724, %v2152, 0
    %2159 = vmatprep.subr.bf16.mxu0 0
    %2160 = vmatpush1.bf16.msra.mxu0 %v2157
    %2161 = vmatprep.subr.bf16.mxu0 0
    %2162 = vmatpush1.bf16.msra.mxu0 0
    %2163 = vmatprep.subr.bf16.mxu0 0
    %2164 = vmatpush1.bf16.msra.mxu0 0
    %2165 = vmatprep.subr.bf16.mxu0 0
    %2166 = vmatpush1.bf16.msra.mxu0 0
    %2167 = vmatprep.subr.bf16.mxu0 0
    %2168 = vmatpush1.bf16.msra.mxu0 0
    %2169 = vmatprep.subr.bf16.mxu0 0
    %2170 = vmatpush1.bf16.msra.mxu0 0
    %2171 = vmatprep.subr.bf16.mxu0 0
    %2172 = vmatpush1.bf16.msra.mxu0 0
    %2173 = vmatprep.subr.bf16.mxu0 0
    %2174 = vmatpush1.bf16.msra.mxu0 0
    %2175 = vmatprep.subr.bf16.mxu0 0
    %2176 = vmatpush1.bf16.msra.mxu0 0
    %2177 = vmatprep.subr.bf16.mxu0 0
    %2178 = vmatpush1.bf16.msra.mxu0 0
    %2179 = vmatprep.subr.bf16.mxu0 0
    %2180 = vmatpush1.bf16.msra.mxu0 0
    %2181 = vmatprep.subr.bf16.mxu0 0
    %2182 = vmatpush1.bf16.msra.mxu0 0
    %2183 = vmatprep.subr.bf16.mxu0 0
    %2184 = vmatpush1.bf16.msra.mxu0 0
    %2185 = vmatprep.subr.bf16.mxu0 0
    %2186 = vmatpush1.bf16.msra.mxu0 0
    %2187 = vmatprep.subr.bf16.mxu0 0
    %2188 = vmatpush1.bf16.msra.mxu0 0
    %2189 = vmatprep.subr.bf16.mxu0 0
    %2190 = vmatpush1.bf16.msra.mxu0 0
    %2191 = vmatprep.mubr.bf16.mxu0 0
    %2192 = vmatmul.mubr.bf16.gmra.mrb[0].mxu0 %v2154
    %v2193 = vpop.f32.mrb[0].mxu0
    %v2194 = vadd.f32 0.0, %v2193
    %v2195 = vpop.f32.mrb[0].mxu0
    %v2196 = vpop.f32.mrb[0].mxu0
    %v2197 = vpop.f32.mrb[0].mxu0
    %2198 = vdwg.mxu0
    %2199 = vrot.lane.b32.xlu0 %v1499, 64
    %v2200 = vpop.permute.xlu0 %2199
    %v2202 = vsel %vm209, %v2003, 0
    %v2205 = vsel %vm724, %v2200, 0
    %2207 = vmatprep.subr.bf16.mxu0 0
    %2208 = vmatpush1.bf16.msra.mxu0 %v2205
    %2209 = vmatprep.subr.bf16.mxu0 0
    %2210 = vmatpush1.bf16.msra.mxu0 0
    %2211 = vmatprep.subr.bf16.mxu0 0
    %2212 = vmatpush1.bf16.msra.mxu0 0
    %2213 = vmatprep.subr.bf16.mxu0 0
    %2214 = vmatpush1.bf16.msra.mxu0 0
    %2215 = vmatprep.subr.bf16.mxu0 0
    %2216 = vmatpush1.bf16.msra.mxu0 0
    %2217 = vmatprep.subr.bf16.mxu0 0
    %2218 = vmatpush1.bf16.msra.mxu0 0
    %2219 = vmatprep.subr.bf16.mxu0 0
    %2220 = vmatpush1.bf16.msra.mxu0 0
    %2221 = vmatprep.subr.bf16.mxu0 0
    %2222 = vmatpush1.bf16.msra.mxu0 0
    %2223 = vmatprep.subr.bf16.mxu0 0
    %2224 = vmatpush1.bf16.msra.mxu0 0
    %2225 = vmatprep.subr.bf16.mxu0 0
    %2226 = vmatpush1.bf16.msra.mxu0 0
    %2227 = vmatprep.subr.bf16.mxu0 0
    %2228 = vmatpush1.bf16.msra.mxu0 0
    %2229 = vmatprep.subr.bf16.mxu0 0
    %2230 = vmatpush1.bf16.msra.mxu0 0
    %2231 = vmatprep.subr.bf16.mxu0 0
    %2232 = vmatpush1.bf16.msra.mxu0 0
    %2233 = vmatprep.subr.bf16.mxu0 0
    %2234 = vmatpush1.bf16.msra.mxu0 0
    %2235 = vmatprep.subr.bf16.mxu0 0
    %2236 = vmatpush1.bf16.msra.mxu0 0
    %2237 = vmatprep.subr.bf16.mxu0 0
    %2238 = vmatpush1.bf16.msra.mxu0 0
    %2239 = vmatprep.mubr.bf16.mxu0 0
    %2240 = vmatmul.mubr.bf16.gmra.mrb[0].mxu0 %v2202
    %v2241 = vpop.f32.mrb[0].mxu0
    %v2242 = vadd.f32 0.0, %v2241
    %v2243 = vpop.f32.mrb[0].mxu0
    %v2244 = vpop.f32.mrb[0].mxu0
    %v2245 = vpop.f32.mrb[0].mxu0
    %2246 = vdwg.mxu0
    %2247 = vrot.lane.b32.xlu0 %v1500, 64
    %v2248 = vpop.permute.xlu0 %2247
    %v2250 = vsel %vm209, %v2004, 0
    %v2253 = vsel %vm724, %v2248, 0
    %2255 = vmatprep.subr.bf16.mxu0 0
    %2256 = vmatpush1.bf16.msra.mxu0 %v2253
    %2257 = vmatprep.subr.bf16.mxu0 0
    %2258 = vmatpush1.bf16.msra.mxu0 0
    %2259 = vmatprep.subr.bf16.mxu0 0
    %2260 = vmatpush1.bf16.msra.mxu0 0
    %2261 = vmatprep.subr.bf16.mxu0 0
    %2262 = vmatpush1.bf16.msra.mxu0 0
    %2263 = vmatprep.subr.bf16.mxu0 0
    %2264 = vmatpush1.bf16.msra.mxu0 0
    %2265 = vmatprep.subr.bf16.mxu0 0
    %2266 = vmatpush1.bf16.msra.mxu0 0
    %2267 = vmatprep.subr.bf16.mxu0 0
    %2268 = vmatpush1.bf16.msra.mxu0 0
    %2269 = vmatprep.subr.bf16.mxu0 0
    %2270 = vmatpush1.bf16.msra.mxu0 0
    %2271 = vmatprep.subr.bf16.mxu0 0
    %2272 = vmatpush1.bf16.msra.mxu0 0
    %2273 = vmatprep.subr.bf16.mxu0 0
    %2274 = vmatpush1.bf16.msra.mxu0 0
    %2275 = vmatprep.subr.bf16.mxu0 0
    %2276 = vmatpush1.bf16.msra.mxu0 0
    %2277 = vmatprep.subr.bf16.mxu0 0
    %2278 = vmatpush1.bf16.msra.mxu0 0
    %2279 = vmatprep.subr.bf16.mxu0 0
    %2280 = vmatpush1.bf16.msra.mxu0 0
    %2281 = vmatprep.subr.bf16.mxu0 0
    %2282 = vmatpush1.bf16.msra.mxu0 0
    %2283 = vmatprep.subr.bf16.mxu0 0
    %2284 = vmatpush1.bf16.msra.mxu0 0
    %2285 = vmatprep.subr.bf16.mxu0 0
    %2286 = vmatpush1.bf16.msra.mxu0 0
    %2287 = vmatprep.mubr.bf16.mxu0 0
    %2288 = vmatmul.mubr.bf16.gmra.mrb[0].mxu0 %v2250
    %v2289 = vpop.f32.mrb[0].mxu0
    %v2290 = vadd.f32 0.0, %v2289
    %v2291 = vpop.f32.mrb[0].mxu0
    %v2292 = vpop.f32.mrb[0].mxu0
    %v2293 = vpop.f32.mrb[0].mxu0
    %2294 = vdwg.mxu0
    %2295 = vrot.lane.b32.xlu0 %v1501, 64
    %v2296 = vpop.permute.xlu0 %2295
    %v2298 = vsel %vm209, %v2005, 0
    %v2301 = vsel %vm724, %v2296, 0
    %2303 = vmatprep.subr.bf16.mxu0 0
    %2304 = vmatpush1.bf16.msra.mxu0 %v2301
    %2305 = vmatprep.subr.bf16.mxu0 0
    %2306 = vmatpush1.bf16.msra.mxu0 0
    %2307 = vmatprep.subr.bf16.mxu0 0
    %2308 = vmatpush1.bf16.msra.mxu0 0
    %2309 = vmatprep.subr.bf16.mxu0 0
    %2310 = vmatpush1.bf16.msra.mxu0 0
    %2311 = vmatprep.subr.bf16.mxu0 0
    %2312 = vmatpush1.bf16.msra.mxu0 0
    %2313 = vmatprep.subr.bf16.mxu0 0
    %2314 = vmatpush1.bf16.msra.mxu0 0
    %2315 = vmatprep.subr.bf16.mxu0 0
    %2316 = vmatpush1.bf16.msra.mxu0 0
    %2317 = vmatprep.subr.bf16.mxu0 0
    %2318 = vmatpush1.bf16.msra.mxu0 0
    %2319 = vmatprep.subr.bf16.mxu0 0
    %2320 = vmatpush1.bf16.msra.mxu0 0
    %2321 = vmatprep.subr.bf16.mxu0 0
    %2322 = vmatpush1.bf16.msra.mxu0 0
    %2323 = vmatprep.subr.bf16.mxu0 0
    %2324 = vmatpush1.bf16.msra.mxu0 0
    %2325 = vmatprep.subr.bf16.mxu0 0
    %2326 = vmatpush1.bf16.msra.mxu0 0
    %2327 = vmatprep.subr.bf16.mxu0 0
    %2328 = vmatpush1.bf16.msra.mxu0 0
    %2329 = vmatprep.subr.bf16.mxu0 0
    %2330 = vmatpush1.bf16.msra.mxu0 0
    %2331 = vmatprep.subr.bf16.mxu0 0
    %2332 = vmatpush1.bf16.msra.mxu0 0
    %2333 = vmatprep.subr.bf16.mxu0 0
    %2334 = vmatpush1.bf16.msra.mxu0 0
    %2335 = vmatprep.mubr.bf16.mxu0 0
    %2336 = vmatmul.mubr.bf16.gmra.mrb[0].mxu0 %v2298
    %v2337 = vpop.f32.mrb[0].mxu0
    %v2338 = vadd.f32 0.0, %v2337
    %v2339 = vpop.f32.mrb[0].mxu0
    %v2340 = vpop.f32.mrb[0].mxu0
    %v2341 = vpop.f32.mrb[0].mxu0
    %2342 = vdwg.mxu0
    %2343 = vrot.lane.b32.xlu0 %v1502, 64
    %v2344 = vpop.permute.xlu0 %2343
    %v2346 = vsel %vm209, %v2006, 0
    %v2349 = vsel %vm724, %v2344, 0
    %2351 = vmatprep.subr.bf16.mxu0 0
    %2352 = vmatpush1.bf16.msra.mxu0 %v2349
    %2353 = vmatprep.subr.bf16.mxu0 0
    %2354 = vmatpush1.bf16.msra.mxu0 0
    %2355 = vmatprep.subr.bf16.mxu0 0
    %2356 = vmatpush1.bf16.msra.mxu0 0
    %2357 = vmatprep.subr.bf16.mxu0 0
    %2358 = vmatpush1.bf16.msra.mxu0 0
    %2359 = vmatprep.subr.bf16.mxu0 0
    %2360 = vmatpush1.bf16.msra.mxu0 0
    %2361 = vmatprep.subr.bf16.mxu0 0
    %2362 = vmatpush1.bf16.msra.mxu0 0
    %2363 = vmatprep.subr.bf16.mxu0 0
    %2364 = vmatpush1.bf16.msra.mxu0 0
    %2365 = vmatprep.subr.bf16.mxu0 0
    %2366 = vmatpush1.bf16.msra.mxu0 0
    %2367 = vmatprep.subr.bf16.mxu0 0
    %2368 = vmatpush1.bf16.msra.mxu0 0
    %2369 = vmatprep.subr.bf16.mxu0 0
    %2370 = vmatpush1.bf16.msra.mxu0 0
    %2371 = vmatprep.subr.bf16.mxu0 0
    %2372 = vmatpush1.bf16.msra.mxu0 0
    %2373 = vmatprep.subr.bf16.mxu0 0
    %2374 = vmatpush1.bf16.msra.mxu0 0
    %2375 = vmatprep.subr.bf16.mxu0 0
    %2376 = vmatpush1.bf16.msra.mxu0 0
    %2377 = vmatprep.subr.bf16.mxu0 0
    %2378 = vmatpush1.bf16.msra.mxu0 0
    %2379 = vmatprep.subr.bf16.mxu0 0
    %2380 = vmatpush1.bf16.msra.mxu0 0
    %2381 = vmatprep.subr.bf16.mxu0 0
    %2382 = vmatpush1.bf16.msra.mxu0 0
    %2383 = vmatprep.mubr.bf16.mxu0 0
    %2384 = vmatmul.mubr.bf16.gmra.mrb[0].mxu0 %v2346
    %v2385 = vpop.f32.mrb[0].mxu0
    %v2386 = vadd.f32 0.0, %v2385
    %v2387 = vpop.f32.mrb[0].mxu0
    %v2388 = vpop.f32.mrb[0].mxu0
    %v2389 = vpop.f32.mrb[0].mxu0
    %2390 = vdwg.mxu0
    %2392 = vrot.lane.b32.xlu0 %v2098, 8
    %v2393 = vpop.permute.xlu0 %2392
    %2396 = vrot.lane.b32.xlu0 %v2146, 16
    %v2397 = vpop.permute.xlu0 %2396
    %2400 = vrot.lane.b32.xlu0 %v2194, 24
    %v2401 = vpop.permute.xlu0 %2400
    %v2403 = vsel %vm209, %v2050, %v2393
    %v2404 = vsel %vm1117, %v2403, %v2397
    %v2405 = vsel %vm1119, %v2404, %v2401
    %2407 = vrot.lane.b32.xlu0 %v2290, 8
    %v2408 = vpop.permute.xlu0 %2407
    %2411 = vrot.lane.b32.xlu0 %v2338, 16
    %v2412 = vpop.permute.xlu0 %2411
    %2415 = vrot.lane.b32.xlu0 %v2386, 24
    %v2416 = vpop.permute.xlu0 %2415
    %v2418 = vsel %vm209, %v2242, %v2408
    %v2419 = vsel %vm1117, %v2418, %v2412
    %v2420 = vsel %vm1119, %v2419, %v2416
    %v2421 = vpack.c.bf16 %v2420, %v2405
    %v2422 = vpack.c.bf16 %v1401, %v1400
    %v2423 = vpack.c.bf16 %v1403, %v1402
    %v2424 = vlaneseq
    %v2425 = vshrl.u32 %v2424, 7
    %v2426 = vsub.s32 0, %v2425
    %v2427 = vrot.slane %v1421, %v2426
    %v2429 = vsel %vm58, %v2421, 0
    %2431 = vmatprep.subr.bf16.mxu0 0
    %2432 = vmatpush1.bf16.msra.mxu0 %v2422
    %2433 = vmatprep.subr.bf16.mxu0 0
    %2434 = vmatpush1.bf16.msra.mxu0 %v2423
    %2435 = vmatprep.subr.bf16.mxu0 0
    %2436 = vmatpush1.bf16.msra.mxu0 0
    %2437 = vmatprep.subr.bf16.mxu0 0
    %2438 = vmatpush1.bf16.msra.mxu0 0
    %2439 = vmatprep.subr.bf16.mxu0 0
    %2440 = vmatpush1.bf16.msra.mxu0 0
    %2441 = vmatprep.subr.bf16.mxu0 0
    %2442 = vmatpush1.bf16.msra.mxu0 0
    %2443 = vmatprep.subr.bf16.mxu0 0
    %2444 = vmatpush1.bf16.msra.mxu0 0
    %2445 = vmatprep.subr.bf16.mxu0 0
    %2446 = vmatpush1.bf16.msra.mxu0 0
    %2447 = vmatprep.subr.bf16.mxu0 0
    %2448 = vmatpush1.bf16.msra.mxu0 0
    %2449 = vmatprep.subr.bf16.mxu0 0
    %2450 = vmatpush1.bf16.msra.mxu0 0
    %2451 = vmatprep.subr.bf16.mxu0 0
    %2452 = vmatpush1.bf16.msra.mxu0 0
    %2453 = vmatprep.subr.bf16.mxu0 0
    %2454 = vmatpush1.bf16.msra.mxu0 0
    %2455 = vmatprep.subr.bf16.mxu0 0
    %2456 = vmatpush1.bf16.msra.mxu0 0
    %2457 = vmatprep.subr.bf16.mxu0 0
    %2458 = vmatpush1.bf16.msra.mxu0 0
    %2459 = vmatprep.subr.bf16.mxu0 0
    %2460 = vmatpush1.bf16.msra.mxu0 0
    %2461 = vmatprep.subr.bf16.mxu0 0
    %2462 = vmatpush1.bf16.msra.mxu0 0
    %2463 = vmatprep.mubr.bf16.mxu0 0
    %2464 = vmatmul.mubr.bf16.gmra.mrb[0].mxu0 %v2429
    %v2465 = vpop.f32.mrb[0].mxu0
    %v2466 = vadd.f32 %v2427, %v2465
    %v2467 = vpop.f32.mrb[0].mxu0
    %v2468 = vpop.f32.mrb[0].mxu0
    %v2469 = vadd.f32 %v2427, %v2468
    %v2470 = vpop.f32.mrb[0].mxu0
    %2471 = vdwg.mxu0
    %v2472 = vadd.f32 %v1390, %v2466
    %v2473 = vadd.f32 %v1391, %v2469
    %v2474 = vsel %vm58, %v2472, 0.0
    %2475 = vadd.xlane.f32.xlu0 %v2474
    %v2476 = vpop.xlane.xlu0 %2475
    %v2477 = vsel %vm58, %v2473, 0.0
    %2478 = vadd.xlane.f32.xlu0 %v2477
    %v2479 = vpop.xlane.xlu0 %2478
    %v2480 = vmul.f32 %v2476, %v65
    %v2481 = vmul.f32 %v2479, %v65
    %v2482 = vsub.f32 %v2472, %v2480
    %v2483 = vsub.f32 %v2473, %v2481
    %v2484 = vmul.f32 %v2482, %v2482
    %v2485 = vmul.f32 %v2483, %v2483
    %v2486 = vsel %vm58, %v2484, 0.0
    %2487 = vadd.xlane.f32.xlu0 %v2486
    %v2488 = vpop.xlane.xlu0 %2487
    %v2489 = vsel %vm58, %v2485, 0.0
    %2490 = vadd.xlane.f32.xlu0 %v2489
    %v2491 = vpop.xlane.xlu0 %2490
    %v2492 = vmul.f32 %v2488, %v65
    %v2493 = vmul.f32 %v2491, %v65
    %v2494 = vadd.f32 %v2492, 1e-12
    %v2495 = vadd.f32 %v2493, 1e-12
    %v2496 = vrsqrt.pop %v2494
    %v2497 = vrsqrt.pop %v2495
    %v2498 = vmul.f32 %v2482, %v2496
    %v2499 = vmul.f32 %v2483, %v2497
    %v2500 = vlaneseq
    %v2501 = vshrl.u32 %v2500, 7
    %v2502 = vsub.s32 1, %v2501
    %v2503 = vrot.slane %v1421, %v2502
    %v2504 = vmul.f32 %v2498, %v2503
    %v2505 = vmul.f32 %v2499, %v2503
    %v2506 = vlaneseq
    %v2507 = vshrl.u32 %v2506, 7
    %v2508 = vsub.s32 2, %v2507
    %v2509 = vrot.slane %v1421, %v2508
    %v2510 = vadd.f32 %v2504, %v2509
    %v2511 = vadd.f32 %v2505, %v2509
    %v2512 = vpack.c.bf16 %v2511, %v2510
    %v2513 = vpack.c.bf16 %v1406, %v1405
    %v2514 = vpack.c.bf16 %v1408, %v1407
    %v2516 = vlaneseq
    %v2517 = vshrl.u32 %v2516, 7
    %v2518 = vsub.s32 0, %v2517
    %v2519 = vrot.slane %v1410, %v2518
    %v2522 = vsel %vm58, %v2512, 0
    %2524 = vmatprep.subr.bf16.mxu0 0
    %2525 = vmatpush1.bf16.msra.mxu0 %v2513
    %2526 = vmatprep.subr.bf16.mxu0 0
    %2527 = vmatpush1.bf16.msra.mxu0 %v2514
    %2528 = vmatprep.subr.bf16.mxu0 0
    %2529 = vmatpush1.bf16.msra.mxu0 0
    %2530 = vmatprep.subr.bf16.mxu0 0
    %2531 = vmatpush1.bf16.msra.mxu0 0
    %2532 = vmatprep.subr.bf16.mxu0 0
    %2533 = vmatpush1.bf16.msra.mxu0 0
    %2534 = vmatprep.subr.bf16.mxu0 0
    %2535 = vmatpush1.bf16.msra.mxu0 0
    %2536 = vmatprep.subr.bf16.mxu0 0
    %2537 = vmatpush1.bf16.msra.mxu0 0
    %2538 = vmatprep.subr.bf16.mxu0 0
    %2539 = vmatpush1.bf16.msra.mxu0 0
    %2540 = vmatprep.subr.bf16.mxu0 0
    %2541 = vmatpush1.bf16.msra.mxu0 0
    %2542 = vmatprep.subr.bf16.mxu0 0
    %2543 = vmatpush1.bf16.msra.mxu0 0
    %2544 = vmatprep.subr.bf16.mxu0 0
    %2545 = vmatpush1.bf16.msra.mxu0 0
    %2546 = vmatprep.subr.bf16.mxu0 0
    %2547 = vmatpush1.bf16.msra.mxu0 0
    %2548 = vmatprep.subr.bf16.mxu0 0
    %2549 = vmatpush1.bf16.msra.mxu0 0
    %2550 = vmatprep.subr.bf16.mxu0 0
    %2551 = vmatpush1.bf16.msra.mxu0 0
    %2552 = vmatprep.subr.bf16.mxu0 0
    %2553 = vmatpush1.bf16.msra.mxu0 0
    %2554 = vmatprep.subr.bf16.mxu0 0
    %2555 = vmatpush1.bf16.msra.mxu0 0
    %2556 = vmatprep.mubr.bf16.mxu0 0
    %2557 = vmatmul.mubr.bf16.gmra.mrb[0].mxu0 %v2522
    %v2558 = vpop.f32.mrb[0].mxu0
    %v2559 = vadd.f32 %v2519, %v2558
    %v2560 = vpop.f32.mrb[0].mxu0
    %v2561 = vpop.f32.mrb[0].mxu0
    %v2562 = vadd.f32 %v2519, %v2561
    %v2563 = vpop.f32.mrb[0].mxu0
    %2564 = vdwg.mxu0
    %v2565 = vmul.f32 %v2559, 0.5
    %v2566 = vmul.f32 %v2562, 0.5
    %v2567 = vmul.f32 %v2559, 0.044715
    %v2568 = vmul.f32 %v2562, 0.044715
    %v2569 = vmul.f32 %v2567, %v2559
    %v2570 = vmul.f32 %v2568, %v2562
    %v2571 = vmul.f32 %v2569, %v2559
    %v2572 = vmul.f32 %v2570, %v2562
    %v2573 = vadd.f32 %v2559, %v2571
    %v2574 = vadd.f32 %v2562, %v2572
    %v2575 = vmul.f32 %v2573, 0.7978846
    %v2576 = vmul.f32 %v2574, 0.7978846
    %v2577 = vtanh.pop %v2575
    %v2578 = vtanh.pop %v2576
    %v2579 = vadd.f32 %v2577, 1.0
    %v2580 = vadd.f32 %v2578, 1.0
    %v2581 = vmul.f32 %v2565, %v2579
    %v2582 = vmul.f32 %v2566, %v2580
    %v2583 = vpack.c.bf16 %v2582, %v2581
    %v2584 = vpack.c.bf16 %v1413, %v1412
    %v2585 = vpack.c.bf16 %v1415, %v1414
    %v2586 = vpack.c.bf16 %v1417, %v1416
    %v2587 = vpack.c.bf16 %v1419, %v1418
    %v2588 = vlaneseq
    %v2589 = vshrl.u32 %v2588, 7
    %v2590 = vsub.s32 3, %v2589
    %v2591 = vrot.slane %v1421, %v2590
    %v2593 = vsel %vm1307, %v2583, 0
    %2595 = vmatprep.subr.bf16.mxu0 0
    %2596 = vmatpush1.bf16.msra.mxu0 %v2584
    %2597 = vmatprep.subr.bf16.mxu0 0
    %2598 = vmatpush1.bf16.msra.mxu0 %v2585
    %2599 = vmatprep.subr.bf16.mxu0 0
    %2600 = vmatpush1.bf16.msra.mxu0 %v2586
    %2601 = vmatprep.subr.bf16.mxu0 0
    %2602 = vmatpush1.bf16.msra.mxu0 %v2587
    %2603 = vmatprep.subr.bf16.mxu0 0
    %2604 = vmatpush1.bf16.msra.mxu0 0
    %2605 = vmatprep.subr.bf16.mxu0 0
    %2606 = vmatpush1.bf16.msra.mxu0 0
    %2607 = vmatprep.subr.bf16.mxu0 0
    %2608 = vmatpush1.bf16.msra.mxu0 0
    %2609 = vmatprep.subr.bf16.mxu0 0
    %2610 = vmatpush1.bf16.msra.mxu0 0
    %2611 = vmatprep.subr.bf16.mxu0 0
    %2612 = vmatpush1.bf16.msra.mxu0 0
    %2613 = vmatprep.subr.bf16.mxu0 0
    %2614 = vmatpush1.bf16.msra.mxu0 0
    %2615 = vmatprep.subr.bf16.mxu0 0
    %2616 = vmatpush1.bf16.msra.mxu0 0
    %2617 = vmatprep.subr.bf16.mxu0 0
    %2618 = vmatpush1.bf16.msra.mxu0 0
    %2619 = vmatprep.subr.bf16.mxu0 0
    %2620 = vmatpush1.bf16.msra.mxu0 0
    %2621 = vmatprep.subr.bf16.mxu0 0
    %2622 = vmatpush1.bf16.msra.mxu0 0
    %2623 = vmatprep.subr.bf16.mxu0 0
    %2624 = vmatpush1.bf16.msra.mxu0 0
    %2625 = vmatprep.subr.bf16.mxu0 0
    %2626 = vmatpush1.bf16.msra.mxu0 0
    %2627 = vmatprep.mubr.bf16.mxu0 0
    %2628 = vmatmul.mubr.bf16.gmra.mrb[0].mxu0 %v2593
    %v2629 = vpop.f32.mrb[0].mxu0
    %v2630 = vadd.f32 %v2591, %v2629
    %v2631 = vpop.f32.mrb[0].mxu0
    %v2632 = vpop.f32.mrb[0].mxu0
    %v2633 = vadd.f32 %v2591, %v2632
    %v2634 = vpop.f32.mrb[0].mxu0
    %2635 = vdwg.mxu0
    %v2636 = vadd.f32 %v2510, %v2630
    %v2637 = vadd.f32 %v2511, %v2633
    %v2638 = vsel %vm58, %v2636, 0.0
    %2639 = vadd.xlane.f32.xlu0 %v2638
    %v2640 = vpop.xlane.xlu0 %2639
    %v2641 = vsel %vm58, %v2637, 0.0
    %2642 = vadd.xlane.f32.xlu0 %v2641
    %v2643 = vpop.xlane.xlu0 %2642
    %v2644 = vmul.f32 %v2640, %v65
    %v2645 = vmul.f32 %v2643, %v65
    %v2646 = vsub.f32 %v2636, %v2644
    %v2647 = vsub.f32 %v2637, %v2645
    %v2648 = vmul.f32 %v2646, %v2646
    %v2649 = vmul.f32 %v2647, %v2647
    %v2650 = vsel %vm58, %v2648, 0.0
    %2651 = vadd.xlane.f32.xlu0 %v2650
    %v2652 = vpop.xlane.xlu0 %2651
    %v2653 = vsel %vm58, %v2649, 0.0
    %2654 = vadd.xlane.f32.xlu0 %v2653
    %v2655 = vpop.xlane.xlu0 %2654
    %v2656 = vmul.f32 %v2652, %v65
    %v2657 = vmul.f32 %v2655, %v65
    %v2658 = vadd.f32 %v2656, 1e-12
    %v2659 = vadd.f32 %v2657, 1e-12
    %v2660 = vrsqrt.pop %v2658
    %v2661 = vrsqrt.pop %v2659
    %v2662 = vmul.f32 %v2646, %v2660
    %v2663 = vmul.f32 %v2647, %v2661
    %v2664 = vlaneseq
    %v2665 = vshrl.u32 %v2664, 7
    %v2666 = vsub.s32 4, %v2665
    %v2667 = vrot.slane %v1421, %v2666
    %v2668 = vmul.f32 %v2662, %v2667
    %v2669 = vmul.f32 %v2663, %v2667
    %v2670 = vlaneseq
    %v2671 = vshrl.u32 %v2670, 7
    %v2672 = vsub.s32 5, %v2671
    %v2673 = vrot.slane %v1421, %v2672
    %v2674 = vadd.f32 %v2668, %v2673
    %v2675 = vadd.f32 %v2669, %v2673
    %v2677 = vrot.slane %v2675, 7
    %vm2679 = vcmask 1040384
    %v2680 = vsel %vm2679, %v2674, %v2677
    %v2681 = vld [vmem:[%s11] sm:$0x7]
    %v2682 = vld [vmem:[%s13] sm:$0x7]
    %v2683 = vpack.c.bf16 %v2680, %v2680
    %v2684 = vld [vmem:[%s10] sm:$0xff]
    %v2685 = vld [vmem:[%s10 + $0x8] sm:$0xff]
    %v2686 = vld [vmem:[%s10 + $0x10] sm:$0xff]
    %v2687 = vld [vmem:[%s10 + $0x18] sm:$0xff]
    %v2688 = vpack.c.bf16 %v2685, %v2684
    %v2689 = vpack.c.bf16 %v2687, %v2686
    %v2690 = vlaneseq
    %v2691 = vshrl.u32 %v2690, 7
    %v2692 = vsub.s32 0, %v2691
    %v2693 = vrot.slane %v2681, %v2692
    %v2695 = vsel %vm58, %v2683, 0
    %2697 = vmatprep.subr.bf16.mxu0 0
    %2698 = vmatpush1.bf16.msra.mxu0 %v2688
    %2699 = vmatprep.subr.bf16.mxu0 0
    %2700 = vmatpush1.bf16.msra.mxu0 %v2689
    %2701 = vmatprep.subr.bf16.mxu0 0
    %2702 = vmatpush1.bf16.msra.mxu0 0
    %2703 = vmatprep.subr.bf16.mxu0 0
    %2704 = vmatpush1.bf16.msra.mxu0 0
    %2705 = vmatprep.subr.bf16.mxu0 0
    %2706 = vmatpush1.bf16.msra.mxu0 0
    %2707 = vmatprep.subr.bf16.mxu0 0
    %2708 = vmatpush1.bf16.msra.mxu0 0
    %2709 = vmatprep.subr.bf16.mxu0 0
    %2710 = vmatpush1.bf16.msra.mxu0 0
    %2711 = vmatprep.subr.bf16.mxu0 0
    %2712 = vmatpush1.bf16.msra.mxu0 0
    %2713 = vmatprep.subr.bf16.mxu0 0
    %2714 = vmatpush1.bf16.msra.mxu0 0
    %2715 = vmatprep.subr.bf16.mxu0 0
    %2716 = vmatpush1.bf16.msra.mxu0 0
    %2717 = vmatprep.subr.bf16.mxu0 0
    %2718 = vmatpush1.bf16.msra.mxu0 0
    %2719 = vmatprep.subr.bf16.mxu0 0
    %2720 = vmatpush1.bf16.msra.mxu0 0
    %2721 = vmatprep.subr.bf16.mxu0 0
    %2722 = vmatpush1.bf16.msra.mxu0 0
    %2723 = vmatprep.subr.bf16.mxu0 0
    %2724 = vmatpush1.bf16.msra.mxu0 0
    %2725 = vmatprep.subr.bf16.mxu0 0
    %2726 = vmatpush1.bf16.msra.mxu0 0
    %2727 = vmatprep.subr.bf16.mxu0 0
    %2728 = vmatpush1.bf16.msra.mxu0 0
    %2729 = vmatprep.mubr.bf16.mxu0 0
    %2730 = vmatmul.mubr.bf16.gmra.mrb[0].mxu0 %v2695
    %v2731 = vpop.f32.mrb[0].mxu0
    %v2732 = vadd.f32 %v2693, %v2731
    %v2733 = vpop.f32.mrb[0].mxu0
    %v2734 = vpop.f32.mrb[0].mxu0
    %v2735 = vpop.f32.mrb[0].mxu0
    %2736 = vdwg.mxu0
    %vm2737 = vcmask 1041408
    %v2738 = vsel %vm2737, %v2732, 0.0
    %2739 = vadd.xlane.f32.xlu0 %v2738
    %v2740 = vpop.xlane.xlu0 %2739
    %v2741 = vrcp.pop 128.0
    %v2742 = vmul.f32 %v2740, %v2741
    %v2743 = vsub.f32 %v2732, %v2742
    %v2744 = vmul.f32 %v2743, %v2743
    %v2745 = vsel %vm2737, %v2744, 0.0
    %2746 = vadd.xlane.f32.xlu0 %v2745
    %v2747 = vpop.xlane.xlu0 %2746
    %v2748 = vmul.f32 %v2747, %v2741
    %v2749 = vadd.f32 %v2748, 1e-05
    %v2750 = vrsqrt.pop %v2749
    %v2751 = vmul.f32 %v2743, %v2750
    %v2752 = vlaneseq
    %v2753 = vshrl.u32 %v2752, 7
    %v2754 = vsub.s32 1, %v2753
    %v2755 = vrot.slane %v2681, %v2754
    %v2756 = vmul.f32 %v2751, %v2755
    %v2757 = vlaneseq
    %v2758 = vshrl.u32 %v2757, 7
    %v2759 = vsub.s32 2, %v2758
    %v2760 = vrot.slane %v2681, %v2759
    %v2761 = vadd.f32 %v2756, %v2760
    %v2762 = vmul.f32 %v2761, 0.5
    %v2763 = vmul.f32 %v2761, 0.044715
    %v2764 = vmul.f32 %v2763, %v2761
    %v2765 = vmul.f32 %v2764, %v2761
    %v2766 = vadd.f32 %v2761, %v2765
    %v2767 = vmul.f32 %v2766, 0.7978846
    %v2768 = vtanh.pop %v2767
    %v2769 = vadd.f32 %v2768, 1.0
    %v2770 = vmul.f32 %v2762, %v2769
    %v2771 = vpack.c.bf16 %v2770, %v2770
    %v2772 = vld [vmem:[%s12] sm:$0xff]
    %v2773 = vld [vmem:[%s12 + $0x8] sm:$0xff]
    %v2774 = vld [vmem:[%s12 + $0x10] sm:$0xff]
    %v2775 = vld [vmem:[%s12 + $0x18] sm:$0xff]
    %v2776 = vld [vmem:[%s12 + $0x20] sm:$0xff]
    %v2777 = vld [vmem:[%s12 + $0x28] sm:$0xff]
    %v2778 = vld [vmem:[%s12 + $0x30] sm:$0xff]
    %v2779 = vld [vmem:[%s12 + $0x38] sm:$0xff]
    %v2780 = vld [vmem:[%s12 + $0x40] sm:$0xff]
    %v2781 = vld [vmem:[%s12 + $0x48] sm:$0xff]
    %v2782 = vld [vmem:[%s12 + $0x50] sm:$0xff]
    %v2783 = vld [vmem:[%s12 + $0x58] sm:$0xff]
    %v2784 = vld [vmem:[%s12 + $0x60] sm:$0xff]
    %v2785 = vld [vmem:[%s12 + $0x68] sm:$0xff]
    %v2786 = vld [vmem:[%s12 + $0x70] sm:$0xff]
    %v2787 = vld [vmem:[%s12 + $0x78] sm:$0xff]
    %v2788 = vpack.c.bf16 %v2773, %v2772
    %v2789 = vpack.c.bf16 %v2775, %v2774
    %v2790 = vpack.c.bf16 %v2777, %v2776
    %v2791 = vpack.c.bf16 %v2779, %v2778
    %v2792 = vpack.c.bf16 %v2781, %v2780
    %v2793 = vpack.c.bf16 %v2783, %v2782
    %v2794 = vpack.c.bf16 %v2785, %v2784
    %v2795 = vpack.c.bf16 %v2787, %v2786
    %v2796 = vlaneseq
    %v2797 = vshrl.u32 %v2796, 7
    %v2798 = vsub.s32 0, %v2797
    %v2799 = vrot.slane %v2682, %v2798
    %2800 = vmatprep.subr.bf16.mxu0 0
    %2801 = vmatpush1.bf16.msra.mxu0 %v2788
    %2802 = vmatprep.subr.bf16.mxu0 0
    %2803 = vmatpush1.bf16.msra.mxu0 %v2789
    %2804 = vmatprep.subr.bf16.mxu0 0
    %2805 = vmatpush1.bf16.msra.mxu0 %v2790
    %2806 = vmatprep.subr.bf16.mxu0 0
    %2807 = vmatpush1.bf16.msra.mxu0 %v2791
    %2808 = vmatprep.subr.bf16.mxu0 0
    %2809 = vmatpush1.bf16.msra.mxu0 %v2792
    %2810 = vmatprep.subr.bf16.mxu0 0
    %2811 = vmatpush1.bf16.msra.mxu0 %v2793
    %2812 = vmatprep.subr.bf16.mxu0 0
    %2813 = vmatpush1.bf16.msra.mxu0 %v2794
    %2814 = vmatprep.subr.bf16.mxu0 0
    %2815 = vmatpush1.bf16.msra.mxu0 %v2795
    %2816 = vmatprep.subr.bf16.mxu0 0
    %2817 = vmatpush1.bf16.msra.mxu0 0
    %2818 = vmatprep.subr.bf16.mxu0 0
    %2819 = vmatpush1.bf16.msra.mxu0 0
    %2820 = vmatprep.subr.bf16.mxu0 0
    %2821 = vmatpush1.bf16.msra.mxu0 0
    %2822 = vmatprep.subr.bf16.mxu0 0
    %2823 = vmatpush1.bf16.msra.mxu0 0
    %2824 = vmatprep.subr.bf16.mxu0 0
    %2825 = vmatpush1.bf16.msra.mxu0 0
    %2826 = vmatprep.subr.bf16.mxu0 0
    %2827 = vmatpush1.bf16.msra.mxu0 0
    %2828 = vmatprep.subr.bf16.mxu0 0
    %2829 = vmatpush1.bf16.msra.mxu0 0
    %2830 = vmatprep.subr.bf16.mxu0 0
    %2831 = vmatpush1.bf16.msra.mxu0 0
    %2832 = vmatprep.mubr.bf16.mxu0 0
    %2833 = vmatmul.mubr.bf16.gmra.mrb[0].mxu0 %v2771
    %v2834 = vpop.f32.mrb[0].mxu0
    %v2835 = vadd.f32 %v2799, %v2834
    %v2836 = vpop.f32.mrb[0].mxu0
    %v2837 = vpop.f32.mrb[0].mxu0
    %v2838 = vpop.f32.mrb[0].mxu0
    %2839 = vdwg.mxu0
    %vm2840 = vcmask 517120
    %v2841 = vsel %vm2840, %v2835, 0.0
    %2842 = vadd.xlane.f32.xlu0 %v2841
    %v2843 = vpop.xlane.xlu0 %2842
    %v2844 = vrcp.pop 64.0
    %v2845 = vmul.f32 %v2843, %v2844
    %v2846 = vsub.f32 %v2835, %v2845
    %v2847 = vmul.f32 %v2846, %v2846
    %v2848 = vsel %vm2840, %v2847, 0.0
    %2849 = vadd.xlane.f32.xlu0 %v2848
    %v2850 = vpop.xlane.xlu0 %2849
    %v2851 = vmul.f32 %v2850, %v2844
    %v2852 = vadd.f32 %v2851, 1e-05
    %v2853 = vrsqrt.pop %v2852
    %v2854 = vmul.f32 %v2846, %v2853
    %v2855 = vlaneseq
    %v2856 = vshrl.u32 %v2855, 7
    %v2857 = vsub.s32 1, %v2856
    %v2858 = vrot.slane %v2682, %v2857
    %v2859 = vmul.f32 %v2854, %v2858
    %v2860 = vlaneseq
    %v2861 = vshrl.u32 %v2860, 7
    %v2862 = vsub.s32 2, %v2861
    %v2863 = vrot.slane %v2682, %v2862
    %v2864 = vadd.f32 %v2859, %v2863
    %v2865 = vmul.f32 %v2864, 0.5
    %v2866 = vmul.f32 %v2864, 0.044715
    %v2867 = vmul.f32 %v2866, %v2864
    %v2868 = vmul.f32 %v2867, %v2864
    %v2869 = vadd.f32 %v2864, %v2868
    %v2870 = vmul.f32 %v2869, 0.7978846
    %v2871 = vtanh.pop %v2870
    %v2872 = vadd.f32 %v2871, 1.0
    %v2873 = vmul.f32 %v2865, %v2872
    %v2874 = vpack.c.bf16 %v2873, %v2873
    %v2875 = vld [vmem:[%s14] sm:$0xff]
    %v2876 = vld [vmem:[%s14 + $0x8] sm:$0xff]
    %v2877 = vld [vmem:[%s14 + $0x10] sm:$0xff]
    %v2878 = vld [vmem:[%s14 + $0x18] sm:$0xff]
    %v2879 = vld [vmem:[%s14 + $0x20] sm:$0xff]
    %v2880 = vld [vmem:[%s14 + $0x28] sm:$0xff]
    %v2881 = vld [vmem:[%s14 + $0x30] sm:$0xff]
    %v2882 = vld [vmem:[%s14 + $0x38] sm:$0xff]
    %v2883 = vpack.c.bf16 %v2876, %v2875
    %v2884 = vpack.c.bf16 %v2878, %v2877
    %v2885 = vpack.c.bf16 %v2880, %v2879
    %v2886 = vpack.c.bf16 %v2882, %v2881
    %v2887 = vld [vmem:[%s15] sm:$0x1]
    %v2889 = vlaneseq
    %v2890 = vshrl.u32 %v2889, 7
    %v2891 = vsub.s32 0, %v2890
    %v2892 = vrot.slane %v2887, %v2891
    %v2895 = vsel %vm1307, %v2874, 0
    %2897 = vmatprep.subr.bf16.mxu0 0
    %2898 = vmatpush1.bf16.msra.mxu0 %v2883
    %2899 = vmatprep.subr.bf16.mxu0 0
    %2900 = vmatpush1.bf16.msra.mxu0 %v2884
    %2901 = vmatprep.subr.bf16.mxu0 0
    %2902 = vmatpush1.bf16.msra.mxu0 %v2885
    %2903 = vmatprep.subr.bf16.mxu0 0
    %2904 = vmatpush1.bf16.msra.mxu0 %v2886
    %2905 = vmatprep.subr.bf16.mxu0 0
    %2906 = vmatpush1.bf16.msra.mxu0 0
    %2907 = vmatprep.subr.bf16.mxu0 0
    %2908 = vmatpush1.bf16.msra.mxu0 0
    %2909 = vmatprep.subr.bf16.mxu0 0
    %2910 = vmatpush1.bf16.msra.mxu0 0
    %2911 = vmatprep.subr.bf16.mxu0 0
    %2912 = vmatpush1.bf16.msra.mxu0 0
    %2913 = vmatprep.subr.bf16.mxu0 0
    %2914 = vmatpush1.bf16.msra.mxu0 0
    %2915 = vmatprep.subr.bf16.mxu0 0
    %2916 = vmatpush1.bf16.msra.mxu0 0
    %2917 = vmatprep.subr.bf16.mxu0 0
    %2918 = vmatpush1.bf16.msra.mxu0 0
    %2919 = vmatprep.subr.bf16.mxu0 0
    %2920 = vmatpush1.bf16.msra.mxu0 0
    %2921 = vmatprep.subr.bf16.mxu0 0
    %2922 = vmatpush1.bf16.msra.mxu0 0
    %2923 = vmatprep.subr.bf16.mxu0 0
    %2924 = vmatpush1.bf16.msra.mxu0 0
    %2925 = vmatprep.subr.bf16.mxu0 0
    %2926 = vmatpush1.bf16.msra.mxu0 0
    %2927 = vmatprep.subr.bf16.mxu0 0
    %2928 = vmatpush1.bf16.msra.mxu0 0
    %2929 = vmatprep.mubr.bf16.mxu0 0
    %2930 = vmatmul.mubr.bf16.gmra.mrb[0].mxu0 %v2895
    %v2931 = vpop.f32.mrb[0].mxu0
    %v2932 = vadd.f32 %v2892, %v2931
    %v2933 = vpop.f32.mrb[0].mxu0
    %v2934 = vpop.f32.mrb[0].mxu0
    %v2935 = vpop.f32.mrb[0].mxu0
    %2936 = vdwg.mxu0
    %2937 = vst [vmem:[#allocation2] sm:$0x3] %v2932
    // Predicated region
    $region66: #{tpu_custom_call.1} parent=1 // pred_check
      _
    $region67: #{tpu_custom_call.1} parent=1 // pred_check_branch
      %2939 = sbr.rel (0) target = $region69
    $region68: #{tpu_custom_call.1} parent=1 // pred_region
      %s2941 = ssub.s32 32, 32
      %2942 = vsyncadd [#allocation3], %s2941
      %s2944 = sshll.u32 [#allocation2], 4
      %s2945 = int_to_ptr.vmem [resolvable:$true] %s2944
      %2947 = dma.vmem_to_hbm [thread:$0]  %s2945, 32, %s16, [#allocation3]
    $region69: #{tpu_custom_call.1} parent=1 // pred_fallthru
      _
    // Predicated region
    $region70: #{tpu_custom_call.1} parent=1 // pred_check
      _
    $region71: #{tpu_custom_call.1} parent=1 // pred_check_branch
      %2949 = sbr.rel (0) target = $region73
    $region72: #{tpu_custom_call.1} parent=1 // pred_region
      %2950 = dma.done [#allocation3], 32
    $region73: #{tpu_custom_call.1} parent=1 // pred_fallthru
      _
    %2951 = vsyncpa [#allocation3], 1

</llo_original>
